<compile_context>
chip_gen: v6e
topology: v6e:2x2x1
jax: 0.10.0
libtpu: 0.0.40
codegen_flags: <defaults>
</compile_context>

<pallas_src>
import jax
import jax.numpy as jnp
import numpy as np
from jax.experimental import pallas as pl
from jax.experimental.pallas import tpu as pltpu

LANE = 128
_BN_EPS = 1e-5
_VMEM_LIMIT = 32 * 1024 * 1024   # safe scoped limit on v5e/v6e/v7x
_TM = 1024                       # M tile: parallel axis, batch-independent VMEM


def _round_up(x, m):
    return (x + m - 1) // m * m


# ----------------------------------------------------------------------------
# Pallas kernel bodies
# ----------------------------------------------------------------------------
def _mm_stats_kernel(a_ref, b_ref, o_ref, s_ref):
    """Single-shot A@B (bf16 operands, f32 MXU accumulation).  Writes the
    bf16 result plus per-M-tile column (sum, sum-of-squares) for BatchNorm."""
    y = jnp.dot(a_ref[...], b_ref[...], preferred_element_type=jnp.float32)
    o_ref[...] = y.astype(o_ref.dtype)
    ssum = jnp.sum(y, axis=0, keepdims=True)          # (1, Np)
    ssq = jnp.sum(y * y, axis=0, keepdims=True)       # (1, Np)
    s_ref[...] = jnp.concatenate([ssum, ssq], axis=0)[None]   # (1, 2, Np)


def _mm_stats_kernel_acc(a_ref, b_ref, o_ref, s_ref, acc_ref):
    """K-tiled variant: grid = (nm, nk), K is the trailing arbitrary axis."""
    k = pl.program_id(1)

    @pl.when(k == 0)
    def _():
        acc_ref[...] = jnp.zeros_like(acc_ref)

    acc_ref[...] += jnp.dot(a_ref[...], b_ref[...],
                            preferred_element_type=jnp.float32)

    @pl.when(k == pl.num_programs(1) - 1)
    def _():
        y = acc_ref[...]
        o_ref[...] = y.astype(o_ref.dtype)
        ssum = jnp.sum(y, axis=0, keepdims=True)
        ssq = jnp.sum(y * y, axis=0, keepdims=True)
        s_ref[...] = jnp.concatenate([ssum, ssq], axis=0)[None]


def _mm_tanh_kernel(a_ref, b_ref, o_ref):
    y = jnp.dot(a_ref[...], b_ref[...], preferred_element_type=jnp.float32)
    o_ref[...] = jnp.tanh(y).astype(o_ref.dtype)


def _mm_tanh_kernel_acc(a_ref, b_ref, o_ref, acc_ref):
    k = pl.program_id(1)

    @pl.when(k == 0)
    def _():
        acc_ref[...] = jnp.zeros_like(acc_ref)

    acc_ref[...] += jnp.dot(a_ref[...], b_ref[...],
                            preferred_element_type=jnp.float32)

    @pl.when(k == pl.num_programs(1) - 1)
    def _():
        o_ref[...] = jnp.tanh(acc_ref[...]).astype(o_ref.dtype)


# ----------------------------------------------------------------------------
# pallas_call wrappers
# ----------------------------------------------------------------------------
def _tile_and_pad_m(a, tm):
    """Choose the M tile and zero-pad rows to a tile multiple (zero rows are
    harmless: they contribute 0 to BN sums and are sliced off afterwards)."""
    m = a.shape[0]
    tm_eff = min(tm, m)
    nm = -(-m // tm_eff)
    mp = nm * tm_eff
    if mp > m:
        a = jnp.pad(a, ((0, mp - m), (0, 0)))
    return a, tm_eff, nm, mp


def _choose_tk(k):
    """Full-K block (no accumulator) whenever it comfortably fits VMEM."""
    if k <= 2048:
        return k
    for tk in (2048, 1024, 512, 256, 128):
        if k % tk == 0:
            return tk
    return k


def fused_matmul_stats(a, b, *, tm=_TM):
    """out = a @ b (bf16 out, f32 accumulation) + per-M-tile BN statistics.

    a: (M, K) bf16 patches, b: (K, Np) bf16 weights (Np % 128 == 0).
    Returns ((Mp, Np) bf16, (nm, 2, Np) f32 [sum; sum-of-squares]).
    M is tiled along a "parallel" grid axis (megacore-friendly, VMEM use is
    independent of batch); K is tiled only when needed and the accumulator
    scratch is skipped when nk == 1.
    """
    m, k = a.shape
    npad = b.shape[1]
    a, tm_eff, nm, mp = _tile_and_pad_m(a, tm)
    tk = _choose_tk(k)
    nk = k // tk if k % tk == 0 else 1

    out_shape = (jax.ShapeDtypeStruct((mp, npad), jnp.bfloat16),
                 jax.ShapeDtypeStruct((nm, 2, npad), jnp.float32))
    cost = pl.CostEstimate(
        flops=2 * mp * k * npad, transcendentals=0,
        bytes_accessed=2 * mp * k + 2 * k * npad + 2 * mp * npad + 8 * nm * npad)

    if nk == 1:
        return pl.pallas_call(
            _mm_stats_kernel,
            out_shape=out_shape,
            grid=(nm,),
            in_specs=[pl.BlockSpec((tm_eff, k), lambda i: (i, 0)),
                      pl.BlockSpec((k, npad), lambda i: (0, 0))],
            out_specs=(pl.BlockSpec((tm_eff, npad), lambda i: (i, 0)),
                       pl.BlockSpec((1, 2, npad), lambda i: (i, 0, 0))),
            compiler_params=pltpu.CompilerParams(
                dimension_semantics=("parallel",),
                vmem_limit_bytes=_VMEM_LIMIT),
            cost_estimate=cost,
        )(a, b)

    return pl.pallas_call(
        _mm_stats_kernel_acc,
        out_shape=out_shape,
        grid=(nm, nk),
        in_specs=[pl.BlockSpec((tm_eff, tk), lambda i, kk: (i, kk)),
                  pl.BlockSpec((tk, npad), lambda i, kk: (kk, 0))],
        out_specs=(pl.BlockSpec((tm_eff, npad), lambda i, kk: (i, 0)),
                   pl.BlockSpec((1, 2, npad), lambda i, kk: (i, 0, 0))),
        scratch_shapes=[pltpu.VMEM((tm_eff, npad), jnp.float32)],
        compiler_params=pltpu.CompilerParams(
            dimension_semantics=("parallel", "arbitrary"),
            vmem_limit_bytes=_VMEM_LIMIT),
        cost_estimate=cost,
    )(a, b)


def fused_matmul_tanh(a, b, *, tm=_TM):
    """tanh(a @ b) with bf16 writeback; M tiled on a parallel axis."""
    m, k = a.shape
    npad = b.shape[1]
    a, tm_eff, nm, mp = _tile_and_pad_m(a, tm)
    tk = _choose_tk(k)
    nk = k // tk if k % tk == 0 else 1

    out_shape = jax.ShapeDtypeStruct((mp, npad), jnp.bfloat16)
    cost = pl.CostEstimate(
        flops=2 * mp * k * npad, transcendentals=mp * npad,
        bytes_accessed=2 * mp * k + 2 * k * npad + 2 * mp * npad)

    if nk == 1:
        return pl.pallas_call(
            _mm_tanh_kernel,
            out_shape=out_shape,
            grid=(nm,),
            in_specs=[pl.BlockSpec((tm_eff, k), lambda i: (i, 0)),
                      pl.BlockSpec((k, npad), lambda i: (0, 0))],
            out_specs=pl.BlockSpec((tm_eff, npad), lambda i: (i, 0)),
            compiler_params=pltpu.CompilerParams(
                dimension_semantics=("parallel",),
                vmem_limit_bytes=_VMEM_LIMIT),
            cost_estimate=cost,
        )(a, b)

    return pl.pallas_call(
        _mm_tanh_kernel_acc,
        out_shape=out_shape,
        grid=(nm, nk),
        in_specs=[pl.BlockSpec((tm_eff, tk), lambda i, kk: (i, kk)),
                  pl.BlockSpec((tk, npad), lambda i, kk: (kk, 0))],
        out_specs=pl.BlockSpec((tm_eff, npad), lambda i, kk: (i, 0)),
        scratch_shapes=[pltpu.VMEM((tm_eff, npad), jnp.float32)],
        compiler_params=pltpu.CompilerParams(
            dimension_semantics=("parallel", "arbitrary"),
            vmem_limit_bytes=_VMEM_LIMIT),
        cost_estimate=cost,
    )(a, b)


# ----------------------------------------------------------------------------
# Sub-pixel (phase) decomposition of ConvTranspose2d(k=4, s=2, p=1)
# ----------------------------------------------------------------------------
# For output phase dy (even/odd rows) only two kernel rows are live:
#   dy=0: input offset -1 -> kh=3, offset 0 -> kh=1
#   dy=1: input offset  0 -> kh=2, offset +1 -> kh=0
_PHASE_SEL = np.zeros((2, 3, 4), np.float32)
_PHASE_SEL[0, 0, 3] = 1.0
_PHASE_SEL[0, 1, 1] = 1.0
_PHASE_SEL[1, 1, 2] = 1.0
_PHASE_SEL[1, 2, 0] = 1.0


def _phase_weight(wt, k_pad, n_pad):
    """(Cin, Cout, 4, 4) ConvTranspose2d weight -> (k_pad, n_pad) bf16 matrix.
    Rows ordered (rh, rw, ci) over the 3x3 input window, columns ordered
    (dy, dx, co) over the 2x2 output phases; padding rows/cols are zero."""
    cin, cout = wt.shape[0], wt.shape[1]
    sel = jnp.asarray(_PHASE_SEL)
    wb = jnp.einsum("yhk,xwl,iokl->hwiyxo", sel, sel, wt)
    wb = wb.reshape(9 * cin, 4 * cout)
    wb = jnp.pad(wb, ((0, k_pad - 9 * cin), (0, n_pad - 4 * cout)))
    return wb.astype(jnp.bfloat16)


def _phase_patches(x, k_pad):
    """(N, H, W, C) bf16 -> (N*H*W, k_pad) bf16 patches: 3x3 zero-padded input
    windows, columns (rh, rw, ci); lane padding is folded into the single
    concatenate so only one patches array is materialised per layer."""
    n, h, w, c = x.shape
    xp = jnp.pad(x, ((0, 0), (1, 1), (1, 1), (0, 0)))
    cols = [xp[:, rh:rh + h, rw:rw + w, :]
            for rh in range(3) for rw in range(3)]
    if k_pad > 9 * c:
        cols.append(jnp.zeros((n, h, w, k_pad - 9 * c), x.dtype))
    return jnp.concatenate(cols, axis=-1).reshape(n * h * w, k_pad)


def _bn_scale_shift(stats, gamma, beta, count, groups, cout):
    """Reduce per-tile (sum, sumsq) -> per-channel affine (training-mode BN,
    biased variance, eps=1e-5).  `groups` = phase/kernel-position copies of
    each channel packed along the lane axis."""
    s = stats[:, :, :groups * cout].sum(axis=0)            # (2, groups*cout)
    s = s.reshape(2, groups, cout).sum(axis=1)              # (2, cout)
    mean = s[0] / count
    var = jnp.maximum(s[1] / count - mean * mean, 0.0)
    scale = gamma * jax.lax.rsqrt(var + _BN_EPS)
    shift = beta - mean * scale
    return scale, shift


# ----------------------------------------------------------------------------
# Generator forward
# ----------------------------------------------------------------------------
def generator_forward(z_nchw, params):
    """DCGAN generator forward: (N, n_z, 1, 1) -> (N, n_chan, 64, 64)."""
    n, n_z = z_nchw.shape[0], z_nchw.shape[1]

    # ---- Layer 0: ConvTranspose2d(n_z, C0, 4, 1, 0) on a 1x1 input is just
    #      z @ W with columns (kh, kw, co); BN stats fused in the kernel.
    w0 = params["w0"]                                        # (n_z, C0, 4, 4)
    c0 = w0.shape[1]
    k0 = _round_up(n_z, LANE)
    np0 = _round_up(16 * c0, LANE)
    z2d = jnp.pad(z_nchw.reshape(n, n_z),
                  ((0, 0), (0, k0 - n_z))).astype(jnp.bfloat16)
    w0mat = jnp.transpose(w0, (0, 2, 3, 1)).reshape(n_z, 16 * c0)
    w0mat = jnp.pad(w0mat, ((0, k0 - n_z),
                            (0, np0 - 16 * c0))).astype(jnp.bfloat16)
    y, stats = fused_matmul_stats(z2d, w0mat)
    scale, shift = _bn_scale_shift(stats, params["gamma0"], params["beta0"],
                                   count=n * 16, groups=16, cout=c0)
    act = y[:n, :16 * c0].astype(jnp.float32).reshape(n, 4, 4, c0)
    # BN-apply + ReLU is a per-channel affine; XLA fuses it into the next
    # layer's patch construction (keeps the BN epilogue off the Pallas grid).
    x = jnp.maximum(act * scale + shift, 0.0).astype(jnp.bfloat16)

    # ---- Layers 1..4: stride-2 phase decomposition, one matmul per layer.
    for i in range(1, 5):
        wt = params[f"w{i}"]                                 # (Cin, Cout, 4, 4)
        cin, cout = wt.shape[0], wt.shape[1]
        _, h, w_, _ = x.shape
        m = n * h * w_
        kp = _round_up(9 * cin, LANE)
        npad = _round_up(4 * cout, LANE)
        patches = _phase_patches(x, kp)                      # (M, kp) bf16
        wmat = _phase_weight(wt, kp, npad)                   # (kp, npad) bf16

        if i < 4:
            y, stats = fused_matmul_stats(patches, wmat)
            scale, shift = _bn_scale_shift(stats, params[f"gamma{i}"],
                                           params[f"beta{i}"],
                                           count=4 * m, groups=4, cout=cout)
            yv = y[:m, :4 * cout].astype(jnp.float32)
            yv = yv.reshape(n, h, w_, 2, 2, cout)
            yv = jnp.maximum(yv * scale + shift, 0.0).astype(jnp.bfloat16)
        else:
            y = fused_matmul_tanh(patches, wmat)             # bf16 writeback
            yv = y[:m, :4 * cout].reshape(n, h, w_, 2, 2, cout)

        # pixel-shuffle the 2x2 phases back to spatial (N, 2H, 2W, Cout)
        x = jnp.transpose(yv, (0, 1, 3, 2, 4, 5)).reshape(n, 2 * h, 2 * w_, cout)

    return jnp.transpose(x, (0, 3, 1, 2)).astype(jnp.float32)   # NHWC -> NCHW


# ----------------------------------------------------------------------------
# Main
# ----------------------------------------------------------------------------
if __name__ == "__main__":
    # Small, deterministic configuration: n_z=8, ngf=8, n_chan=3, batch=2.
    n_z, ngf, n_chan, batch = 8, 8, 3, 2
    chans = [n_z, ngf * 8, ngf * 4, ngf * 2, ngf, n_chan]

    key = jax.random.PRNGKey(0)
    keys = jax.random.split(key, 16)

    params = {}
    for i in range(5):
        params[f"w{i}"] = 0.02 * jax.random.normal(
            keys[i], (chans[i], chans[i + 1], 4, 4), jnp.float32)
    for i in range(4):
        c = chans[i + 1]
        params[f"gamma{i}"] = 1.0 + 0.02 * jax.random.normal(
            keys[5 + i], (c,), jnp.float32)
        params[f"beta{i}"] = 0.02 * jax.random.normal(
            keys[9 + i], (c,), jnp.float32)

    z = jax.random.normal(keys[13], (batch, n_z, 1, 1), jnp.float32)

    out = jax.block_until_ready(jax.jit(generator_forward)(z, params))

    assert out.shape == (batch, n_chan, 64, 64), out.shape
    assert bool(jnp.all(jnp.isfinite(out)))
    assert bool(jnp.all(jnp.abs(out) <= 1.0 + 1e-4))  # tanh range sanity
    print("KERNEL_OK")
</pallas_src>

<mosaic_0001>
module attributes {stable_mosaic.version = 11 : i64} {
  func.func @_mm_stats_kernel(%arg0: i32, %arg1: memref<2x128xbf16, #tpu.memory_space<vmem>>, %arg2: memref<128x1024xbf16, #tpu.memory_space<vmem>>, %arg3: memref<2x1024xbf16, #tpu.memory_space<vmem>>, %arg4: memref<1x2x1024xf32, #tpu.memory_space<vmem>>) attributes {dimension_semantics = [#tpu.dimension_semantics<parallel>], iteration_bounds = array<i64: 1>, scalar_prefetch = 0 : i64, scratch_operands = 0 : i64, tpu.core_type = #tpu.core_type<tc>, window_params = [{transform_indices = @transform_0, window_bounds = array<i64: 2, 128>}, {pipeline_mode = #tpu.pipeline_mode<synchronous>, transform_indices = @transform_1, window_bounds = array<i64: 128, 1024>}, {transform_indices = @transform_2, window_bounds = array<i64: 2, 1024>}, {transform_indices = @transform_3, window_bounds = array<i64: 1, 2, 1024>}]} {
    %c0 = arith.constant 0 : index
    %c0_0 = arith.constant 0 : index
    %0 = vector.load %arg1[%c0, %c0_0] : memref<2x128xbf16, #tpu.memory_space<vmem>>, vector<2x128xbf16>
    %c0_1 = arith.constant 0 : index
    %c0_2 = arith.constant 0 : index
    %1 = vector.load %arg2[%c0_1, %c0_2] : memref<128x1024xbf16, #tpu.memory_space<vmem>>, vector<128x1024xbf16>
    %cst = arith.constant dense<0.000000e+00> : vector<2x1024xf32>
    %2 = tpu.matmul %0, %1, %cst {dimension_numbers = #tpu.dot_dimension_numbers<[1], [0], [0], [1], [0, 0, 1, 1], [], []>} : vector<2x128xbf16>, vector<128x1024xbf16>, vector<2x1024xf32> -> vector<2x1024xf32>
    %3 = arith.truncf %2 : vector<2x1024xf32> to vector<2x1024xbf16>
    %c0_3 = arith.constant 0 : index
    %c0_4 = arith.constant 0 : index
    %4 = vector.load %arg3[%c0_3, %c0_4] : memref<2x1024xbf16, #tpu.memory_space<vmem>>, vector<2x1024xbf16>
    tpu.vector_store %arg3[%c0_3, %c0_4], %3 {strides = array<i32>} : memref<2x1024xbf16, #tpu.memory_space<vmem>>, vector<2x1024xbf16>,
    %cst_5 = arith.constant dense<0.000000e+00> : vector<1024xf32>
    %5 = vector.multi_reduction <add>, %2, %cst_5 [0] : vector<2x1024xf32> to vector<1024xf32>
    %6 = vector.shape_cast %5 : vector<1024xf32> to vector<1x1024xf32>
    %7 = arith.mulf %2, %2 : vector<2x1024xf32>
    %cst_6 = arith.constant dense<0.000000e+00> : vector<1024xf32>
    %8 = vector.multi_reduction <add>, %7, %cst_6 [0] : vector<2x1024xf32> to vector<1024xf32>
    %9 = vector.shape_cast %8 : vector<1024xf32> to vector<1x1024xf32>
    %10 = tpu.concatenate %6, %9 in 0 : vector<1x1024xf32>, vector<1x1024xf32> -> vector<2x1024xf32>
    %11 = vector.shape_cast %10 : vector<2x1024xf32> to vector<1x2x1024xf32>
    %c0_7 = arith.constant 0 : index
    %c0_8 = arith.constant 0 : index
    %c0_9 = arith.constant 0 : index
    %12 = vector.load %arg4[%c0_7, %c0_8, %c0_9] : memref<1x2x1024xf32, #tpu.memory_space<vmem>>, vector<1x2x1024xf32>
    tpu.vector_store %arg4[%c0_7, %c0_8, %c0_9], %11 {strides = array<i32>} : memref<1x2x1024xf32, #tpu.memory_space<vmem>>, vector<1x2x1024xf32>,
    return
  }
  func.func @transform_0(%arg0: i32) -> (i32, i32) {
    %c0_i32 = arith.constant 0 : i32
    %c0_i32_0 = arith.constant 0 : i32
    return %arg0, %c0_i32 : i32, i32
  }
  func.func @transform_1(%arg0: i32) -> (i32, i32) {
    %c0_i32 = arith.constant 0 : i32
    %c0_i32_0 = arith.constant 0 : i32
    %c0_i32_1 = arith.constant 0 : i32
    return %c0_i32, %c0_i32_0 : i32, i32
  }
  func.func @transform_2(%arg0: i32) -> (i32, i32) {
    %c0_i32 = arith.constant 0 : i32
    %c0_i32_0 = arith.constant 0 : i32
    return %arg0, %c0_i32 : i32, i32
  }
  func.func @transform_3(%arg0: i32) -> (i32, i32, i32) {
    %c0_i32 = arith.constant 0 : i32
    %c0_i32_0 = arith.constant 0 : i32
    %c0_i32_1 = arith.constant 0 : i32
    return %arg0, %c0_i32, %c0_i32_0 : i32, i32, i32
  }
}

module attributes {stable_mosaic.version = 11 : i64} {
  func.func @_mm_stats_kernel(%arg0: i32, %arg1: memref<32x640xbf16, #tpu.memory_space<vmem>>, %arg2: memref<640x128xbf16, #tpu.memory_space<vmem>>, %arg3: memref<32x128xbf16, #tpu.memory_space<vmem>>, %arg4: memref<1x2x128xf32, #tpu.memory_space<vmem>>) attributes {dimension_semantics = [#tpu.dimension_semantics<parallel>], iteration_bounds = array<i64: 1>, scalar_prefetch = 0 : i64, scratch_operands = 0 : i64, tpu.core_type = #tpu.core_type<tc>, window_params = [{transform_indices = @transform_0, window_bounds = array<i64: 32, 640>}, {pipeline_mode = #tpu.pipeline_mode<synchronous>, transform_indices = @transform_1, window_bounds = array<i64: 640, 128>}, {transform_indices = @transform_2, window_bounds = array<i64: 32, 128>}, {transform_indices = @transform_3, window_bounds = array<i64: 1, 2, 128>}]} {
    %c0 = arith.constant 0 : index
    %c0_0 = arith.constant 0 : index
    %0 = vector.load %arg1[%c0, %c0_0] : memref<32x640xbf16, #tpu.memory_space<vmem>>, vector<32x640xbf16>
    %c0_1 = arith.constant 0 : index
    %c0_2 = arith.constant 0 : index
    %1 = vector.load %arg2[%c0_1, %c0_2] : memref<640x128xbf16, #tpu.memory_space<vmem>>, vector<640x128xbf16>
    %cst = arith.constant dense<0.000000e+00> : vector<32x128xf32>
    %2 = tpu.matmul %0, %1, %cst {dimension_numbers = #tpu.dot_dimension_numbers<[1], [0], [0], [1], [0, 0, 1, 1], [], []>} : vector<32x640xbf16>, vector<640x128xbf16>, vector<32x128xf32> -> vector<32x128xf32>
    %3 = arith.truncf %2 : vector<32x128xf32> to vector<32x128xbf16>
    %c0_3 = arith.constant 0 : index
    %c0_4 = arith.constant 0 : index
    %4 = vector.load %arg3[%c0_3, %c0_4] : memref<32x128xbf16, #tpu.memory_space<vmem>>, vector<32x128xbf16>
    tpu.vector_store %arg3[%c0_3, %c0_4], %3 {strides = array<i32>} : memref<32x128xbf16, #tpu.memory_space<vmem>>, vector<32x128xbf16>,
    %cst_5 = arith.constant dense<0.000000e+00> : vector<128xf32>
    %5 = vector.multi_reduction <add>, %2, %cst_5 [0] : vector<32x128xf32> to vector<128xf32>
    %6 = vector.shape_cast %5 : vector<128xf32> to vector<1x128xf32>
    %7 = arith.mulf %2, %2 : vector<32x128xf32>
    %cst_6 = arith.constant dense<0.000000e+00> : vector<128xf32>
    %8 = vector.multi_reduction <add>, %7, %cst_6 [0] : vector<32x128xf32> to vector<128xf32>
    %9 = vector.shape_cast %8 : vector<128xf32> to vector<1x128xf32>
    %10 = tpu.concatenate %6, %9 in 0 : vector<1x128xf32>, vector<1x128xf32> -> vector<2x128xf32>
    %11 = vector.shape_cast %10 : vector<2x128xf32> to vector<1x2x128xf32>
    %c0_7 = arith.constant 0 : index
    %c0_8 = arith.constant 0 : index
    %c0_9 = arith.constant 0 : index
    %12 = vector.load %arg4[%c0_7, %c0_8, %c0_9] : memref<1x2x128xf32, #tpu.memory_space<vmem>>, vector<1x2x128xf32>
    tpu.vector_store %arg4[%c0_7, %c0_8, %c0_9], %11 {strides = array<i32>} : memref<1x2x128xf32, #tpu.memory_space<vmem>>, vector<1x2x128xf32>,
    return
  }
  func.func @transform_0(%arg0: i32) -> (i32, i32) {
    %c0_i32 = arith.constant 0 : i32
    %c0_i32_0 = arith.constant 0 : i32
    return %arg0, %c0_i32 : i32, i32
  }
  func.func @transform_1(%arg0: i32) -> (i32, i32) {
    %c0_i32 = arith.constant 0 : i32
    %c0_i32_0 = arith.constant 0 : i32
    %c0_i32_1 = arith.constant 0 : i32
    return %c0_i32, %c0_i32_0 : i32, i32
  }
  func.func @transform_2(%arg0: i32) -> (i32, i32) {
    %c0_i32 = arith.constant 0 : i32
    %c0_i32_0 = arith.constant 0 : i32
    return %arg0, %c0_i32 : i32, i32
  }
  func.func @transform_3(%arg0: i32) -> (i32, i32, i32) {
    %c0_i32 = arith.constant 0 : i32
    %c0_i32_0 = arith.constant 0 : i32
    %c0_i32_1 = arith.constant 0 : i32
    return %arg0, %c0_i32, %c0_i32_0 : i32, i32, i32
  }
}

module attributes {stable_mosaic.version = 11 : i64} {
  func.func @_mm_stats_kernel(%arg0: i32, %arg1: memref<128x384xbf16, #tpu.memory_space<vmem>>, %arg2: memref<384x128xbf16, #tpu.memory_space<vmem>>, %arg3: memref<128x128xbf16, #tpu.memory_space<vmem>>, %arg4: memref<1x2x128xf32, #tpu.memory_space<vmem>>) attributes {dimension_semantics = [#tpu.dimension_semantics<parallel>], iteration_bounds = array<i64: 1>, scalar_prefetch = 0 : i64, scratch_operands = 0 : i64, tpu.core_type = #tpu.core_type<tc>, window_params = [{transform_indices = @transform_0, window_bounds = array<i64: 128, 384>}, {pipeline_mode = #tpu.pipeline_mode<synchronous>, transform_indices = @transform_1, window_bounds = array<i64: 384, 128>}, {transform_indices = @transform_2, window_bounds = array<i64: 128, 128>}, {transform_indices = @transform_3, window_bounds = array<i64: 1, 2, 128>}]} {
    %c0 = arith.constant 0 : index
    %c0_0 = arith.constant 0 : index
    %0 = vector.load %arg1[%c0, %c0_0] : memref<128x384xbf16, #tpu.memory_space<vmem>>, vector<128x384xbf16>
    %c0_1 = arith.constant 0 : index
    %c0_2 = arith.constant 0 : index
    %1 = vector.load %arg2[%c0_1, %c0_2] : memref<384x128xbf16, #tpu.memory_space<vmem>>, vector<384x128xbf16>
    %cst = arith.constant dense<0.000000e+00> : vector<128x128xf32>
    %2 = tpu.matmul %0, %1, %cst {dimension_numbers = #tpu.dot_dimension_numbers<[1], [0], [0], [1], [0, 0, 1, 1], [], []>} : vector<128x384xbf16>, vector<384x128xbf16>, vector<128x128xf32> -> vector<128x128xf32>
    %3 = arith.truncf %2 : vector<128x128xf32> to vector<128x128xbf16>
    %c0_3 = arith.constant 0 : index
    %c0_4 = arith.constant 0 : index
    %4 = vector.load %arg3[%c0_3, %c0_4] : memref<128x128xbf16, #tpu.memory_space<vmem>>, vector<128x128xbf16>
    tpu.vector_store %arg3[%c0_3, %c0_4], %3 {strides = array<i32>} : memref<128x128xbf16, #tpu.memory_space<vmem>>, vector<128x128xbf16>,
    %cst_5 = arith.constant dense<0.000000e+00> : vector<128xf32>
    %5 = vector.multi_reduction <add>, %2, %cst_5 [0] : vector<128x128xf32> to vector<128xf32>
    %6 = vector.shape_cast %5 : vector<128xf32> to vector<1x128xf32>
    %7 = arith.mulf %2, %2 : vector<128x128xf32>
    %cst_6 = arith.constant dense<0.000000e+00> : vector<128xf32>
    %8 = vector.multi_reduction <add>, %7, %cst_6 [0] : vector<128x128xf32> to vector<128xf32>
    %9 = vector.shape_cast %8 : vector<128xf32> to vector<1x128xf32>
    %10 = tpu.concatenate %6, %9 in 0 : vector<1x128xf32>, vector<1x128xf32> -> vector<2x128xf32>
    %11 = vector.shape_cast %10 : vector<2x128xf32> to vector<1x2x128xf32>
    %c0_7 = arith.constant 0 : index
    %c0_8 = arith.constant 0 : index
    %c0_9 = arith.constant 0 : index
    %12 = vector.load %arg4[%c0_7, %c0_8, %c0_9] : memref<1x2x128xf32, #tpu.memory_space<vmem>>, vector<1x2x128xf32>
    tpu.vector_store %arg4[%c0_7, %c0_8, %c0_9], %11 {strides = array<i32>} : memref<1x2x128xf32, #tpu.memory_space<vmem>>, vector<1x2x128xf32>,
    return
  }
  func.func @transform_0(%arg0: i32) -> (i32, i32) {
    %c0_i32 = arith.constant 0 : i32
    %c0_i32_0 = arith.constant 0 : i32
    return %arg0, %c0_i32 : i32, i32
  }
  func.func @transform_1(%arg0: i32) -> (i32, i32) {
    %c0_i32 = arith.constant 0 : i32
    %c0_i32_0 = arith.constant 0 : i32
    %c0_i32_1 = arith.constant 0 : i32
    return %c0_i32, %c0_i32_0 : i32, i32
  }
  func.func @transform_2(%arg0: i32) -> (i32, i32) {
    %c0_i32 = arith.constant 0 : i32
    %c0_i32_0 = arith.constant 0 : i32
    return %arg0, %c0_i32 : i32, i32
  }
  func.func @transform_3(%arg0: i32) -> (i32, i32, i32) {
    %c0_i32 = arith.constant 0 : i32
    %c0_i32_0 = arith.constant 0 : i32
    %c0_i32_1 = arith.constant 0 : i32
    return %arg0, %c0_i32, %c0_i32_0 : i32, i32, i32
  }
}

module attributes {stable_mosaic.version = 11 : i64} {
  func.func @_mm_stats_kernel(%arg0: i32, %arg1: memref<512x256xbf16, #tpu.memory_space<vmem>>, %arg2: memref<256x128xbf16, #tpu.memory_space<vmem>>, %arg3: memref<512x128xbf16, #tpu.memory_space<vmem>>, %arg4: memref<1x2x128xf32, #tpu.memory_space<vmem>>) attributes {dimension_semantics = [#tpu.dimension_semantics<parallel>], iteration_bounds = array<i64: 1>, scalar_prefetch = 0 : i64, scratch_operands = 0 : i64, tpu.core_type = #tpu.core_type<tc>, window_params = [{transform_indices = @transform_0, window_bounds = array<i64: 512, 256>}, {pipeline_mode = #tpu.pipeline_mode<synchronous>, transform_indices = @transform_1, window_bounds = array<i64: 256, 128>}, {transform_indices = @transform_2, window_bounds = array<i64: 512, 128>}, {transform_indices = @transform_3, window_bounds = array<i64: 1, 2, 128>}]} {
    %c0 = arith.constant 0 : index
    %c0_0 = arith.constant 0 : index
    %0 = vector.load %arg1[%c0, %c0_0] : memref<512x256xbf16, #tpu.memory_space<vmem>>, vector<512x256xbf16>
    %c0_1 = arith.constant 0 : index
    %c0_2 = arith.constant 0 : index
    %1 = vector.load %arg2[%c0_1, %c0_2] : memref<256x128xbf16, #tpu.memory_space<vmem>>, vector<256x128xbf16>
    %cst = arith.constant dense<0.000000e+00> : vector<512x128xf32>
    %2 = tpu.matmul %0, %1, %cst {dimension_numbers = #tpu.dot_dimension_numbers<[1], [0], [0], [1], [0, 0, 1, 1], [], []>} : vector<512x256xbf16>, vector<256x128xbf16>, vector<512x128xf32> -> vector<512x128xf32>
    %3 = arith.truncf %2 : vector<512x128xf32> to vector<512x128xbf16>
    %c0_3 = arith.constant 0 : index
    %c0_4 = arith.constant 0 : index
    %4 = vector.load %arg3[%c0_3, %c0_4] : memref<512x128xbf16, #tpu.memory_space<vmem>>, vector<512x128xbf16>
    tpu.vector_store %arg3[%c0_3, %c0_4], %3 {strides = array<i32>} : memref<512x128xbf16, #tpu.memory_space<vmem>>, vector<512x128xbf16>,
    %cst_5 = arith.constant dense<0.000000e+00> : vector<128xf32>
    %5 = vector.multi_reduction <add>, %2, %cst_5 [0] : vector<512x128xf32> to vector<128xf32>
    %6 = vector.shape_cast %5 : vector<128xf32> to vector<1x128xf32>
    %7 = arith.mulf %2, %2 : vector<512x128xf32>
    %cst_6 = arith.constant dense<0.000000e+00> : vector<128xf32>
    %8 = vector.multi_reduction <add>, %7, %cst_6 [0] : vector<512x128xf32> to vector<128xf32>
    %9 = vector.shape_cast %8 : vector<128xf32> to vector<1x128xf32>
    %10 = tpu.concatenate %6, %9 in 0 : vector<1x128xf32>, vector<1x128xf32> -> vector<2x128xf32>
    %11 = vector.shape_cast %10 : vector<2x128xf32> to vector<1x2x128xf32>
    %c0_7 = arith.constant 0 : index
    %c0_8 = arith.constant 0 : index
    %c0_9 = arith.constant 0 : index
    %12 = vector.load %arg4[%c0_7, %c0_8, %c0_9] : memref<1x2x128xf32, #tpu.memory_space<vmem>>, vector<1x2x128xf32>
    tpu.vector_store %arg4[%c0_7, %c0_8, %c0_9], %11 {strides = array<i32>} : memref<1x2x128xf32, #tpu.memory_space<vmem>>, vector<1x2x128xf32>,
    return
  }
  func.func @transform_0(%arg0: i32) -> (i32, i32) {
    %c0_i32 = arith.constant 0 : i32
    %c0_i32_0 = arith.constant 0 : i32
    return %arg0, %c0_i32 : i32, i32
  }
  func.func @transform_1(%arg0: i32) -> (i32, i32) {
    %c0_i32 = arith.constant 0 : i32
    %c0_i32_0 = arith.constant 0 : i32
    %c0_i32_1 = arith.constant 0 : i32
    return %c0_i32, %c0_i32_0 : i32, i32
  }
  func.func @transform_2(%arg0: i32) -> (i32, i32) {
    %c0_i32 = arith.constant 0 : i32
    %c0_i32_0 = arith.constant 0 : i32
    return %arg0, %c0_i32 : i32, i32
  }
  func.func @transform_3(%arg0: i32) -> (i32, i32, i32) {
    %c0_i32 = arith.constant 0 : i32
    %c0_i32_0 = arith.constant 0 : i32
    %c0_i32_1 = arith.constant 0 : i32
    return %arg0, %c0_i32, %c0_i32_0 : i32, i32, i32
  }
}

module attributes {stable_mosaic.version = 11 : i64} {
  func.func @_mm_tanh_kernel(%arg0: i32, %arg1: memref<1024x128xbf16, #tpu.memory_space<vmem>>, %arg2: memref<128x128xbf16, #tpu.memory_space<vmem>>, %arg3: memref<1024x128xbf16, #tpu.memory_space<vmem>>) attributes {dimension_semantics = [#tpu.dimension_semantics<parallel>], iteration_bounds = array<i64: 2>, scalar_prefetch = 0 : i64, scratch_operands = 0 : i64, tpu.core_type = #tpu.core_type<tc>, window_params = [{transform_indices = @transform_0, window_bounds = array<i64: 1024, 128>}, {pipeline_mode = #tpu.pipeline_mode<synchronous>, transform_indices = @transform_1, window_bounds = array<i64: 128, 128>}, {transform_indices = @transform_2, window_bounds = array<i64: 1024, 128>}]} {
    %c0 = arith.constant 0 : index
    %c0_0 = arith.constant 0 : index
    %0 = vector.load %arg1[%c0, %c0_0] : memref<1024x128xbf16, #tpu.memory_space<vmem>>, vector<1024x128xbf16>
    %c0_1 = arith.constant 0 : index
    %c0_2 = arith.constant 0 : index
    %1 = vector.load %arg2[%c0_1, %c0_2] : memref<128x128xbf16, #tpu.memory_space<vmem>>, vector<128x128xbf16>
    %cst = arith.constant dense<0.000000e+00> : vector<1024x128xf32>
    %2 = tpu.matmul %0, %1, %cst {dimension_numbers = #tpu.dot_dimension_numbers<[1], [0], [0], [1], [0, 0, 1, 1], [], []>} : vector<1024x128xbf16>, vector<128x128xbf16>, vector<1024x128xf32> -> vector<1024x128xf32>
    %3 = math.tanh %2 : vector<1024x128xf32>
    %4 = arith.truncf %3 : vector<1024x128xf32> to vector<1024x128xbf16>
    %c0_3 = arith.constant 0 : index
    %c0_4 = arith.constant 0 : index
    %5 = vector.load %arg3[%c0_3, %c0_4] : memref<1024x128xbf16, #tpu.memory_space<vmem>>, vector<1024x128xbf16>
    tpu.vector_store %arg3[%c0_3, %c0_4], %4 {strides = array<i32>} : memref<1024x128xbf16, #tpu.memory_space<vmem>>, vector<1024x128xbf16>,
    return
  }
  func.func @transform_0(%arg0: i32) -> (i32, i32) {
    %c0_i32 = arith.constant 0 : i32
    %c0_i32_0 = arith.constant 0 : i32
    return %arg0, %c0_i32 : i32, i32
  }
  func.func @transform_1(%arg0: i32) -> (i32, i32) {
    %c0_i32 = arith.constant 0 : i32
    %c0_i32_0 = arith.constant 0 : i32
    %c0_i32_1 = arith.constant 0 : i32
    return %c0_i32, %c0_i32_0 : i32, i32
  }
  func.func @transform_2(%arg0: i32) -> (i32, i32) {
    %c0_i32 = arith.constant 0 : i32
    %c0_i32_0 = arith.constant 0 : i32
    return %arg0, %c0_i32 : i32, i32
  }
}

</mosaic_0001>

<llo_original>
// kernel: generator_forward.5
$region0: #{generator_forward.5}
  #allocation0 [shape = 'u32[]', space=smem, size = 0x4, offset = 0x4, fixed_abs, tag = 'smem constant byte address 0x4 - core index']
  #allocation1 [shape = 'u32[144,128]{1,0:T(1,128)}', space=vmem, size = 0x12000, scoped, tag = 'internal scratch']
  %s0 = inlined_call_operand.vmem [shape: bf16[2,128], index: 0, kind: input, shape index: {}]
  %s1 = inlined_call_operand.vmem [shape: bf16[128,1024], index: 1, kind: input, shape index: {}]
  %s2 = inlined_call_operand.vmem [shape: bf16[2,1024], index: 2, kind: output, shape index: {0}]
  %s3 = inlined_call_operand.vmem [shape: f32[1,2,1024], index: 3, kind: output, shape index: {1}]
  %4 = xla_tuple %s2, %s3
  %s5 = sld [smem:[#allocation0]]
  $region26: #{generator_forward.5} parent=0
    _
  %s7 = ssub.s32 1, %s5
  %s8 = scalar_select 0, %s7, %s5
  // Predicated region
  $region2: #{generator_forward.5} parent=0 // pred_check
    _
  $region3: #{generator_forward.5} parent=0 // pred_check_branch
    %10 = sbr.rel (0) target = $region5
  $region4: #{generator_forward.5} parent=0 // pred_region
    _
  $region5: #{generator_forward.5} parent=0 // pred_fallthru
    _
  // Predicated region
  $region6: #{generator_forward.5} parent=0 // pred_check
    _
  $region7: #{generator_forward.5} parent=0 // pred_check_branch
    %12 = sbr.rel (0) target = $region9
  $region8: #{generator_forward.5} parent=0 // pred_region
    _
  $region9: #{generator_forward.5} parent=0 // pred_fallthru
    _
  %v14 = vld [vmem:[%s0] sm:$0x1]
  %v15 = vld [vmem:[%s1] sm:$0xff]
  %v16 = vld [vmem:[%s1 + $0x8] sm:$0xff]
  %v17 = vld [vmem:[%s1 + $0x10] sm:$0xff]
  %v18 = vld [vmem:[%s1 + $0x18] sm:$0xff]
  %v19 = vld [vmem:[%s1 + $0x20] sm:$0xff]
  %v20 = vld [vmem:[%s1 + $0x28] sm:$0xff]
  %v21 = vld [vmem:[%s1 + $0x30] sm:$0xff]
  %v22 = vld [vmem:[%s1 + $0x38] sm:$0xff]
  %v23 = vld [vmem:[%s1 + $0x40] sm:$0xff]
  %v24 = vld [vmem:[%s1 + $0x48] sm:$0xff]
  %v25 = vld [vmem:[%s1 + $0x50] sm:$0xff]
  %v26 = vld [vmem:[%s1 + $0x58] sm:$0xff]
  %v27 = vld [vmem:[%s1 + $0x60] sm:$0xff]
  %v28 = vld [vmem:[%s1 + $0x68] sm:$0xff]
  %v29 = vld [vmem:[%s1 + $0x70] sm:$0xff]
  %v30 = vld [vmem:[%s1 + $0x78] sm:$0xff]
  %v31 = vld [vmem:[%s1 + $0x80] sm:$0xff]
  %v32 = vld [vmem:[%s1 + $0x88] sm:$0xff]
  %v33 = vld [vmem:[%s1 + $0x90] sm:$0xff]
  %v34 = vld [vmem:[%s1 + $0x98] sm:$0xff]
  %v35 = vld [vmem:[%s1 + $0xa0] sm:$0xff]
  %v36 = vld [vmem:[%s1 + $0xa8] sm:$0xff]
  %v37 = vld [vmem:[%s1 + $0xb0] sm:$0xff]
  %v38 = vld [vmem:[%s1 + $0xb8] sm:$0xff]
  %v39 = vld [vmem:[%s1 + $0xc0] sm:$0xff]
  %v40 = vld [vmem:[%s1 + $0xc8] sm:$0xff]
  %v41 = vld [vmem:[%s1 + $0xd0] sm:$0xff]
  %v42 = vld [vmem:[%s1 + $0xd8] sm:$0xff]
  %v43 = vld [vmem:[%s1 + $0xe0] sm:$0xff]
  %v44 = vld [vmem:[%s1 + $0xe8] sm:$0xff]
  %v45 = vld [vmem:[%s1 + $0xf0] sm:$0xff]
  %v46 = vld [vmem:[%s1 + $0xf8] sm:$0xff]
  %v47 = vld [vmem:[%s1 + $0x100] sm:$0xff]
  %v48 = vld [vmem:[%s1 + $0x108] sm:$0xff]
  %v49 = vld [vmem:[%s1 + $0x110] sm:$0xff]
  %v50 = vld [vmem:[%s1 + $0x118] sm:$0xff]
  %v51 = vld [vmem:[%s1 + $0x120] sm:$0xff]
  %v52 = vld [vmem:[%s1 + $0x128] sm:$0xff]
  %v53 = vld [vmem:[%s1 + $0x130] sm:$0xff]
  %v54 = vld [vmem:[%s1 + $0x138] sm:$0xff]
  %v55 = vld [vmem:[%s1 + $0x140] sm:$0xff]
  %v56 = vld [vmem:[%s1 + $0x148] sm:$0xff]
  %v57 = vld [vmem:[%s1 + $0x150] sm:$0xff]
  %v58 = vld [vmem:[%s1 + $0x158] sm:$0xff]
  %v59 = vld [vmem:[%s1 + $0x160] sm:$0xff]
  %v60 = vld [vmem:[%s1 + $0x168] sm:$0xff]
  %v61 = vld [vmem:[%s1 + $0x170] sm:$0xff]
  %v62 = vld [vmem:[%s1 + $0x178] sm:$0xff]
  %v63 = vld [vmem:[%s1 + $0x180] sm:$0xff]
  %v64 = vld [vmem:[%s1 + $0x188] sm:$0xff]
  %v65 = vld [vmem:[%s1 + $0x190] sm:$0xff]
  %v66 = vld [vmem:[%s1 + $0x198] sm:$0xff]
  %v67 = vld [vmem:[%s1 + $0x1a0] sm:$0xff]
  %v68 = vld [vmem:[%s1 + $0x1a8] sm:$0xff]
  %v69 = vld [vmem:[%s1 + $0x1b0] sm:$0xff]
  %v70 = vld [vmem:[%s1 + $0x1b8] sm:$0xff]
  %v71 = vld [vmem:[%s1 + $0x1c0] sm:$0xff]
  %v72 = vld [vmem:[%s1 + $0x1c8] sm:$0xff]
  %v73 = vld [vmem:[%s1 + $0x1d0] sm:$0xff]
  %v74 = vld [vmem:[%s1 + $0x1d8] sm:$0xff]
  %v75 = vld [vmem:[%s1 + $0x1e0] sm:$0xff]
  %v76 = vld [vmem:[%s1 + $0x1e8] sm:$0xff]
  %v77 = vld [vmem:[%s1 + $0x1f0] sm:$0xff]
  %v78 = vld [vmem:[%s1 + $0x1f8] sm:$0xff]
  %v143 = vunpack.c.l.b16 %v15
  %v144 = vunpack.c.h.b16 %v15
  %v145 = vunpack.c.l.b16 %v16
  %v146 = vunpack.c.h.b16 %v16
  %v147 = vunpack.c.l.b16 %v17
  %v148 = vunpack.c.h.b16 %v17
  %v149 = vunpack.c.l.b16 %v18
  %v150 = vunpack.c.h.b16 %v18
  %v151 = vunpack.c.l.b16 %v19
  %v152 = vunpack.c.h.b16 %v19
  %v153 = vunpack.c.l.b16 %v20
  %v154 = vunpack.c.h.b16 %v20
  %v155 = vunpack.c.l.b16 %v21
  %v156 = vunpack.c.h.b16 %v21
  %v157 = vunpack.c.l.b16 %v22
  %v158 = vunpack.c.h.b16 %v22
  %v159 = vunpack.c.l.b16 %v23
  %v160 = vunpack.c.h.b16 %v23
  %v161 = vunpack.c.l.b16 %v24
  %v162 = vunpack.c.h.b16 %v24
  %v163 = vunpack.c.l.b16 %v25
  %v164 = vunpack.c.h.b16 %v25
  %v165 = vunpack.c.l.b16 %v26
  %v166 = vunpack.c.h.b16 %v26
  %v167 = vunpack.c.l.b16 %v27
  %v168 = vunpack.c.h.b16 %v27
  %v169 = vunpack.c.l.b16 %v28
  %v170 = vunpack.c.h.b16 %v28
  %v171 = vunpack.c.l.b16 %v29
  %v172 = vunpack.c.h.b16 %v29
  %v173 = vunpack.c.l.b16 %v30
  %v174 = vunpack.c.h.b16 %v30
  %v175 = vunpack.c.l.b16 %v31
  %v176 = vunpack.c.h.b16 %v31
  %v177 = vunpack.c.l.b16 %v32
  %v178 = vunpack.c.h.b16 %v32
  %v179 = vunpack.c.l.b16 %v33
  %v180 = vunpack.c.h.b16 %v33
  %v181 = vunpack.c.l.b16 %v34
  %v182 = vunpack.c.h.b16 %v34
  %v183 = vunpack.c.l.b16 %v35
  %v184 = vunpack.c.h.b16 %v35
  %v185 = vunpack.c.l.b16 %v36
  %v186 = vunpack.c.h.b16 %v36
  %v187 = vunpack.c.l.b16 %v37
  %v188 = vunpack.c.h.b16 %v37
  %v189 = vunpack.c.l.b16 %v38
  %v190 = vunpack.c.h.b16 %v38
  %v191 = vunpack.c.l.b16 %v39
  %v192 = vunpack.c.h.b16 %v39
  %v193 = vunpack.c.l.b16 %v40
  %v194 = vunpack.c.h.b16 %v40
  %v195 = vunpack.c.l.b16 %v41
  %v196 = vunpack.c.h.b16 %v41
  %v197 = vunpack.c.l.b16 %v42
  %v198 = vunpack.c.h.b16 %v42
  %v199 = vunpack.c.l.b16 %v43
  %v200 = vunpack.c.h.b16 %v43
  %v201 = vunpack.c.l.b16 %v44
  %v202 = vunpack.c.h.b16 %v44
  %v203 = vunpack.c.l.b16 %v45
  %v204 = vunpack.c.h.b16 %v45
  %v205 = vunpack.c.l.b16 %v46
  %v206 = vunpack.c.h.b16 %v46
  %v207 = vunpack.c.l.b16 %v47
  %v208 = vunpack.c.h.b16 %v47
  %v209 = vunpack.c.l.b16 %v48
  %v210 = vunpack.c.h.b16 %v48
  %v211 = vunpack.c.l.b16 %v49
  %v212 = vunpack.c.h.b16 %v49
  %v213 = vunpack.c.l.b16 %v50
  %v214 = vunpack.c.h.b16 %v50
  %v215 = vunpack.c.l.b16 %v51
  %v216 = vunpack.c.h.b16 %v51
  %v217 = vunpack.c.l.b16 %v52
  %v218 = vunpack.c.h.b16 %v52
  %v219 = vunpack.c.l.b16 %v53
  %v220 = vunpack.c.h.b16 %v53
  %v221 = vunpack.c.l.b16 %v54
  %v222 = vunpack.c.h.b16 %v54
  %v223 = vunpack.c.l.b16 %v55
  %v224 = vunpack.c.h.b16 %v55
  %v225 = vunpack.c.l.b16 %v56
  %v226 = vunpack.c.h.b16 %v56
  %v227 = vunpack.c.l.b16 %v57
  %v228 = vunpack.c.h.b16 %v57
  %v229 = vunpack.c.l.b16 %v58
  %v230 = vunpack.c.h.b16 %v58
  %v231 = vunpack.c.l.b16 %v59
  %v232 = vunpack.c.h.b16 %v59
  %v233 = vunpack.c.l.b16 %v60
  %v234 = vunpack.c.h.b16 %v60
  %v235 = vunpack.c.l.b16 %v61
  %v236 = vunpack.c.h.b16 %v61
  %v237 = vunpack.c.l.b16 %v62
  %v238 = vunpack.c.h.b16 %v62
  %v239 = vunpack.c.l.b16 %v63
  %v240 = vunpack.c.h.b16 %v63
  %v241 = vunpack.c.l.b16 %v64
  %v242 = vunpack.c.h.b16 %v64
  %v243 = vunpack.c.l.b16 %v65
  %v244 = vunpack.c.h.b16 %v65
  %v245 = vunpack.c.l.b16 %v66
  %v246 = vunpack.c.h.b16 %v66
  %v247 = vunpack.c.l.b16 %v67
  %v248 = vunpack.c.h.b16 %v67
  %v249 = vunpack.c.l.b16 %v68
  %v250 = vunpack.c.h.b16 %v68
  %v251 = vunpack.c.l.b16 %v69
  %v252 = vunpack.c.h.b16 %v69
  %v253 = vunpack.c.l.b16 %v70
  %v254 = vunpack.c.h.b16 %v70
  %v255 = vunpack.c.l.b16 %v71
  %v256 = vunpack.c.h.b16 %v71
  %v257 = vunpack.c.l.b16 %v72
  %v258 = vunpack.c.h.b16 %v72
  %v259 = vunpack.c.l.b16 %v73
  %v260 = vunpack.c.h.b16 %v73
  %v261 = vunpack.c.l.b16 %v74
  %v262 = vunpack.c.h.b16 %v74
  %v263 = vunpack.c.l.b16 %v75
  %v264 = vunpack.c.h.b16 %v75
  %v265 = vunpack.c.l.b16 %v76
  %v266 = vunpack.c.h.b16 %v76
  %v267 = vunpack.c.l.b16 %v77
  %v268 = vunpack.c.h.b16 %v77
  %v269 = vunpack.c.l.b16 %v78
  %v270 = vunpack.c.h.b16 %v78
  %v271 = vpack.c.b16 %v151, %v143
  %v272 = vpack.c.b16 %v152, %v144
  %v273 = vpack.c.b16 %v153, %v145
  %v274 = vpack.c.b16 %v154, %v146
  %v275 = vpack.c.b16 %v155, %v147
  %v276 = vpack.c.b16 %v156, %v148
  %v277 = vpack.c.b16 %v157, %v149
  %v278 = vpack.c.b16 %v158, %v150
  %v279 = vpack.c.b16 %v167, %v159
  %v280 = vpack.c.b16 %v168, %v160
  %v281 = vpack.c.b16 %v169, %v161
  %v282 = vpack.c.b16 %v170, %v162
  %v283 = vpack.c.b16 %v171, %v163
  %v284 = vpack.c.b16 %v172, %v164
  %v285 = vpack.c.b16 %v173, %v165
  %v286 = vpack.c.b16 %v174, %v166
  %v287 = vpack.c.b16 %v183, %v175
  %v288 = vpack.c.b16 %v184, %v176
  %v289 = vpack.c.b16 %v185, %v177
  %v290 = vpack.c.b16 %v186, %v178
  %v291 = vpack.c.b16 %v187, %v179
  %v292 = vpack.c.b16 %v188, %v180
  %v293 = vpack.c.b16 %v189, %v181
  %v294 = vpack.c.b16 %v190, %v182
  %v295 = vpack.c.b16 %v199, %v191
  %v296 = vpack.c.b16 %v200, %v192
  %v297 = vpack.c.b16 %v201, %v193
  %v298 = vpack.c.b16 %v202, %v194
  %v299 = vpack.c.b16 %v203, %v195
  %v300 = vpack.c.b16 %v204, %v196
  %v301 = vpack.c.b16 %v205, %v197
  %v302 = vpack.c.b16 %v206, %v198
  %v303 = vpack.c.b16 %v215, %v207
  %v304 = vpack.c.b16 %v216, %v208
  %v305 = vpack.c.b16 %v217, %v209
  %v306 = vpack.c.b16 %v218, %v210
  %v307 = vpack.c.b16 %v219, %v211
  %v308 = vpack.c.b16 %v220, %v212
  %v309 = vpack.c.b16 %v221, %v213
  %v310 = vpack.c.b16 %v222, %v214
  %v311 = vpack.c.b16 %v231, %v223
  %v312 = vpack.c.b16 %v232, %v224
  %v313 = vpack.c.b16 %v233, %v225
  %v314 = vpack.c.b16 %v234, %v226
  %v315 = vpack.c.b16 %v235, %v227
  %v316 = vpack.c.b16 %v236, %v228
  %v317 = vpack.c.b16 %v237, %v229
  %v318 = vpack.c.b16 %v238, %v230
  %v319 = vpack.c.b16 %v247, %v239
  %v320 = vpack.c.b16 %v248, %v240
  %v321 = vpack.c.b16 %v249, %v241
  %v322 = vpack.c.b16 %v250, %v242
  %v323 = vpack.c.b16 %v251, %v243
  %v324 = vpack.c.b16 %v252, %v244
  %v325 = vpack.c.b16 %v253, %v245
  %v326 = vpack.c.b16 %v254, %v246
  %v327 = vpack.c.b16 %v263, %v255
  %v328 = vpack.c.b16 %v264, %v256
  %v329 = vpack.c.b16 %v265, %v257
  %v330 = vpack.c.b16 %v266, %v258
  %v331 = vpack.c.b16 %v267, %v259
  %v332 = vpack.c.b16 %v268, %v260
  %v333 = vpack.c.b16 %v269, %v261
  %v334 = vpack.c.b16 %v270, %v262
  %399 = vmatprep.subr.bf16.mxu0 %v328
  %400 = vmatpush1.bf16.msra.mxu0 %v327
  %401 = vmatprep.subr.bf16.mxu0 %v320
  %402 = vmatpush1.bf16.msra.mxu0 %v319
  %403 = vmatprep.subr.bf16.mxu0 %v312
  %404 = vmatpush1.bf16.msra.mxu0 %v311
  %405 = vmatprep.subr.bf16.mxu0 %v304
  %406 = vmatpush1.bf16.msra.mxu0 %v303
  %407 = vmatprep.subr.bf16.mxu0 %v296
  %408 = vmatpush1.bf16.msra.mxu0 %v295
  %409 = vmatprep.subr.bf16.mxu0 %v288
  %410 = vmatpush1.bf16.msra.mxu0 %v287
  %411 = vmatprep.subr.bf16.mxu0 %v280
  %412 = vmatpush1.bf16.msra.mxu0 %v279
  %413 = vmatprep.subr.bf16.mxu0 %v272
  %414 = vmatpush1.bf16.msra.mxu0 %v271
  %415 = vmatprep.subr.bf16.mxu0 0
  %416 = vmatpush2.bf16.msra.mxu0 0
  %417 = vmatprep.subr.bf16.mxu0 0
  %418 = vmatpush2.bf16.msra.mxu0 0
  %419 = vmatprep.subr.bf16.mxu0 0
  %420 = vmatpush2.bf16.msra.mxu0 0
  %421 = vmatprep.subr.bf16.mxu0 0
  %422 = vmatpush2.bf16.msra.mxu0 0
  %423 = vmatprep.subr.bf16.mxu0 0
  %424 = vmatpush2.bf16.msra.mxu0 0
  %425 = vmatprep.subr.bf16.mxu0 0
  %426 = vmatpush2.bf16.msra.mxu0 0
  %427 = vmatprep.subr.bf16.mxu0 0
  %428 = vmatpush2.bf16.msra.mxu0 0
  %429 = vmatprep.subr.bf16.mxu0 0
  %430 = vmatpush2.bf16.msra.mxu0 0
  %431 = vmatprep.mubr.bf16.mxu0 0
  %432 = vmatmul.mubr.bf16.gmra.mxu0 %v14
  %v433 = vpop.f32.mrf.mxu0
  %v434 = vadd.f32 0.0, %v433
  %v435 = vpop.f32.mrf.mxu0
  %v436 = vadd.f32 0.0, %v435
  %v437 = vpop.f32.mrf.mxu0
  %v438 = vpop.f32.mrf.mxu0
  %439 = vdwg.mxu0
  %440 = vmatprep.subr.bf16.mxu0 %v330
  %441 = vmatpush1.bf16.msra.mxu0 %v329
  %442 = vmatprep.subr.bf16.mxu0 %v322
  %443 = vmatpush1.bf16.msra.mxu0 %v321
  %444 = vmatprep.subr.bf16.mxu0 %v314
  %445 = vmatpush1.bf16.msra.mxu0 %v313
  %446 = vmatprep.subr.bf16.mxu0 %v306
  %447 = vmatpush1.bf16.msra.mxu0 %v305
  %448 = vmatprep.subr.bf16.mxu0 %v298
  %449 = vmatpush1.bf16.msra.mxu0 %v297
  %450 = vmatprep.subr.bf16.mxu0 %v290
  %451 = vmatpush1.bf16.msra.mxu0 %v289
  %452 = vmatprep.subr.bf16.mxu0 %v282
  %453 = vmatpush1.bf16.msra.mxu0 %v281
  %454 = vmatprep.subr.bf16.mxu0 %v274
  %455 = vmatpush1.bf16.msra.mxu0 %v273
  %456 = vmatprep.subr.bf16.mxu0 0
  %457 = vmatpush2.bf16.msra.mxu0 0
  %458 = vmatprep.subr.bf16.mxu0 0
  %459 = vmatpush2.bf16.msra.mxu0 0
  %460 = vmatprep.subr.bf16.mxu0 0
  %461 = vmatpush2.bf16.msra.mxu0 0
  %462 = vmatprep.subr.bf16.mxu0 0
  %463 = vmatpush2.bf16.msra.mxu0 0
  %464 = vmatprep.subr.bf16.mxu0 0
  %465 = vmatpush2.bf16.msra.mxu0 0
  %466 = vmatprep.subr.bf16.mxu0 0
  %467 = vmatpush2.bf16.msra.mxu0 0
  %468 = vmatprep.subr.bf16.mxu0 0
  %469 = vmatpush2.bf16.msra.mxu0 0
  %470 = vmatprep.subr.bf16.mxu0 0
  %471 = vmatpush2.bf16.msra.mxu0 0
  %472 = vmatprep.mubr.bf16.mxu0 0
  %473 = vmatmul.mubr.bf16.gmra.mxu0 %v14
  %v474 = vpop.f32.mrf.mxu0
  %v475 = vadd.f32 0.0, %v474
  %v476 = vpop.f32.mrf.mxu0
  %v477 = vadd.f32 0.0, %v476
  %v478 = vpop.f32.mrf.mxu0
  %v479 = vpop.f32.mrf.mxu0
  %480 = vdwg.mxu0
  %481 = vmatprep.subr.bf16.mxu0 %v332
  %482 = vmatpush1.bf16.msra.mxu0 %v331
  %483 = vmatprep.subr.bf16.mxu0 %v324
  %484 = vmatpush1.bf16.msra.mxu0 %v323
  %485 = vmatprep.subr.bf16.mxu0 %v316
  %486 = vmatpush1.bf16.msra.mxu0 %v315
  %487 = vmatprep.subr.bf16.mxu0 %v308
  %488 = vmatpush1.bf16.msra.mxu0 %v307
  %489 = vmatprep.subr.bf16.mxu0 %v300
  %490 = vmatpush1.bf16.msra.mxu0 %v299
  %491 = vmatprep.subr.bf16.mxu0 %v292
  %492 = vmatpush1.bf16.msra.mxu0 %v291
  %493 = vmatprep.subr.bf16.mxu0 %v284
  %494 = vmatpush1.bf16.msra.mxu0 %v283
  %495 = vmatprep.subr.bf16.mxu0 %v276
  %496 = vmatpush1.bf16.msra.mxu0 %v275
  %497 = vmatprep.subr.bf16.mxu0 0
  %498 = vmatpush2.bf16.msra.mxu0 0
  %499 = vmatprep.subr.bf16.mxu0 0
  %500 = vmatpush2.bf16.msra.mxu0 0
  %501 = vmatprep.subr.bf16.mxu0 0
  %502 = vmatpush2.bf16.msra.mxu0 0
  %503 = vmatprep.subr.bf16.mxu0 0
  %504 = vmatpush2.bf16.msra.mxu0 0
  %505 = vmatprep.subr.bf16.mxu0 0
  %506 = vmatpush2.bf16.msra.mxu0 0
  %507 = vmatprep.subr.bf16.mxu0 0
  %508 = vmatpush2.bf16.msra.mxu0 0
  %509 = vmatprep.subr.bf16.mxu0 0
  %510 = vmatpush2.bf16.msra.mxu0 0
  %511 = vmatprep.subr.bf16.mxu0 0
  %512 = vmatpush2.bf16.msra.mxu0 0
  %513 = vmatprep.mubr.bf16.mxu0 0
  %514 = vmatmul.mubr.bf16.gmra.mxu0 %v14
  %v515 = vpop.f32.mrf.mxu0
  %v516 = vadd.f32 0.0, %v515
  %v517 = vpop.f32.mrf.mxu0
  %v518 = vadd.f32 0.0, %v517
  %v519 = vpop.f32.mrf.mxu0
  %v520 = vpop.f32.mrf.mxu0
  %521 = vdwg.mxu0
  %522 = vmatprep.subr.bf16.mxu0 %v334
  %523 = vmatpush1.bf16.msra.mxu0 %v333
  %524 = vmatprep.subr.bf16.mxu0 %v326
  %525 = vmatpush1.bf16.msra.mxu0 %v325
  %526 = vmatprep.subr.bf16.mxu0 %v318
  %527 = vmatpush1.bf16.msra.mxu0 %v317
  %528 = vmatprep.subr.bf16.mxu0 %v310
  %529 = vmatpush1.bf16.msra.mxu0 %v309
  %530 = vmatprep.subr.bf16.mxu0 %v302
  %531 = vmatpush1.bf16.msra.mxu0 %v301
  %532 = vmatprep.subr.bf16.mxu0 %v294
  %533 = vmatpush1.bf16.msra.mxu0 %v293
  %534 = vmatprep.subr.bf16.mxu0 %v286
  %535 = vmatpush1.bf16.msra.mxu0 %v285
  %536 = vmatprep.subr.bf16.mxu0 %v278
  %537 = vmatpush1.bf16.msra.mxu0 %v277
  %538 = vmatprep.subr.bf16.mxu0 0
  %539 = vmatpush2.bf16.msra.mxu0 0
  %540 = vmatprep.subr.bf16.mxu0 0
  %541 = vmatpush2.bf16.msra.mxu0 0
  %542 = vmatprep.subr.bf16.mxu0 0
  %543 = vmatpush2.bf16.msra.mxu0 0
  %544 = vmatprep.subr.bf16.mxu0 0
  %545 = vmatpush2.bf16.msra.mxu0 0
  %546 = vmatprep.subr.bf16.mxu0 0
  %547 = vmatpush2.bf16.msra.mxu0 0
  %548 = vmatprep.subr.bf16.mxu0 0
  %549 = vmatpush2.bf16.msra.mxu0 0
  %550 = vmatprep.subr.bf16.mxu0 0
  %551 = vmatpush2.bf16.msra.mxu0 0
  %552 = vmatprep.subr.bf16.mxu0 0
  %553 = vmatpush2.bf16.msra.mxu0 0
  %554 = vmatprep.mubr.bf16.mxu0 0
  %555 = vmatmul.mubr.bf16.gmra.mxu0 %v14
  %v556 = vpop.f32.mrf.mxu0
  %v557 = vadd.f32 0.0, %v556
  %v558 = vpop.f32.mrf.mxu0
  %v559 = vadd.f32 0.0, %v558
  %v560 = vpop.f32.mrf.mxu0
  %v561 = vpop.f32.mrf.mxu0
  %562 = vdwg.mxu0
  %v563 = vpack.c.bf16 %v434, %v434
  %v564 = vpack.c.bf16 %v436, %v436
  %v565 = vpack.c.bf16 %v475, %v475
  %v566 = vpack.c.bf16 %v477, %v477
  %v567 = vpack.c.bf16 %v516, %v516
  %v568 = vpack.c.bf16 %v518, %v518
  %v569 = vpack.c.bf16 %v557, %v557
  %v570 = vpack.c.bf16 %v559, %v559
  %v579 = vcombine.low %v563, %v564
  %v580 = vcombine.low %v565, %v566
  %v581 = vcombine.low %v567, %v568
  %v582 = vcombine.low %v569, %v570
  %v584 = vunpack.c.l.s4 1966171168
  %v585 = vunpack.c.0.s8 %v584
  %v586 = vlaneseq
  %v587 = vshrl.u32 %v586, 7
  %v588 = vsub.s32 %v585, %v587
  %v589 = vrot.slane %v579, %v588
  %v591 = vunpack.c.l.s4 1966171168
  %v592 = vunpack.c.0.s8 %v591
  %v593 = vlaneseq
  %v594 = vshrl.u32 %v593, 7
  %v595 = vsub.s32 %v592, %v594
  %v596 = vrot.slane %v580, %v595
  %v598 = vunpack.c.l.s4 1966171168
  %v599 = vunpack.c.0.s8 %v598
  %v600 = vlaneseq
  %v601 = vshrl.u32 %v600, 7
  %v602 = vsub.s32 %v599, %v601
  %v603 = vrot.slane %v581, %v602
  %v605 = vunpack.c.l.s4 1966171168
  %v606 = vunpack.c.0.s8 %v605
  %v607 = vlaneseq
  %v608 = vshrl.u32 %v607, 7
  %v609 = vsub.s32 %v606, %v608
  %v610 = vrot.slane %v582, %v609
  %v611 = vcombine.low %v589, %v596
  %v612 = vcombine.low %v603, %v610
  %v614 = vunpack.c.l.s4 1966171168
  %v615 = vunpack.c.0.s8 %v614
  %v616 = vlaneseq
  %v617 = vshrl.u32 %v616, 7
  %v618 = vsub.s32 %v615, %v617
  %v619 = vrot.slane %v611, %v618
  %v621 = vunpack.c.l.s4 1966171168
  %v622 = vunpack.c.0.s8 %v621
  %v623 = vlaneseq
  %v624 = vshrl.u32 %v623, 7
  %v625 = vsub.s32 %v622, %v624
  %v626 = vrot.slane %v612, %v625
  %v627 = vcombine.low %v619, %v626
  %629 = vst [vmem:[%s2] sm:$0xff] %v627
  %vm630 = vcmask 1041408
  %v631 = vsel %vm630, %v434, 0.0
  %v632 = vrot.slane %v631, 4
  %v633 = vadd.f32 %v631, %v632
  %v634 = vrot.slane %v633, 2
  %v635 = vadd.f32 %v633, %v634
  %v636 = vrot.slane %v635, 1
  %v637 = vadd.f32 %v635, %v636
  %v638 = vsel %vm630, %v436, 0.0
  %v639 = vrot.slane %v638, 4
  %v640 = vadd.f32 %v638, %v639
  %v641 = vrot.slane %v640, 2
  %v642 = vadd.f32 %v640, %v641
  %v643 = vrot.slane %v642, 1
  %v644 = vadd.f32 %v642, %v643
  %v645 = vsel %vm630, %v475, 0.0
  %v646 = vrot.slane %v645, 4
  %v647 = vadd.f32 %v645, %v646
  %v648 = vrot.slane %v647, 2
  %v649 = vadd.f32 %v647, %v648
  %v650 = vrot.slane %v649, 1
  %v651 = vadd.f32 %v649, %v650
  %v652 = vsel %vm630, %v477, 0.0
  %v653 = vrot.slane %v652, 4
  %v654 = vadd.f32 %v652, %v653
  %v655 = vrot.slane %v654, 2
  %v656 = vadd.f32 %v654, %v655
  %v657 = vrot.slane %v656, 1
  %v658 = vadd.f32 %v656, %v657
  %v659 = vsel %vm630, %v516, 0.0
  %v660 = vrot.slane %v659, 4
  %v661 = vadd.f32 %v659, %v660
  %v662 = vrot.slane %v661, 2
  %v663 = vadd.f32 %v661, %v662
  %v664 = vrot.slane %v663, 1
  %v665 = vadd.f32 %v663, %v664
  %v666 = vsel %vm630, %v518, 0.0
  %v667 = vrot.slane %v666, 4
  %v668 = vadd.f32 %v666, %v667
  %v669 = vrot.slane %v668, 2
  %v670 = vadd.f32 %v668, %v669
  %v671 = vrot.slane %v670, 1
  %v672 = vadd.f32 %v670, %v671
  %v673 = vsel %vm630, %v557, 0.0
  %v674 = vrot.slane %v673, 4
  %v675 = vadd.f32 %v673, %v674
  %v676 = vrot.slane %v675, 2
  %v677 = vadd.f32 %v675, %v676
  %v678 = vrot.slane %v677, 1
  %v679 = vadd.f32 %v677, %v678
  %v680 = vsel %vm630, %v559, 0.0
  %v681 = vrot.slane %v680, 4
  %v682 = vadd.f32 %v680, %v681
  %v683 = vrot.slane %v682, 2
  %v684 = vadd.f32 %v682, %v683
  %v685 = vrot.slane %v684, 1
  %v686 = vadd.f32 %v684, %v685
  %v687 = vmul.f32 %v434, %v434
  %v688 = vmul.f32 %v436, %v436
  %v689 = vmul.f32 %v475, %v475
  %v690 = vmul.f32 %v477, %v477
  %v691 = vmul.f32 %v516, %v516
  %v692 = vmul.f32 %v518, %v518
  %v693 = vmul.f32 %v557, %v557
  %v694 = vmul.f32 %v559, %v559
  %v695 = vsel %vm630, %v687, 0.0
  %v696 = vrot.slane %v695, 4
  %v697 = vadd.f32 %v695, %v696
  %v698 = vrot.slane %v697, 2
  %v699 = vadd.f32 %v697, %v698
  %v700 = vrot.slane %v699, 1
  %v701 = vadd.f32 %v699, %v700
  %v702 = vsel %vm630, %v688, 0.0
  %v703 = vrot.slane %v702, 4
  %v704 = vadd.f32 %v702, %v703
  %v705 = vrot.slane %v704, 2
  %v706 = vadd.f32 %v704, %v705
  %v707 = vrot.slane %v706, 1
  %v708 = vadd.f32 %v706, %v707
  %v709 = vsel %vm630, %v689, 0.0
  %v710 = vrot.slane %v709, 4
  %v711 = vadd.f32 %v709, %v710
  %v712 = vrot.slane %v711, 2
  %v713 = vadd.f32 %v711, %v712
  %v714 = vrot.slane %v713, 1
  %v715 = vadd.f32 %v713, %v714
  %v716 = vsel %vm630, %v690, 0.0
  %v717 = vrot.slane %v716, 4
  %v718 = vadd.f32 %v716, %v717
  %v719 = vrot.slane %v718, 2
  %v720 = vadd.f32 %v718, %v719
  %v721 = vrot.slane %v720, 1
  %v722 = vadd.f32 %v720, %v721
  %v723 = vsel %vm630, %v691, 0.0
  %v724 = vrot.slane %v723, 4
  %v725 = vadd.f32 %v723, %v724
  %v726 = vrot.slane %v725, 2
  %v727 = vadd.f32 %v725, %v726
  %v728 = vrot.slane %v727, 1
  %v729 = vadd.f32 %v727, %v728
  %v730 = vsel %vm630, %v692, 0.0
  %v731 = vrot.slane %v730, 4
  %v732 = vadd.f32 %v730, %v731
  %v733 = vrot.slane %v732, 2
  %v734 = vadd.f32 %v732, %v733
  %v735 = vrot.slane %v734, 1
  %v736 = vadd.f32 %v734, %v735
  %v737 = vsel %vm630, %v693, 0.0
  %v738 = vrot.slane %v737, 4
  %v739 = vadd.f32 %v737, %v738
  %v740 = vrot.slane %v739, 2
  %v741 = vadd.f32 %v739, %v740
  %v742 = vrot.slane %v741, 1
  %v743 = vadd.f32 %v741, %v742
  %v744 = vsel %vm630, %v694, 0.0
  %v745 = vrot.slane %v744, 4
  %v746 = vadd.f32 %v744, %v745
  %v747 = vrot.slane %v746, 2
  %v748 = vadd.f32 %v746, %v747
  %v749 = vrot.slane %v748, 1
  %v750 = vadd.f32 %v748, %v749
  %vm751 = vcmask 1040384
  %v752 = vsel %vm751, %v637, %v701
  %v753 = vsel %vm751, %v644, %v708
  %v754 = vsel %vm751, %v651, %v715
  %v755 = vsel %vm751, %v658, %v722
  %v756 = vsel %vm751, %v665, %v729
  %v757 = vsel %vm751, %v672, %v736
  %v758 = vsel %vm751, %v679, %v743
  %v759 = vsel %vm751, %v686, %v750
  %v768 = vcombine.low %v752, %v753
  %v769 = vcombine.low %v754, %v755
  %v771 = vunpack.c.l.s4 1983009808
  %v772 = vunpack.c.0.s8 %v771
  %v773 = vlaneseq
  %v774 = vshrl.u32 %v773, 7
  %v775 = vsub.s32 %v772, %v774
  %v776 = vrot.slane %v768, %v775
  %v778 = vunpack.c.l.s4 1983009808
  %v779 = vunpack.c.0.s8 %v778
  %v780 = vlaneseq
  %v781 = vshrl.u32 %v780, 7
  %v782 = vsub.s32 %v779, %v781
  %v783 = vrot.slane %v769, %v782
  %v784 = vcombine.low %v776, %v783
  %v785 = vcombine.low %v756, %v757
  %v786 = vcombine.low %v758, %v759
  %v788 = vunpack.c.l.s4 1983009808
  %v789 = vunpack.c.0.s8 %v788
  %v790 = vlaneseq
  %v791 = vshrl.u32 %v790, 7
  %v792 = vsub.s32 %v789, %v791
  %v793 = vrot.slane %v785, %v792
  %v795 = vunpack.c.l.s4 1983009808
  %v796 = vunpack.c.0.s8 %v795
  %v797 = vlaneseq
  %v798 = vshrl.u32 %v797, 7
  %v799 = vsub.s32 %v796, %v798
  %v800 = vrot.slane %v786, %v799
  %v801 = vcombine.low %v793, %v800
  %804 = vst [vmem:[%s3] sm:$0xff] %v784
  %805 = vst [vmem:[%s3 + $0x8] sm:$0xff] %v801
  // Predicated region
  $region10: #{generator_forward.5} parent=0 // pred_check
    _
  $region11: #{generator_forward.5} parent=0 // pred_check_branch
    %807 = sbr.rel (0) target = $region13
  $region12: #{generator_forward.5} parent=0 // pred_region
    _
  $region13: #{generator_forward.5} parent=0 // pred_fallthru
    _
  // Predicated region
  $region14: #{generator_forward.5} parent=0 // pred_check
    _
  $region15: #{generator_forward.5} parent=0 // pred_check_branch
    %809 = sbr.rel (0) target = $region17
  $region16: #{generator_forward.5} parent=0 // pred_region
    _
  $region17: #{generator_forward.5} parent=0 // pred_fallthru
    _
  // Predicated region
  $region18: #{generator_forward.5} parent=0 // pred_check
    _
  $region19: #{generator_forward.5} parent=0 // pred_check_branch
    %811 = sbr.rel (0) target = $region21
  $region20: #{generator_forward.5} parent=0 // pred_region
    _
  $region21: #{generator_forward.5} parent=0 // pred_fallthru
    _
  // Predicated region
  $region22: #{generator_forward.5} parent=0 // pred_check
    _
  $region23: #{generator_forward.5} parent=0 // pred_check_branch
    %813 = sbr.rel (0) target = $region25
  $region24: #{generator_forward.5} parent=0 // pred_region
    _
  $region25: #{generator_forward.5} parent=0 // pred_fallthru
    _

// kernel: generator_forward.6
$region0: #{generator_forward.6}
  #allocation0 [shape = 'u32[]', space=smem, size = 0x4, offset = 0x4, fixed_abs, tag = 'smem constant byte address 0x4 - core index']
  #allocation1 [shape = 'u32[144,128]{1,0:T(1,128)}', space=vmem, size = 0x12000, scoped, tag = 'internal scratch']
  %s0 = inlined_call_operand.vmem [shape: bf16[32,640], index: 0, kind: input, shape index: {}]
  %s1 = inlined_call_operand.vmem [shape: bf16[640,128], index: 1, kind: input, shape index: {}]
  %s2 = inlined_call_operand.vmem [shape: bf16[32,128], index: 2, kind: output, shape index: {0}]
  %s3 = inlined_call_operand.vmem [shape: f32[1,2,128], index: 3, kind: output, shape index: {1}]
  %4 = xla_tuple %s2, %s3
  %s5 = sld [smem:[#allocation0]]
  $region26: #{generator_forward.6} parent=0
    _
  %s7 = ssub.s32 1, %s5
  %s8 = scalar_select 0, %s7, %s5
  // Predicated region
  $region2: #{generator_forward.6} parent=0 // pred_check
    _
  $region3: #{generator_forward.6} parent=0 // pred_check_branch
    %10 = sbr.rel (0) target = $region5
  $region4: #{generator_forward.6} parent=0 // pred_region
    _
  $region5: #{generator_forward.6} parent=0 // pred_fallthru
    _
  // Predicated region
  $region6: #{generator_forward.6} parent=0 // pred_check
    _
  $region7: #{generator_forward.6} parent=0 // pred_check_branch
    %12 = sbr.rel (0) target = $region9
  $region8: #{generator_forward.6} parent=0 // pred_region
    _
  $region9: #{generator_forward.6} parent=0 // pred_fallthru
    _
  %v14 = vld [vmem:[%s0] sm:$0xff]
  %v15 = vld [vmem:[%s0 + $0x8] sm:$0xff]
  %v16 = vld [vmem:[%s0 + $0x10] sm:$0xf]
  %v17 = vld [vmem:[%s0 + $0x14] sm:$0xff]
  %v18 = vld [vmem:[%s0 + $0x1c] sm:$0xff]
  %v19 = vld [vmem:[%s0 + $0x24] sm:$0xf]
  %v20 = vld [vmem:[%s0 + $0x28] sm:$0xff]
  %v21 = vld [vmem:[%s0 + $0x30] sm:$0xff]
  %v22 = vld [vmem:[%s0 + $0x38] sm:$0xf]
  %v23 = vld [vmem:[%s0 + $0x3c] sm:$0xff]
  %v24 = vld [vmem:[%s0 + $0x44] sm:$0xff]
  %v25 = vld [vmem:[%s0 + $0x4c] sm:$0xf]
  %v26 = vld [vmem:[%s1] sm:$0xf]
  %v27 = vld [vmem:[%s1 + $0x4] sm:$0xf]
  %v28 = vld [vmem:[%s1 + $0x8] sm:$0xf]
  %v29 = vld [vmem:[%s1 + $0xc] sm:$0xf]
  %v30 = vld [vmem:[%s1 + $0x10] sm:$0xf]
  %v31 = vld [vmem:[%s1 + $0x14] sm:$0xf]
  %v32 = vld [vmem:[%s1 + $0x18] sm:$0xf]
  %v33 = vld [vmem:[%s1 + $0x1c] sm:$0xf]
  %v34 = vld [vmem:[%s1 + $0x20] sm:$0xf]
  %v35 = vld [vmem:[%s1 + $0x24] sm:$0xf]
  %v36 = vld [vmem:[%s1 + $0x28] sm:$0xf]
  %v37 = vld [vmem:[%s1 + $0x2c] sm:$0xf]
  %v38 = vld [vmem:[%s1 + $0x30] sm:$0xf]
  %v39 = vld [vmem:[%s1 + $0x34] sm:$0xf]
  %v40 = vld [vmem:[%s1 + $0x38] sm:$0xf]
  %v41 = vld [vmem:[%s1 + $0x3c] sm:$0xf]
  %v42 = vld [vmem:[%s1 + $0x40] sm:$0xf]
  %v43 = vld [vmem:[%s1 + $0x44] sm:$0xf]
  %v44 = vld [vmem:[%s1 + $0x48] sm:$0xf]
  %v45 = vld [vmem:[%s1 + $0x4c] sm:$0xf]
  %v46 = vld [vmem:[%s1 + $0x50] sm:$0xf]
  %v47 = vld [vmem:[%s1 + $0x54] sm:$0xf]
  %v48 = vld [vmem:[%s1 + $0x58] sm:$0xf]
  %v49 = vld [vmem:[%s1 + $0x5c] sm:$0xf]
  %v50 = vld [vmem:[%s1 + $0x60] sm:$0xf]
  %v51 = vld [vmem:[%s1 + $0x64] sm:$0xf]
  %v52 = vld [vmem:[%s1 + $0x68] sm:$0xf]
  %v53 = vld [vmem:[%s1 + $0x6c] sm:$0xf]
  %v54 = vld [vmem:[%s1 + $0x70] sm:$0xf]
  %v55 = vld [vmem:[%s1 + $0x74] sm:$0xf]
  %v56 = vld [vmem:[%s1 + $0x78] sm:$0xf]
  %v57 = vld [vmem:[%s1 + $0x7c] sm:$0xf]
  %v58 = vld [vmem:[%s1 + $0x80] sm:$0xf]
  %v59 = vld [vmem:[%s1 + $0x84] sm:$0xf]
  %v60 = vld [vmem:[%s1 + $0x88] sm:$0xf]
  %v61 = vld [vmem:[%s1 + $0x8c] sm:$0xf]
  %v62 = vld [vmem:[%s1 + $0x90] sm:$0xf]
  %v63 = vld [vmem:[%s1 + $0x94] sm:$0xf]
  %v64 = vld [vmem:[%s1 + $0x98] sm:$0xf]
  %v65 = vld [vmem:[%s1 + $0x9c] sm:$0xf]
  %v66 = vld [vmem:[%s1 + $0xa0] sm:$0xf]
  %v67 = vld [vmem:[%s1 + $0xa4] sm:$0xf]
  %v68 = vld [vmem:[%s1 + $0xa8] sm:$0xf]
  %v69 = vld [vmem:[%s1 + $0xac] sm:$0xf]
  %v70 = vld [vmem:[%s1 + $0xb0] sm:$0xf]
  %v71 = vld [vmem:[%s1 + $0xb4] sm:$0xf]
  %v72 = vld [vmem:[%s1 + $0xb8] sm:$0xf]
  %v73 = vld [vmem:[%s1 + $0xbc] sm:$0xf]
  %v74 = vld [vmem:[%s1 + $0xc0] sm:$0xf]
  %v75 = vld [vmem:[%s1 + $0xc4] sm:$0xf]
  %v76 = vld [vmem:[%s1 + $0xc8] sm:$0xf]
  %v77 = vld [vmem:[%s1 + $0xcc] sm:$0xf]
  %v78 = vld [vmem:[%s1 + $0xd0] sm:$0xf]
  %v79 = vld [vmem:[%s1 + $0xd4] sm:$0xf]
  %v80 = vld [vmem:[%s1 + $0xd8] sm:$0xf]
  %v81 = vld [vmem:[%s1 + $0xdc] sm:$0xf]
  %v82 = vld [vmem:[%s1 + $0xe0] sm:$0xf]
  %v83 = vld [vmem:[%s1 + $0xe4] sm:$0xf]
  %v84 = vld [vmem:[%s1 + $0xe8] sm:$0xf]
  %v85 = vld [vmem:[%s1 + $0xec] sm:$0xf]
  %v86 = vld [vmem:[%s1 + $0xf0] sm:$0xf]
  %v87 = vld [vmem:[%s1 + $0xf4] sm:$0xf]
  %v88 = vld [vmem:[%s1 + $0xf8] sm:$0xf]
  %v89 = vld [vmem:[%s1 + $0xfc] sm:$0xf]
  %v90 = vld [vmem:[%s1 + $0x100] sm:$0xf]
  %v91 = vld [vmem:[%s1 + $0x104] sm:$0xf]
  %v92 = vld [vmem:[%s1 + $0x108] sm:$0xf]
  %v93 = vld [vmem:[%s1 + $0x10c] sm:$0xf]
  %v94 = vld [vmem:[%s1 + $0x110] sm:$0xf]
  %v95 = vld [vmem:[%s1 + $0x114] sm:$0xf]
  %v96 = vld [vmem:[%s1 + $0x118] sm:$0xf]
  %v97 = vld [vmem:[%s1 + $0x11c] sm:$0xf]
  %v98 = vld [vmem:[%s1 + $0x120] sm:$0xf]
  %v99 = vld [vmem:[%s1 + $0x124] sm:$0xf]
  %v100 = vld [vmem:[%s1 + $0x128] sm:$0xf]
  %v101 = vld [vmem:[%s1 + $0x12c] sm:$0xf]
  %v102 = vld [vmem:[%s1 + $0x130] sm:$0xf]
  %v103 = vld [vmem:[%s1 + $0x134] sm:$0xf]
  %v104 = vld [vmem:[%s1 + $0x138] sm:$0xf]
  %v105 = vld [vmem:[%s1 + $0x13c] sm:$0xf]
  %v118 = vunpack.c.l.b16 %v14
  %v119 = vunpack.c.h.b16 %v14
  %v120 = vunpack.c.l.b16 %v15
  %v121 = vunpack.c.h.b16 %v15
  %v122 = vunpack.c.l.b16 %v16
  %v123 = vunpack.c.l.b16 %v17
  %v124 = vunpack.c.h.b16 %v17
  %v125 = vunpack.c.l.b16 %v18
  %v126 = vunpack.c.h.b16 %v18
  %v127 = vunpack.c.l.b16 %v19
  %v128 = vunpack.c.l.b16 %v20
  %v129 = vunpack.c.h.b16 %v20
  %v130 = vunpack.c.l.b16 %v21
  %v131 = vunpack.c.h.b16 %v21
  %v132 = vunpack.c.l.b16 %v22
  %v133 = vunpack.c.l.b16 %v23
  %v134 = vunpack.c.h.b16 %v23
  %v135 = vunpack.c.l.b16 %v24
  %v136 = vunpack.c.h.b16 %v24
  %v137 = vunpack.c.l.b16 %v25
  %v138 = vpack.c.b16 %v123, %v118
  %v139 = vpack.c.b16 %v124, %v119
  %v140 = vpack.c.b16 %v125, %v120
  %v141 = vpack.c.b16 %v126, %v121
  %v142 = vpack.c.b16 %v127, %v122
  %v143 = vpack.c.b16 %v133, %v128
  %v144 = vpack.c.b16 %v134, %v129
  %v145 = vpack.c.b16 %v135, %v130
  %v146 = vpack.c.b16 %v136, %v131
  %v147 = vpack.c.b16 %v137, %v132
  %v238 = vunpack.c.l.b16 %v26
  %v239 = vunpack.c.l.b16 %v27
  %v240 = vunpack.c.l.b16 %v28
  %v241 = vunpack.c.l.b16 %v29
  %v242 = vunpack.c.l.b16 %v30
  %v243 = vunpack.c.l.b16 %v31
  %v244 = vunpack.c.l.b16 %v32
  %v245 = vunpack.c.l.b16 %v33
  %v246 = vunpack.c.l.b16 %v34
  %v247 = vunpack.c.l.b16 %v35
  %v248 = vunpack.c.l.b16 %v36
  %v249 = vunpack.c.l.b16 %v37
  %v250 = vunpack.c.l.b16 %v38
  %v251 = vunpack.c.l.b16 %v39
  %v252 = vunpack.c.l.b16 %v40
  %v253 = vunpack.c.l.b16 %v41
  %v254 = vunpack.c.l.b16 %v42
  %v255 = vunpack.c.l.b16 %v43
  %v256 = vunpack.c.l.b16 %v44
  %v257 = vunpack.c.l.b16 %v45
  %v258 = vunpack.c.l.b16 %v46
  %v259 = vunpack.c.l.b16 %v47
  %v260 = vunpack.c.l.b16 %v48
  %v261 = vunpack.c.l.b16 %v49
  %v262 = vunpack.c.l.b16 %v50
  %v263 = vunpack.c.l.b16 %v51
  %v264 = vunpack.c.l.b16 %v52
  %v265 = vunpack.c.l.b16 %v53
  %v266 = vunpack.c.l.b16 %v54
  %v267 = vunpack.c.l.b16 %v55
  %v268 = vunpack.c.l.b16 %v56
  %v269 = vunpack.c.l.b16 %v57
  %v270 = vunpack.c.l.b16 %v58
  %v271 = vunpack.c.l.b16 %v59
  %v272 = vunpack.c.l.b16 %v60
  %v273 = vunpack.c.l.b16 %v61
  %v274 = vunpack.c.l.b16 %v62
  %v275 = vunpack.c.l.b16 %v63
  %v276 = vunpack.c.l.b16 %v64
  %v277 = vunpack.c.l.b16 %v65
  %v278 = vunpack.c.l.b16 %v66
  %v279 = vunpack.c.l.b16 %v67
  %v280 = vunpack.c.l.b16 %v68
  %v281 = vunpack.c.l.b16 %v69
  %v282 = vunpack.c.l.b16 %v70
  %v283 = vunpack.c.l.b16 %v71
  %v284 = vunpack.c.l.b16 %v72
  %v285 = vunpack.c.l.b16 %v73
  %v286 = vunpack.c.l.b16 %v74
  %v287 = vunpack.c.l.b16 %v75
  %v288 = vunpack.c.l.b16 %v76
  %v289 = vunpack.c.l.b16 %v77
  %v290 = vunpack.c.l.b16 %v78
  %v291 = vunpack.c.l.b16 %v79
  %v292 = vunpack.c.l.b16 %v80
  %v293 = vunpack.c.l.b16 %v81
  %v294 = vunpack.c.l.b16 %v82
  %v295 = vunpack.c.l.b16 %v83
  %v296 = vunpack.c.l.b16 %v84
  %v297 = vunpack.c.l.b16 %v85
  %v298 = vunpack.c.l.b16 %v86
  %v299 = vunpack.c.l.b16 %v87
  %v300 = vunpack.c.l.b16 %v88
  %v301 = vunpack.c.l.b16 %v89
  %v302 = vunpack.c.l.b16 %v90
  %v303 = vunpack.c.l.b16 %v91
  %v304 = vunpack.c.l.b16 %v92
  %v305 = vunpack.c.l.b16 %v93
  %v306 = vunpack.c.l.b16 %v94
  %v307 = vunpack.c.l.b16 %v95
  %v308 = vunpack.c.l.b16 %v96
  %v309 = vunpack.c.l.b16 %v97
  %v310 = vunpack.c.l.b16 %v98
  %v311 = vunpack.c.l.b16 %v99
  %v312 = vunpack.c.l.b16 %v100
  %v313 = vunpack.c.l.b16 %v101
  %v314 = vunpack.c.l.b16 %v102
  %v315 = vunpack.c.l.b16 %v103
  %v316 = vunpack.c.l.b16 %v104
  %v317 = vunpack.c.l.b16 %v105
  %v318 = vpack.c.b16 %v239, %v238
  %v319 = vpack.c.b16 %v241, %v240
  %v320 = vpack.c.b16 %v243, %v242
  %v321 = vpack.c.b16 %v245, %v244
  %v322 = vpack.c.b16 %v247, %v246
  %v323 = vpack.c.b16 %v249, %v248
  %v324 = vpack.c.b16 %v251, %v250
  %v325 = vpack.c.b16 %v253, %v252
  %v326 = vpack.c.b16 %v255, %v254
  %v327 = vpack.c.b16 %v257, %v256
  %v328 = vpack.c.b16 %v259, %v258
  %v329 = vpack.c.b16 %v261, %v260
  %v330 = vpack.c.b16 %v263, %v262
  %v331 = vpack.c.b16 %v265, %v264
  %v332 = vpack.c.b16 %v267, %v266
  %v333 = vpack.c.b16 %v269, %v268
  %v334 = vpack.c.b16 %v271, %v270
  %v335 = vpack.c.b16 %v273, %v272
  %v336 = vpack.c.b16 %v275, %v274
  %v337 = vpack.c.b16 %v277, %v276
  %v338 = vpack.c.b16 %v279, %v278
  %v339 = vpack.c.b16 %v281, %v280
  %v340 = vpack.c.b16 %v283, %v282
  %v341 = vpack.c.b16 %v285, %v284
  %v342 = vpack.c.b16 %v287, %v286
  %v343 = vpack.c.b16 %v289, %v288
  %v344 = vpack.c.b16 %v291, %v290
  %v345 = vpack.c.b16 %v293, %v292
  %v346 = vpack.c.b16 %v295, %v294
  %v347 = vpack.c.b16 %v297, %v296
  %v348 = vpack.c.b16 %v299, %v298
  %v349 = vpack.c.b16 %v301, %v300
  %v350 = vpack.c.b16 %v303, %v302
  %v351 = vpack.c.b16 %v305, %v304
  %v352 = vpack.c.b16 %v307, %v306
  %v353 = vpack.c.b16 %v309, %v308
  %v354 = vpack.c.b16 %v311, %v310
  %v355 = vpack.c.b16 %v313, %v312
  %v356 = vpack.c.b16 %v315, %v314
  %v357 = vpack.c.b16 %v317, %v316
  %398 = vmatprep.subr.bf16.mxu0 0
  %399 = vmatpush1.bf16.msra.mxu0 %v325
  %400 = vmatprep.subr.bf16.mxu0 0
  %401 = vmatpush1.bf16.msra.mxu0 %v324
  %402 = vmatprep.subr.bf16.mxu0 0
  %403 = vmatpush1.bf16.msra.mxu0 %v323
  %404 = vmatprep.subr.bf16.mxu0 0
  %405 = vmatpush1.bf16.msra.mxu0 %v322
  %406 = vmatprep.subr.bf16.mxu0 0
  %407 = vmatpush1.bf16.msra.mxu0 %v321
  %408 = vmatprep.subr.bf16.mxu0 0
  %409 = vmatpush1.bf16.msra.mxu0 %v320
  %410 = vmatprep.subr.bf16.mxu0 0
  %411 = vmatpush1.bf16.msra.mxu0 %v319
  %412 = vmatprep.subr.bf16.mxu0 0
  %413 = vmatpush1.bf16.msra.mxu0 %v318
  %414 = vmatprep.subr.bf16.mxu0 0
  %415 = vmatpush2.bf16.msra.mxu0 %v333
  %416 = vmatprep.subr.bf16.mxu0 0
  %417 = vmatpush2.bf16.msra.mxu0 %v332
  %418 = vmatprep.subr.bf16.mxu0 0
  %419 = vmatpush2.bf16.msra.mxu0 %v331
  %420 = vmatprep.subr.bf16.mxu0 0
  %421 = vmatpush2.bf16.msra.mxu0 %v330
  %422 = vmatprep.subr.bf16.mxu0 0
  %423 = vmatpush2.bf16.msra.mxu0 %v329
  %424 = vmatprep.subr.bf16.mxu0 0
  %425 = vmatpush2.bf16.msra.mxu0 %v328
  %426 = vmatprep.subr.bf16.mxu0 0
  %427 = vmatpush2.bf16.msra.mxu0 %v327
  %428 = vmatprep.subr.bf16.mxu0 0
  %429 = vmatpush2.bf16.msra.mxu0 %v326
  %430 = vmatprep.mubr.bf16.mxu0 %v139
  %431 = vmatmul.mubr.bf16.gmra.mxu0 %v138
  %v432 = vpop.f32.mrf.mxu0
  %v433 = vadd.f32 0.0, %v432
  %v434 = vpop.f32.mrf.mxu0
  %v435 = vpop.f32.mrf.mxu0
  %v436 = vadd.f32 0.0, %v435
  %v437 = vpop.f32.mrf.mxu0
  %438 = vmatprep.mubr.bf16.mxu0 %v144
  %439 = vmatmul.mubr.bf16.gmra.mxu0 %v143
  %v440 = vpop.f32.mrf.mxu0
  %v441 = vadd.f32 0.0, %v440
  %v442 = vpop.f32.mrf.mxu0
  %v443 = vpop.f32.mrf.mxu0
  %v444 = vadd.f32 0.0, %v443
  %v445 = vpop.f32.mrf.mxu0
  %446 = vdwg.mxu0
  %447 = vmatprep.subr.bf16.mxu0 0
  %448 = vmatpush1.bf16.msra.mxu0 %v341
  %449 = vmatprep.subr.bf16.mxu0 0
  %450 = vmatpush1.bf16.msra.mxu0 %v340
  %451 = vmatprep.subr.bf16.mxu0 0
  %452 = vmatpush1.bf16.msra.mxu0 %v339
  %453 = vmatprep.subr.bf16.mxu0 0
  %454 = vmatpush1.bf16.msra.mxu0 %v338
  %455 = vmatprep.subr.bf16.mxu0 0
  %456 = vmatpush1.bf16.msra.mxu0 %v337
  %457 = vmatprep.subr.bf16.mxu0 0
  %458 = vmatpush1.bf16.msra.mxu0 %v336
  %459 = vmatprep.subr.bf16.mxu0 0
  %460 = vmatpush1.bf16.msra.mxu0 %v335
  %461 = vmatprep.subr.bf16.mxu0 0
  %462 = vmatpush1.bf16.msra.mxu0 %v334
  %463 = vmatprep.subr.bf16.mxu0 0
  %464 = vmatpush2.bf16.msra.mxu0 %v349
  %465 = vmatprep.subr.bf16.mxu0 0
  %466 = vmatpush2.bf16.msra.mxu0 %v348
  %467 = vmatprep.subr.bf16.mxu0 0
  %468 = vmatpush2.bf16.msra.mxu0 %v347
  %469 = vmatprep.subr.bf16.mxu0 0
  %470 = vmatpush2.bf16.msra.mxu0 %v346
  %471 = vmatprep.subr.bf16.mxu0 0
  %472 = vmatpush2.bf16.msra.mxu0 %v345
  %473 = vmatprep.subr.bf16.mxu0 0
  %474 = vmatpush2.bf16.msra.mxu0 %v344
  %475 = vmatprep.subr.bf16.mxu0 0
  %476 = vmatpush2.bf16.msra.mxu0 %v343
  %477 = vmatprep.subr.bf16.mxu0 0
  %478 = vmatpush2.bf16.msra.mxu0 %v342
  %479 = vmatprep.mubr.bf16.mxu0 %v141
  %480 = vmatmul.mubr.bf16.gmra.mxu0 %v140
  %v481 = vpop.f32.mrf.mxu0
  %v482 = vadd.f32 %v433, %v481
  %v483 = vpop.f32.mrf.mxu0
  %v484 = vpop.f32.mrf.mxu0
  %v485 = vadd.f32 %v436, %v484
  %v486 = vpop.f32.mrf.mxu0
  %487 = vmatprep.mubr.bf16.mxu0 %v146
  %488 = vmatmul.mubr.bf16.gmra.mxu0 %v145
  %v489 = vpop.f32.mrf.mxu0
  %v490 = vadd.f32 %v441, %v489
  %v491 = vpop.f32.mrf.mxu0
  %v492 = vpop.f32.mrf.mxu0
  %v493 = vadd.f32 %v444, %v492
  %v494 = vpop.f32.mrf.mxu0
  %495 = vdwg.mxu0
  %496 = vmatprep.subr.bf16.mxu0 0
  %497 = vmatpush1.bf16.msra.mxu0 %v357
  %498 = vmatprep.subr.bf16.mxu0 0
  %499 = vmatpush1.bf16.msra.mxu0 %v356
  %500 = vmatprep.subr.bf16.mxu0 0
  %501 = vmatpush1.bf16.msra.mxu0 %v355
  %502 = vmatprep.subr.bf16.mxu0 0
  %503 = vmatpush1.bf16.msra.mxu0 %v354
  %504 = vmatprep.subr.bf16.mxu0 0
  %505 = vmatpush1.bf16.msra.mxu0 %v353
  %506 = vmatprep.subr.bf16.mxu0 0
  %507 = vmatpush1.bf16.msra.mxu0 %v352
  %508 = vmatprep.subr.bf16.mxu0 0
  %509 = vmatpush1.bf16.msra.mxu0 %v351
  %510 = vmatprep.subr.bf16.mxu0 0
  %511 = vmatpush1.bf16.msra.mxu0 %v350
  %512 = vmatprep.subr.bf16.mxu0 0
  %513 = vmatpush2.bf16.msra.mxu0 0
  %514 = vmatprep.subr.bf16.mxu0 0
  %515 = vmatpush2.bf16.msra.mxu0 0
  %516 = vmatprep.subr.bf16.mxu0 0
  %517 = vmatpush2.bf16.msra.mxu0 0
  %518 = vmatprep.subr.bf16.mxu0 0
  %519 = vmatpush2.bf16.msra.mxu0 0
  %520 = vmatprep.subr.bf16.mxu0 0
  %521 = vmatpush2.bf16.msra.mxu0 0
  %522 = vmatprep.subr.bf16.mxu0 0
  %523 = vmatpush2.bf16.msra.mxu0 0
  %524 = vmatprep.subr.bf16.mxu0 0
  %525 = vmatpush2.bf16.msra.mxu0 0
  %526 = vmatprep.subr.bf16.mxu0 0
  %527 = vmatpush2.bf16.msra.mxu0 0
  %528 = vmatprep.mubr.bf16.mxu0 0
  %529 = vmatmul.mubr.bf16.gmra.mxu0 %v142
  %v530 = vpop.f32.mrf.mxu0
  %v531 = vadd.f32 %v482, %v530
  %v532 = vpop.f32.mrf.mxu0
  %v533 = vpop.f32.mrf.mxu0
  %v534 = vadd.f32 %v485, %v533
  %v535 = vpop.f32.mrf.mxu0
  %536 = vmatprep.mubr.bf16.mxu0 0
  %537 = vmatmul.mubr.bf16.gmra.mxu0 %v147
  %v538 = vpop.f32.mrf.mxu0
  %v539 = vadd.f32 %v490, %v538
  %v540 = vpop.f32.mrf.mxu0
  %v541 = vpop.f32.mrf.mxu0
  %v542 = vadd.f32 %v493, %v541
  %v543 = vpop.f32.mrf.mxu0
  %544 = vdwg.mxu0
  %v545 = vpack.c.bf16 %v534, %v531
  %v546 = vpack.c.bf16 %v542, %v539
  %v549 = vunpack.c.l.b16 %v545
  %v550 = vunpack.c.h.b16 %v545
  %v551 = vunpack.c.l.b16 %v546
  %v552 = vunpack.c.h.b16 %v546
  %v553 = vpack.c.b16 %v549, %v549
  %v554 = vpack.c.b16 %v550, %v550
  %v555 = vpack.c.b16 %v551, %v551
  %v556 = vpack.c.b16 %v552, %v552
  %561 = vst [vmem:[%s2] sm:$0xf] %v553
  %562 = vst [vmem:[%s2 + $0x4] sm:$0xf] %v554
  %563 = vst [vmem:[%s2 + $0x8] sm:$0xf] %v555
  %564 = vst [vmem:[%s2 + $0xc] sm:$0xf] %v556
  %v565 = vadd.f32 %v531, %v534
  %v566 = vadd.f32 %v565, %v539
  %v567 = vadd.f32 %v566, %v542
  %v568 = vrot.slane %v567, 4
  %v569 = vadd.f32 %v567, %v568
  %v570 = vrot.slane %v569, 2
  %v571 = vadd.f32 %v569, %v570
  %v572 = vrot.slane %v571, 1
  %v573 = vadd.f32 %v571, %v572
  %v574 = vmul.f32 %v531, %v531
  %v575 = vmul.f32 %v534, %v534
  %v576 = vmul.f32 %v539, %v539
  %v577 = vmul.f32 %v542, %v542
  %v578 = vadd.f32 %v574, %v575
  %v579 = vadd.f32 %v578, %v576
  %v580 = vadd.f32 %v579, %v577
  %v581 = vrot.slane %v580, 4
  %v582 = vadd.f32 %v580, %v581
  %v583 = vrot.slane %v582, 2
  %v584 = vadd.f32 %v582, %v583
  %v585 = vrot.slane %v584, 1
  %v586 = vadd.f32 %v584, %v585
  %vm587 = vcmask 1040384
  %v588 = vsel %vm587, %v573, %v586
  %589 = vst [vmem:[%s3] sm:$0x3] %v588
  // Predicated region
  $region10: #{generator_forward.6} parent=0 // pred_check
    _
  $region11: #{generator_forward.6} parent=0 // pred_check_branch
    %591 = sbr.rel (0) target = $region13
  $region12: #{generator_forward.6} parent=0 // pred_region
    _
  $region13: #{generator_forward.6} parent=0 // pred_fallthru
    _
  // Predicated region
  $region14: #{generator_forward.6} parent=0 // pred_check
    _
  $region15: #{generator_forward.6} parent=0 // pred_check_branch
    %593 = sbr.rel (0) target = $region17
  $region16: #{generator_forward.6} parent=0 // pred_region
    _
  $region17: #{generator_forward.6} parent=0 // pred_fallthru
    _
  // Predicated region
  $region18: #{generator_forward.6} parent=0 // pred_check
    _
  $region19: #{generator_forward.6} parent=0 // pred_check_branch
    %595 = sbr.rel (0) target = $region21
  $region20: #{generator_forward.6} parent=0 // pred_region
    _
  $region21: #{generator_forward.6} parent=0 // pred_fallthru
    _
  // Predicated region
  $region22: #{generator_forward.6} parent=0 // pred_check
    _
  $region23: #{generator_forward.6} parent=0 // pred_check_branch
    %597 = sbr.rel (0) target = $region25
  $region24: #{generator_forward.6} parent=0 // pred_region
    _
  $region25: #{generator_forward.6} parent=0 // pred_fallthru
    _

// kernel: generator_forward.7
$region0: #{generator_forward.7}
  #allocation0 [shape = 'u32[]', space=smem, size = 0x4, offset = 0x4, fixed_abs, tag = 'smem constant byte address 0x4 - core index']
  #allocation1 [shape = 'u32[144,128]{1,0:T(1,128)}', space=vmem, size = 0x12000, scoped, tag = 'internal scratch']
  %s0 = inlined_call_operand.vmem [shape: bf16[128,384], index: 0, kind: input, shape index: {}]
  %s1 = inlined_call_operand.vmem [shape: bf16[384,128], index: 1, kind: input, shape index: {}]
  %s2 = inlined_call_operand.vmem [shape: bf16[128,128], index: 2, kind: output, shape index: {0}]
  %s3 = inlined_call_operand.vmem [shape: f32[1,2,128], index: 3, kind: output, shape index: {1}]
  %4 = xla_tuple %s2, %s3
  %s5 = sld [smem:[#allocation0]]
  $region26: #{generator_forward.7} parent=0
    _
  %s7 = ssub.s32 1, %s5
  %s8 = scalar_select 0, %s7, %s5
  // Predicated region
  $region2: #{generator_forward.7} parent=0 // pred_check
    _
  $region3: #{generator_forward.7} parent=0 // pred_check_branch
    %10 = sbr.rel (0) target = $region5
  $region4: #{generator_forward.7} parent=0 // pred_region
    _
  $region5: #{generator_forward.7} parent=0 // pred_fallthru
    _
  // Predicated region
  $region6: #{generator_forward.7} parent=0 // pred_check
    _
  $region7: #{generator_forward.7} parent=0 // pred_check_branch
    %12 = sbr.rel (0) target = $region9
  $region8: #{generator_forward.7} parent=0 // pred_region
    _
  $region9: #{generator_forward.7} parent=0 // pred_fallthru
    _
  %v14 = vld [vmem:[%s0] sm:$0xff]
  %v15 = vld [vmem:[%s0 + $0x8] sm:$0xf]
  %v16 = vld [vmem:[%s0 + $0xc] sm:$0xff]
  %v17 = vld [vmem:[%s0 + $0x14] sm:$0xf]
  %v18 = vld [vmem:[%s0 + $0x18] sm:$0xff]
  %v19 = vld [vmem:[%s0 + $0x20] sm:$0xf]
  %v20 = vld [vmem:[%s0 + $0x24] sm:$0xff]
  %v21 = vld [vmem:[%s0 + $0x2c] sm:$0xf]
  %v22 = vld [vmem:[%s0 + $0x30] sm:$0xff]
  %v23 = vld [vmem:[%s0 + $0x38] sm:$0xf]
  %v24 = vld [vmem:[%s0 + $0x3c] sm:$0xff]
  %v25 = vld [vmem:[%s0 + $0x44] sm:$0xf]
  %v26 = vld [vmem:[%s0 + $0x48] sm:$0xff]
  %v27 = vld [vmem:[%s0 + $0x50] sm:$0xf]
  %v28 = vld [vmem:[%s0 + $0x54] sm:$0xff]
  %v29 = vld [vmem:[%s0 + $0x5c] sm:$0xf]
  %v30 = vld [vmem:[%s0 + $0x60] sm:$0xff]
  %v31 = vld [vmem:[%s0 + $0x68] sm:$0xf]
  %v32 = vld [vmem:[%s0 + $0x6c] sm:$0xff]
  %v33 = vld [vmem:[%s0 + $0x74] sm:$0xf]
  %v34 = vld [vmem:[%s0 + $0x78] sm:$0xff]
  %v35 = vld [vmem:[%s0 + $0x80] sm:$0xf]
  %v36 = vld [vmem:[%s0 + $0x84] sm:$0xff]
  %v37 = vld [vmem:[%s0 + $0x8c] sm:$0xf]
  %v38 = vld [vmem:[%s0 + $0x90] sm:$0xff]
  %v39 = vld [vmem:[%s0 + $0x98] sm:$0xf]
  %v40 = vld [vmem:[%s0 + $0x9c] sm:$0xff]
  %v41 = vld [vmem:[%s0 + $0xa4] sm:$0xf]
  %v42 = vld [vmem:[%s0 + $0xa8] sm:$0xff]
  %v43 = vld [vmem:[%s0 + $0xb0] sm:$0xf]
  %v44 = vld [vmem:[%s0 + $0xb4] sm:$0xff]
  %v45 = vld [vmem:[%s0 + $0xbc] sm:$0xf]
  %v46 = vld [vmem:[%s1] sm:$0xf]
  %v47 = vld [vmem:[%s1 + $0x4] sm:$0xf]
  %v48 = vld [vmem:[%s1 + $0x8] sm:$0xf]
  %v49 = vld [vmem:[%s1 + $0xc] sm:$0xf]
  %v50 = vld [vmem:[%s1 + $0x10] sm:$0xf]
  %v51 = vld [vmem:[%s1 + $0x14] sm:$0xf]
  %v52 = vld [vmem:[%s1 + $0x18] sm:$0xf]
  %v53 = vld [vmem:[%s1 + $0x1c] sm:$0xf]
  %v54 = vld [vmem:[%s1 + $0x20] sm:$0xf]
  %v55 = vld [vmem:[%s1 + $0x24] sm:$0xf]
  %v56 = vld [vmem:[%s1 + $0x28] sm:$0xf]
  %v57 = vld [vmem:[%s1 + $0x2c] sm:$0xf]
  %v58 = vld [vmem:[%s1 + $0x30] sm:$0xf]
  %v59 = vld [vmem:[%s1 + $0x34] sm:$0xf]
  %v60 = vld [vmem:[%s1 + $0x38] sm:$0xf]
  %v61 = vld [vmem:[%s1 + $0x3c] sm:$0xf]
  %v62 = vld [vmem:[%s1 + $0x40] sm:$0xf]
  %v63 = vld [vmem:[%s1 + $0x44] sm:$0xf]
  %v64 = vld [vmem:[%s1 + $0x48] sm:$0xf]
  %v65 = vld [vmem:[%s1 + $0x4c] sm:$0xf]
  %v66 = vld [vmem:[%s1 + $0x50] sm:$0xf]
  %v67 = vld [vmem:[%s1 + $0x54] sm:$0xf]
  %v68 = vld [vmem:[%s1 + $0x58] sm:$0xf]
  %v69 = vld [vmem:[%s1 + $0x5c] sm:$0xf]
  %v70 = vld [vmem:[%s1 + $0x60] sm:$0xf]
  %v71 = vld [vmem:[%s1 + $0x64] sm:$0xf]
  %v72 = vld [vmem:[%s1 + $0x68] sm:$0xf]
  %v73 = vld [vmem:[%s1 + $0x6c] sm:$0xf]
  %v74 = vld [vmem:[%s1 + $0x70] sm:$0xf]
  %v75 = vld [vmem:[%s1 + $0x74] sm:$0xf]
  %v76 = vld [vmem:[%s1 + $0x78] sm:$0xf]
  %v77 = vld [vmem:[%s1 + $0x7c] sm:$0xf]
  %v78 = vld [vmem:[%s1 + $0x80] sm:$0xf]
  %v79 = vld [vmem:[%s1 + $0x84] sm:$0xf]
  %v80 = vld [vmem:[%s1 + $0x88] sm:$0xf]
  %v81 = vld [vmem:[%s1 + $0x8c] sm:$0xf]
  %v82 = vld [vmem:[%s1 + $0x90] sm:$0xf]
  %v83 = vld [vmem:[%s1 + $0x94] sm:$0xf]
  %v84 = vld [vmem:[%s1 + $0x98] sm:$0xf]
  %v85 = vld [vmem:[%s1 + $0x9c] sm:$0xf]
  %v86 = vld [vmem:[%s1 + $0xa0] sm:$0xf]
  %v87 = vld [vmem:[%s1 + $0xa4] sm:$0xf]
  %v88 = vld [vmem:[%s1 + $0xa8] sm:$0xf]
  %v89 = vld [vmem:[%s1 + $0xac] sm:$0xf]
  %v90 = vld [vmem:[%s1 + $0xb0] sm:$0xf]
  %v91 = vld [vmem:[%s1 + $0xb4] sm:$0xf]
  %v92 = vld [vmem:[%s1 + $0xb8] sm:$0xf]
  %v93 = vld [vmem:[%s1 + $0xbc] sm:$0xf]
  %v126 = vunpack.c.l.b16 %v14
  %v127 = vunpack.c.h.b16 %v14
  %v128 = vunpack.c.l.b16 %v15
  %v129 = vunpack.c.l.b16 %v16
  %v130 = vunpack.c.h.b16 %v16
  %v131 = vunpack.c.l.b16 %v17
  %v132 = vunpack.c.l.b16 %v18
  %v133 = vunpack.c.h.b16 %v18
  %v134 = vunpack.c.l.b16 %v19
  %v135 = vunpack.c.l.b16 %v20
  %v136 = vunpack.c.h.b16 %v20
  %v137 = vunpack.c.l.b16 %v21
  %v138 = vunpack.c.l.b16 %v22
  %v139 = vunpack.c.h.b16 %v22
  %v140 = vunpack.c.l.b16 %v23
  %v141 = vunpack.c.l.b16 %v24
  %v142 = vunpack.c.h.b16 %v24
  %v143 = vunpack.c.l.b16 %v25
  %v144 = vunpack.c.l.b16 %v26
  %v145 = vunpack.c.h.b16 %v26
  %v146 = vunpack.c.l.b16 %v27
  %v147 = vunpack.c.l.b16 %v28
  %v148 = vunpack.c.h.b16 %v28
  %v149 = vunpack.c.l.b16 %v29
  %v150 = vunpack.c.l.b16 %v30
  %v151 = vunpack.c.h.b16 %v30
  %v152 = vunpack.c.l.b16 %v31
  %v153 = vunpack.c.l.b16 %v32
  %v154 = vunpack.c.h.b16 %v32
  %v155 = vunpack.c.l.b16 %v33
  %v156 = vunpack.c.l.b16 %v34
  %v157 = vunpack.c.h.b16 %v34
  %v158 = vunpack.c.l.b16 %v35
  %v159 = vunpack.c.l.b16 %v36
  %v160 = vunpack.c.h.b16 %v36
  %v161 = vunpack.c.l.b16 %v37
  %v162 = vunpack.c.l.b16 %v38
  %v163 = vunpack.c.h.b16 %v38
  %v164 = vunpack.c.l.b16 %v39
  %v165 = vunpack.c.l.b16 %v40
  %v166 = vunpack.c.h.b16 %v40
  %v167 = vunpack.c.l.b16 %v41
  %v168 = vunpack.c.l.b16 %v42
  %v169 = vunpack.c.h.b16 %v42
  %v170 = vunpack.c.l.b16 %v43
  %v171 = vunpack.c.l.b16 %v44
  %v172 = vunpack.c.h.b16 %v44
  %v173 = vunpack.c.l.b16 %v45
  %v174 = vpack.c.b16 %v129, %v126
  %v175 = vpack.c.b16 %v130, %v127
  %v176 = vpack.c.b16 %v131, %v128
  %v177 = vpack.c.b16 %v135, %v132
  %v178 = vpack.c.b16 %v136, %v133
  %v179 = vpack.c.b16 %v137, %v134
  %v180 = vpack.c.b16 %v141, %v138
  %v181 = vpack.c.b16 %v142, %v139
  %v182 = vpack.c.b16 %v143, %v140
  %v183 = vpack.c.b16 %v147, %v144
  %v184 = vpack.c.b16 %v148, %v145
  %v185 = vpack.c.b16 %v149, %v146
  %v186 = vpack.c.b16 %v153, %v150
  %v187 = vpack.c.b16 %v154, %v151
  %v188 = vpack.c.b16 %v155, %v152
  %v189 = vpack.c.b16 %v159, %v156
  %v190 = vpack.c.b16 %v160, %v157
  %v191 = vpack.c.b16 %v161, %v158
  %v192 = vpack.c.b16 %v165, %v162
  %v193 = vpack.c.b16 %v166, %v163
  %v194 = vpack.c.b16 %v167, %v164
  %v195 = vpack.c.b16 %v171, %v168
  %v196 = vpack.c.b16 %v172, %v169
  %v197 = vpack.c.b16 %v173, %v170
  %v270 = vunpack.c.l.b16 %v46
  %v271 = vunpack.c.l.b16 %v47
  %v272 = vunpack.c.l.b16 %v48
  %v273 = vunpack.c.l.b16 %v49
  %v274 = vunpack.c.l.b16 %v50
  %v275 = vunpack.c.l.b16 %v51
  %v276 = vunpack.c.l.b16 %v52
  %v277 = vunpack.c.l.b16 %v53
  %v278 = vunpack.c.l.b16 %v54
  %v279 = vunpack.c.l.b16 %v55
  %v280 = vunpack.c.l.b16 %v56
  %v281 = vunpack.c.l.b16 %v57
  %v282 = vunpack.c.l.b16 %v58
  %v283 = vunpack.c.l.b16 %v59
  %v284 = vunpack.c.l.b16 %v60
  %v285 = vunpack.c.l.b16 %v61
  %v286 = vunpack.c.l.b16 %v62
  %v287 = vunpack.c.l.b16 %v63
  %v288 = vunpack.c.l.b16 %v64
  %v289 = vunpack.c.l.b16 %v65
  %v290 = vunpack.c.l.b16 %v66
  %v291 = vunpack.c.l.b16 %v67
  %v292 = vunpack.c.l.b16 %v68
  %v293 = vunpack.c.l.b16 %v69
  %v294 = vunpack.c.l.b16 %v70
  %v295 = vunpack.c.l.b16 %v71
  %v296 = vunpack.c.l.b16 %v72
  %v297 = vunpack.c.l.b16 %v73
  %v298 = vunpack.c.l.b16 %v74
  %v299 = vunpack.c.l.b16 %v75
  %v300 = vunpack.c.l.b16 %v76
  %v301 = vunpack.c.l.b16 %v77
  %v302 = vunpack.c.l.b16 %v78
  %v303 = vunpack.c.l.b16 %v79
  %v304 = vunpack.c.l.b16 %v80
  %v305 = vunpack.c.l.b16 %v81
  %v306 = vunpack.c.l.b16 %v82
  %v307 = vunpack.c.l.b16 %v83
  %v308 = vunpack.c.l.b16 %v84
  %v309 = vunpack.c.l.b16 %v85
  %v310 = vunpack.c.l.b16 %v86
  %v311 = vunpack.c.l.b16 %v87
  %v312 = vunpack.c.l.b16 %v88
  %v313 = vunpack.c.l.b16 %v89
  %v314 = vunpack.c.l.b16 %v90
  %v315 = vunpack.c.l.b16 %v91
  %v316 = vunpack.c.l.b16 %v92
  %v317 = vunpack.c.l.b16 %v93
  %v318 = vpack.c.b16 %v271, %v270
  %v319 = vpack.c.b16 %v273, %v272
  %v320 = vpack.c.b16 %v275, %v274
  %v321 = vpack.c.b16 %v277, %v276
  %v322 = vpack.c.b16 %v279, %v278
  %v323 = vpack.c.b16 %v281, %v280
  %v324 = vpack.c.b16 %v283, %v282
  %v325 = vpack.c.b16 %v285, %v284
  %v326 = vpack.c.b16 %v287, %v286
  %v327 = vpack.c.b16 %v289, %v288
  %v328 = vpack.c.b16 %v291, %v290
  %v329 = vpack.c.b16 %v293, %v292
  %v330 = vpack.c.b16 %v295, %v294
  %v331 = vpack.c.b16 %v297, %v296
  %v332 = vpack.c.b16 %v299, %v298
  %v333 = vpack.c.b16 %v301, %v300
  %v334 = vpack.c.b16 %v303, %v302
  %v335 = vpack.c.b16 %v305, %v304
  %v336 = vpack.c.b16 %v307, %v306
  %v337 = vpack.c.b16 %v309, %v308
  %v338 = vpack.c.b16 %v311, %v310
  %v339 = vpack.c.b16 %v313, %v312
  %v340 = vpack.c.b16 %v315, %v314
  %v341 = vpack.c.b16 %v317, %v316
  %366 = vmatprep.subr.bf16.mxu0 0
  %367 = vmatpush1.bf16.msra.mxu0 %v325
  %368 = vmatprep.subr.bf16.mxu0 0
  %369 = vmatpush1.bf16.msra.mxu0 %v324
  %370 = vmatprep.subr.bf16.mxu0 0
  %371 = vmatpush1.bf16.msra.mxu0 %v323
  %372 = vmatprep.subr.bf16.mxu0 0
  %373 = vmatpush1.bf16.msra.mxu0 %v322
  %374 = vmatprep.subr.bf16.mxu0 0
  %375 = vmatpush1.bf16.msra.mxu0 %v321
  %376 = vmatprep.subr.bf16.mxu0 0
  %377 = vmatpush1.bf16.msra.mxu0 %v320
  %378 = vmatprep.subr.bf16.mxu0 0
  %379 = vmatpush1.bf16.msra.mxu0 %v319
  %380 = vmatprep.subr.bf16.mxu0 0
  %381 = vmatpush1.bf16.msra.mxu0 %v318
  %382 = vmatprep.subr.bf16.mxu0 0
  %383 = vmatpush2.bf16.msra.mxu0 %v333
  %384 = vmatprep.subr.bf16.mxu0 0
  %385 = vmatpush2.bf16.msra.mxu0 %v332
  %386 = vmatprep.subr.bf16.mxu0 0
  %387 = vmatpush2.bf16.msra.mxu0 %v331
  %388 = vmatprep.subr.bf16.mxu0 0
  %389 = vmatpush2.bf16.msra.mxu0 %v330
  %390 = vmatprep.subr.bf16.mxu0 0
  %391 = vmatpush2.bf16.msra.mxu0 %v329
  %392 = vmatprep.subr.bf16.mxu0 0
  %393 = vmatpush2.bf16.msra.mxu0 %v328
  %394 = vmatprep.subr.bf16.mxu0 0
  %395 = vmatpush2.bf16.msra.mxu0 %v327
  %396 = vmatprep.subr.bf16.mxu0 0
  %397 = vmatpush2.bf16.msra.mxu0 %v326
  %398 = vmatprep.mubr.bf16.mxu0 %v175
  %399 = vmatmul.mubr.bf16.gmra.mxu0 %v174
  %v400 = vpop.f32.mrf.mxu0
  %v401 = vadd.f32 0.0, %v400
  %v402 = vpop.f32.mrf.mxu0
  %v403 = vpop.f32.mrf.mxu0
  %v404 = vadd.f32 0.0, %v403
  %v405 = vpop.f32.mrf.mxu0
  %406 = vmatprep.mubr.bf16.mxu0 %v178
  %407 = vmatmul.mubr.bf16.gmra.mxu0 %v177
  %v408 = vpop.f32.mrf.mxu0
  %v409 = vadd.f32 0.0, %v408
  %v410 = vpop.f32.mrf.mxu0
  %v411 = vpop.f32.mrf.mxu0
  %v412 = vadd.f32 0.0, %v411
  %v413 = vpop.f32.mrf.mxu0
  %414 = vmatprep.mubr.bf16.mxu0 %v181
  %415 = vmatmul.mubr.bf16.gmra.mxu0 %v180
  %v416 = vpop.f32.mrf.mxu0
  %v417 = vadd.f32 0.0, %v416
  %v418 = vpop.f32.mrf.mxu0
  %v419 = vpop.f32.mrf.mxu0
  %v420 = vadd.f32 0.0, %v419
  %v421 = vpop.f32.mrf.mxu0
  %422 = vmatprep.mubr.bf16.mxu0 %v184
  %423 = vmatmul.mubr.bf16.gmra.mxu0 %v183
  %v424 = vpop.f32.mrf.mxu0
  %v425 = vadd.f32 0.0, %v424
  %v426 = vpop.f32.mrf.mxu0
  %v427 = vpop.f32.mrf.mxu0
  %v428 = vadd.f32 0.0, %v427
  %v429 = vpop.f32.mrf.mxu0
  %430 = vmatprep.mubr.bf16.mxu0 %v187
  %431 = vmatmul.mubr.bf16.gmra.mxu0 %v186
  %v432 = vpop.f32.mrf.mxu0
  %v433 = vadd.f32 0.0, %v432
  %v434 = vpop.f32.mrf.mxu0
  %v435 = vpop.f32.mrf.mxu0
  %v436 = vadd.f32 0.0, %v435
  %v437 = vpop.f32.mrf.mxu0
  %438 = vmatprep.mubr.bf16.mxu0 %v190
  %439 = vmatmul.mubr.bf16.gmra.mxu0 %v189
  %v440 = vpop.f32.mrf.mxu0
  %v441 = vadd.f32 0.0, %v440
  %v442 = vpop.f32.mrf.mxu0
  %v443 = vpop.f32.mrf.mxu0
  %v444 = vadd.f32 0.0, %v443
  %v445 = vpop.f32.mrf.mxu0
  %446 = vmatprep.mubr.bf16.mxu0 %v193
  %447 = vmatmul.mubr.bf16.gmra.mxu0 %v192
  %v448 = vpop.f32.mrf.mxu0
  %v449 = vadd.f32 0.0, %v448
  %v450 = vpop.f32.mrf.mxu0
  %v451 = vpop.f32.mrf.mxu0
  %v452 = vadd.f32 0.0, %v451
  %v453 = vpop.f32.mrf.mxu0
  %454 = vmatprep.mubr.bf16.mxu0 %v196
  %455 = vmatmul.mubr.bf16.gmra.mxu0 %v195
  %v456 = vpop.f32.mrf.mxu0
  %v457 = vadd.f32 0.0, %v456
  %v458 = vpop.f32.mrf.mxu0
  %v459 = vpop.f32.mrf.mxu0
  %v460 = vadd.f32 0.0, %v459
  %v461 = vpop.f32.mrf.mxu0
  %462 = vdwg.mxu0
  %463 = vmatprep.subr.bf16.mxu0 0
  %464 = vmatpush1.bf16.msra.mxu0 %v341
  %465 = vmatprep.subr.bf16.mxu0 0
  %466 = vmatpush1.bf16.msra.mxu0 %v340
  %467 = vmatprep.subr.bf16.mxu0 0
  %468 = vmatpush1.bf16.msra.mxu0 %v339
  %469 = vmatprep.subr.bf16.mxu0 0
  %470 = vmatpush1.bf16.msra.mxu0 %v338
  %471 = vmatprep.subr.bf16.mxu0 0
  %472 = vmatpush1.bf16.msra.mxu0 %v337
  %473 = vmatprep.subr.bf16.mxu0 0
  %474 = vmatpush1.bf16.msra.mxu0 %v336
  %475 = vmatprep.subr.bf16.mxu0 0
  %476 = vmatpush1.bf16.msra.mxu0 %v335
  %477 = vmatprep.subr.bf16.mxu0 0
  %478 = vmatpush1.bf16.msra.mxu0 %v334
  %479 = vmatprep.subr.bf16.mxu0 0
  %480 = vmatpush2.bf16.msra.mxu0 0
  %481 = vmatprep.subr.bf16.mxu0 0
  %482 = vmatpush2.bf16.msra.mxu0 0
  %483 = vmatprep.subr.bf16.mxu0 0
  %484 = vmatpush2.bf16.msra.mxu0 0
  %485 = vmatprep.subr.bf16.mxu0 0
  %486 = vmatpush2.bf16.msra.mxu0 0
  %487 = vmatprep.subr.bf16.mxu0 0
  %488 = vmatpush2.bf16.msra.mxu0 0
  %489 = vmatprep.subr.bf16.mxu0 0
  %490 = vmatpush2.bf16.msra.mxu0 0
  %491 = vmatprep.subr.bf16.mxu0 0
  %492 = vmatpush2.bf16.msra.mxu0 0
  %493 = vmatprep.subr.bf16.mxu0 0
  %494 = vmatpush2.bf16.msra.mxu0 0
  %495 = vmatprep.mubr.bf16.mxu0 0
  %496 = vmatmul.mubr.bf16.gmra.mxu0 %v176
  %v497 = vpop.f32.mrf.mxu0
  %v498 = vadd.f32 %v401, %v497
  %v499 = vpop.f32.mrf.mxu0
  %v500 = vpop.f32.mrf.mxu0
  %v501 = vadd.f32 %v404, %v500
  %v502 = vpop.f32.mrf.mxu0
  %503 = vmatprep.mubr.bf16.mxu0 0
  %504 = vmatmul.mubr.bf16.gmra.mxu0 %v179
  %v505 = vpop.f32.mrf.mxu0
  %v506 = vadd.f32 %v409, %v505
  %v507 = vpop.f32.mrf.mxu0
  %v508 = vpop.f32.mrf.mxu0
  %v509 = vadd.f32 %v412, %v508
  %v510 = vpop.f32.mrf.mxu0
  %511 = vmatprep.mubr.bf16.mxu0 0
  %512 = vmatmul.mubr.bf16.gmra.mxu0 %v182
  %v513 = vpop.f32.mrf.mxu0
  %v514 = vadd.f32 %v417, %v513
  %v515 = vpop.f32.mrf.mxu0
  %v516 = vpop.f32.mrf.mxu0
  %v517 = vadd.f32 %v420, %v516
  %v518 = vpop.f32.mrf.mxu0
  %519 = vmatprep.mubr.bf16.mxu0 0
  %520 = vmatmul.mubr.bf16.gmra.mxu0 %v185
  %v521 = vpop.f32.mrf.mxu0
  %v522 = vadd.f32 %v425, %v521
  %v523 = vpop.f32.mrf.mxu0
  %v524 = vpop.f32.mrf.mxu0
  %v525 = vadd.f32 %v428, %v524
  %v526 = vpop.f32.mrf.mxu0
  %527 = vmatprep.mubr.bf16.mxu0 0
  %528 = vmatmul.mubr.bf16.gmra.mxu0 %v188
  %v529 = vpop.f32.mrf.mxu0
  %v530 = vadd.f32 %v433, %v529
  %v531 = vpop.f32.mrf.mxu0
  %v532 = vpop.f32.mrf.mxu0
  %v533 = vadd.f32 %v436, %v532
  %v534 = vpop.f32.mrf.mxu0
  %535 = vmatprep.mubr.bf16.mxu0 0
  %536 = vmatmul.mubr.bf16.gmra.mxu0 %v191
  %v537 = vpop.f32.mrf.mxu0
  %v538 = vadd.f32 %v441, %v537
  %v539 = vpop.f32.mrf.mxu0
  %v540 = vpop.f32.mrf.mxu0
  %v541 = vadd.f32 %v444, %v540
  %v542 = vpop.f32.mrf.mxu0
  %543 = vmatprep.mubr.bf16.mxu0 0
  %544 = vmatmul.mubr.bf16.gmra.mxu0 %v194
  %v545 = vpop.f32.mrf.mxu0
  %v546 = vadd.f32 %v449, %v545
  %v547 = vpop.f32.mrf.mxu0
  %v548 = vpop.f32.mrf.mxu0
  %v549 = vadd.f32 %v452, %v548
  %v550 = vpop.f32.mrf.mxu0
  %551 = vmatprep.mubr.bf16.mxu0 0
  %552 = vmatmul.mubr.bf16.gmra.mxu0 %v197
  %v553 = vpop.f32.mrf.mxu0
  %v554 = vadd.f32 %v457, %v553
  %v555 = vpop.f32.mrf.mxu0
  %v556 = vpop.f32.mrf.mxu0
  %v557 = vadd.f32 %v460, %v556
  %v558 = vpop.f32.mrf.mxu0
  %559 = vdwg.mxu0
  %v560 = vpack.c.bf16 %v501, %v498
  %v561 = vpack.c.bf16 %v509, %v506
  %v562 = vpack.c.bf16 %v517, %v514
  %v563 = vpack.c.bf16 %v525, %v522
  %v564 = vpack.c.bf16 %v533, %v530
  %v565 = vpack.c.bf16 %v541, %v538
  %v566 = vpack.c.bf16 %v549, %v546
  %v567 = vpack.c.bf16 %v557, %v554
  %v576 = vunpack.c.l.b16 %v560
  %v577 = vunpack.c.h.b16 %v560
  %v578 = vunpack.c.l.b16 %v561
  %v579 = vunpack.c.h.b16 %v561
  %v580 = vunpack.c.l.b16 %v562
  %v581 = vunpack.c.h.b16 %v562
  %v582 = vunpack.c.l.b16 %v563
  %v583 = vunpack.c.h.b16 %v563
  %v584 = vunpack.c.l.b16 %v564
  %v585 = vunpack.c.h.b16 %v564
  %v586 = vunpack.c.l.b16 %v565
  %v587 = vunpack.c.h.b16 %v565
  %v588 = vunpack.c.l.b16 %v566
  %v589 = vunpack.c.h.b16 %v566
  %v590 = vunpack.c.l.b16 %v567
  %v591 = vunpack.c.h.b16 %v567
  %v592 = vpack.c.b16 %v576, %v576
  %v593 = vpack.c.b16 %v577, %v577
  %v594 = vpack.c.b16 %v578, %v578
  %v595 = vpack.c.b16 %v579, %v579
  %v596 = vpack.c.b16 %v580, %v580
  %v597 = vpack.c.b16 %v581, %v581
  %v598 = vpack.c.b16 %v582, %v582
  %v599 = vpack.c.b16 %v583, %v583
  %v600 = vpack.c.b16 %v584, %v584
  %v601 = vpack.c.b16 %v585, %v585
  %v602 = vpack.c.b16 %v586, %v586
  %v603 = vpack.c.b16 %v587, %v587
  %v604 = vpack.c.b16 %v588, %v588
  %v605 = vpack.c.b16 %v589, %v589
  %v606 = vpack.c.b16 %v590, %v590
  %v607 = vpack.c.b16 %v591, %v591
  %624 = vst [vmem:[%s2] sm:$0xf] %v592
  %625 = vst [vmem:[%s2 + $0x4] sm:$0xf] %v593
  %626 = vst [vmem:[%s2 + $0x8] sm:$0xf] %v594
  %627 = vst [vmem:[%s2 + $0xc] sm:$0xf] %v595
  %628 = vst [vmem:[%s2 + $0x10] sm:$0xf] %v596
  %629 = vst [vmem:[%s2 + $0x14] sm:$0xf] %v597
  %630 = vst [vmem:[%s2 + $0x18] sm:$0xf] %v598
  %631 = vst [vmem:[%s2 + $0x1c] sm:$0xf] %v599
  %632 = vst [vmem:[%s2 + $0x20] sm:$0xf] %v600
  %633 = vst [vmem:[%s2 + $0x24] sm:$0xf] %v601
  %634 = vst [vmem:[%s2 + $0x28] sm:$0xf] %v602
  %635 = vst [vmem:[%s2 + $0x2c] sm:$0xf] %v603
  %636 = vst [vmem:[%s2 + $0x30] sm:$0xf] %v604
  %637 = vst [vmem:[%s2 + $0x34] sm:$0xf] %v605
  %638 = vst [vmem:[%s2 + $0x38] sm:$0xf] %v606
  %639 = vst [vmem:[%s2 + $0x3c] sm:$0xf] %v607
  %v640 = vadd.f32 %v498, %v501
  %v641 = vadd.f32 %v640, %v506
  %v642 = vadd.f32 %v641, %v509
  %v643 = vadd.f32 %v642, %v514
  %v644 = vadd.f32 %v643, %v517
  %v645 = vadd.f32 %v644, %v522
  %v646 = vadd.f32 %v645, %v525
  %v647 = vadd.f32 %v646, %v530
  %v648 = vadd.f32 %v647, %v533
  %v649 = vadd.f32 %v648, %v538
  %v650 = vadd.f32 %v649, %v541
  %v651 = vadd.f32 %v650, %v546
  %v652 = vadd.f32 %v651, %v549
  %v653 = vadd.f32 %v652, %v554
  %v654 = vadd.f32 %v653, %v557
  %v655 = vrot.slane %v654, 4
  %v656 = vadd.f32 %v654, %v655
  %v657 = vrot.slane %v656, 2
  %v658 = vadd.f32 %v656, %v657
  %v659 = vrot.slane %v658, 1
  %v660 = vadd.f32 %v658, %v659
  %v661 = vmul.f32 %v498, %v498
  %v662 = vmul.f32 %v501, %v501
  %v663 = vmul.f32 %v506, %v506
  %v664 = vmul.f32 %v509, %v509
  %v665 = vmul.f32 %v514, %v514
  %v666 = vmul.f32 %v517, %v517
  %v667 = vmul.f32 %v522, %v522
  %v668 = vmul.f32 %v525, %v525
  %v669 = vmul.f32 %v530, %v530
  %v670 = vmul.f32 %v533, %v533
  %v671 = vmul.f32 %v538, %v538
  %v672 = vmul.f32 %v541, %v541
  %v673 = vmul.f32 %v546, %v546
  %v674 = vmul.f32 %v549, %v549
  %v675 = vmul.f32 %v554, %v554
  %v676 = vmul.f32 %v557, %v557
  %v677 = vadd.f32 %v661, %v662
  %v678 = vadd.f32 %v677, %v663
  %v679 = vadd.f32 %v678, %v664
  %v680 = vadd.f32 %v679, %v665
  %v681 = vadd.f32 %v680, %v666
  %v682 = vadd.f32 %v681, %v667
  %v683 = vadd.f32 %v682, %v668
  %v684 = vadd.f32 %v683, %v669
  %v685 = vadd.f32 %v684, %v670
  %v686 = vadd.f32 %v685, %v671
  %v687 = vadd.f32 %v686, %v672
  %v688 = vadd.f32 %v687, %v673
  %v689 = vadd.f32 %v688, %v674
  %v690 = vadd.f32 %v689, %v675
  %v691 = vadd.f32 %v690, %v676
  %v692 = vrot.slane %v691, 4
  %v693 = vadd.f32 %v691, %v692
  %v694 = vrot.slane %v693, 2
  %v695 = vadd.f32 %v693, %v694
  %v696 = vrot.slane %v695, 1
  %v697 = vadd.f32 %v695, %v696
  %vm698 = vcmask 1040384
  %v699 = vsel %vm698, %v660, %v697
  %700 = vst [vmem:[%s3] sm:$0x3] %v699
  // Predicated region
  $region10: #{generator_forward.7} parent=0 // pred_check
    _
  $region11: #{generator_forward.7} parent=0 // pred_check_branch
    %702 = sbr.rel (0) target = $region13
  $region12: #{generator_forward.7} parent=0 // pred_region
    _
  $region13: #{generator_forward.7} parent=0 // pred_fallthru
    _
  // Predicated region
  $region14: #{generator_forward.7} parent=0 // pred_check
    _
  $region15: #{generator_forward.7} parent=0 // pred_check_branch
    %704 = sbr.rel (0) target = $region17
  $region16: #{generator_forward.7} parent=0 // pred_region
    _
  $region17: #{generator_forward.7} parent=0 // pred_fallthru
    _
  // Predicated region
  $region18: #{generator_forward.7} parent=0 // pred_check
    _
  $region19: #{generator_forward.7} parent=0 // pred_check_branch
    %706 = sbr.rel (0) target = $region21
  $region20: #{generator_forward.7} parent=0 // pred_region
    _
  $region21: #{generator_forward.7} parent=0 // pred_fallthru
    _
  // Predicated region
  $region22: #{generator_forward.7} parent=0 // pred_check
    _
  $region23: #{generator_forward.7} parent=0 // pred_check_branch
    %708 = sbr.rel (0) target = $region25
  $region24: #{generator_forward.7} parent=0 // pred_region
    _
  $region25: #{generator_forward.7} parent=0 // pred_fallthru
    _

// kernel: generator_forward.8
$region0: #{generator_forward.8}
  #allocation0 [shape = 'u32[]', space=smem, size = 0x4, offset = 0x4, fixed_abs, tag = 'smem constant byte address 0x4 - core index']
  #allocation1 [shape = 'u32[144,128]{1,0:T(1,128)}', space=vmem, size = 0x12000, scoped, tag = 'internal scratch']
  %s0 = inlined_call_operand.vmem [shape: bf16[512,256], index: 0, kind: input, shape index: {}]
  %s1 = inlined_call_operand.vmem [shape: bf16[256,128], index: 1, kind: input, shape index: {}]
  %s2 = inlined_call_operand.vmem [shape: bf16[512,128], index: 2, kind: output, shape index: {0}]
  %s3 = inlined_call_operand.vmem [shape: f32[1,2,128], index: 3, kind: output, shape index: {1}]
  %4 = xla_tuple %s2, %s3
  %s5 = sld [smem:[#allocation0]]
  $region26: #{generator_forward.8} parent=0
    _
  %s7 = ssub.s32 1, %s5
  %s8 = scalar_select 0, %s7, %s5
  // Predicated region
  $region2: #{generator_forward.8} parent=0 // pred_check
    _
  $region3: #{generator_forward.8} parent=0 // pred_check_branch
    %10 = sbr.rel (0) target = $region5
  $region4: #{generator_forward.8} parent=0 // pred_region
    _
  $region5: #{generator_forward.8} parent=0 // pred_fallthru
    _
  // Predicated region
  $region6: #{generator_forward.8} parent=0 // pred_check
    _
  $region7: #{generator_forward.8} parent=0 // pred_check_branch
    %12 = sbr.rel (0) target = $region9
  $region8: #{generator_forward.8} parent=0 // pred_region
    _
  $region9: #{generator_forward.8} parent=0 // pred_fallthru
    _
  %v14 = vld [vmem:[%s0] sm:$0xff]
  %v15 = vld [vmem:[%s0 + $0x8] sm:$0xff]
  %v16 = vld [vmem:[%s0 + $0x10] sm:$0xff]
  %v17 = vld [vmem:[%s0 + $0x18] sm:$0xff]
  %v18 = vld [vmem:[%s0 + $0x20] sm:$0xff]
  %v19 = vld [vmem:[%s0 + $0x28] sm:$0xff]
  %v20 = vld [vmem:[%s0 + $0x30] sm:$0xff]
  %v21 = vld [vmem:[%s0 + $0x38] sm:$0xff]
  %v22 = vld [vmem:[%s0 + $0x40] sm:$0xff]
  %v23 = vld [vmem:[%s0 + $0x48] sm:$0xff]
  %v24 = vld [vmem:[%s0 + $0x50] sm:$0xff]
  %v25 = vld [vmem:[%s0 + $0x58] sm:$0xff]
  %v26 = vld [vmem:[%s0 + $0x60] sm:$0xff]
  %v27 = vld [vmem:[%s0 + $0x68] sm:$0xff]
  %v28 = vld [vmem:[%s0 + $0x70] sm:$0xff]
  %v29 = vld [vmem:[%s0 + $0x78] sm:$0xff]
  %v30 = vld [vmem:[%s0 + $0x80] sm:$0xff]
  %v31 = vld [vmem:[%s0 + $0x88] sm:$0xff]
  %v32 = vld [vmem:[%s0 + $0x90] sm:$0xff]
  %v33 = vld [vmem:[%s0 + $0x98] sm:$0xff]
  %v34 = vld [vmem:[%s0 + $0xa0] sm:$0xff]
  %v35 = vld [vmem:[%s0 + $0xa8] sm:$0xff]
  %v36 = vld [vmem:[%s0 + $0xb0] sm:$0xff]
  %v37 = vld [vmem:[%s0 + $0xb8] sm:$0xff]
  %v38 = vld [vmem:[%s0 + $0xc0] sm:$0xff]
  %v39 = vld [vmem:[%s0 + $0xc8] sm:$0xff]
  %v40 = vld [vmem:[%s0 + $0xd0] sm:$0xff]
  %v41 = vld [vmem:[%s0 + $0xd8] sm:$0xff]
  %v42 = vld [vmem:[%s0 + $0xe0] sm:$0xff]
  %v43 = vld [vmem:[%s0 + $0xe8] sm:$0xff]
  %v44 = vld [vmem:[%s0 + $0xf0] sm:$0xff]
  %v45 = vld [vmem:[%s0 + $0xf8] sm:$0xff]
  %v46 = vld [vmem:[%s0 + $0x100] sm:$0xff]
  %v47 = vld [vmem:[%s0 + $0x108] sm:$0xff]
  %v48 = vld [vmem:[%s0 + $0x110] sm:$0xff]
  %v49 = vld [vmem:[%s0 + $0x118] sm:$0xff]
  %v50 = vld [vmem:[%s0 + $0x120] sm:$0xff]
  %v51 = vld [vmem:[%s0 + $0x128] sm:$0xff]
  %v52 = vld [vmem:[%s0 + $0x130] sm:$0xff]
  %v53 = vld [vmem:[%s0 + $0x138] sm:$0xff]
  %v54 = vld [vmem:[%s0 + $0x140] sm:$0xff]
  %v55 = vld [vmem:[%s0 + $0x148] sm:$0xff]
  %v56 = vld [vmem:[%s0 + $0x150] sm:$0xff]
  %v57 = vld [vmem:[%s0 + $0x158] sm:$0xff]
  %v58 = vld [vmem:[%s0 + $0x160] sm:$0xff]
  %v59 = vld [vmem:[%s0 + $0x168] sm:$0xff]
  %v60 = vld [vmem:[%s0 + $0x170] sm:$0xff]
  %v61 = vld [vmem:[%s0 + $0x178] sm:$0xff]
  %v62 = vld [vmem:[%s0 + $0x180] sm:$0xff]
  %v63 = vld [vmem:[%s0 + $0x188] sm:$0xff]
  %v64 = vld [vmem:[%s0 + $0x190] sm:$0xff]
  %v65 = vld [vmem:[%s0 + $0x198] sm:$0xff]
  %v66 = vld [vmem:[%s0 + $0x1a0] sm:$0xff]
  %v67 = vld [vmem:[%s0 + $0x1a8] sm:$0xff]
  %v68 = vld [vmem:[%s0 + $0x1b0] sm:$0xff]
  %v69 = vld [vmem:[%s0 + $0x1b8] sm:$0xff]
  %v70 = vld [vmem:[%s0 + $0x1c0] sm:$0xff]
  %v71 = vld [vmem:[%s0 + $0x1c8] sm:$0xff]
  %v72 = vld [vmem:[%s0 + $0x1d0] sm:$0xff]
  %v73 = vld [vmem:[%s0 + $0x1d8] sm:$0xff]
  %v74 = vld [vmem:[%s0 + $0x1e0] sm:$0xff]
  %v75 = vld [vmem:[%s0 + $0x1e8] sm:$0xff]
  %v76 = vld [vmem:[%s0 + $0x1f0] sm:$0xff]
  %v77 = vld [vmem:[%s0 + $0x1f8] sm:$0xff]
  %v78 = vld [vmem:[%s1] sm:$0xf]
  %v79 = vld [vmem:[%s1 + $0x4] sm:$0xf]
  %v80 = vld [vmem:[%s1 + $0x8] sm:$0xf]
  %v81 = vld [vmem:[%s1 + $0xc] sm:$0xf]
  %v82 = vld [vmem:[%s1 + $0x10] sm:$0xf]
  %v83 = vld [vmem:[%s1 + $0x14] sm:$0xf]
  %v84 = vld [vmem:[%s1 + $0x18] sm:$0xf]
  %v85 = vld [vmem:[%s1 + $0x1c] sm:$0xf]
  %v86 = vld [vmem:[%s1 + $0x20] sm:$0xf]
  %v87 = vld [vmem:[%s1 + $0x24] sm:$0xf]
  %v88 = vld [vmem:[%s1 + $0x28] sm:$0xf]
  %v89 = vld [vmem:[%s1 + $0x2c] sm:$0xf]
  %v90 = vld [vmem:[%s1 + $0x30] sm:$0xf]
  %v91 = vld [vmem:[%s1 + $0x34] sm:$0xf]
  %v92 = vld [vmem:[%s1 + $0x38] sm:$0xf]
  %v93 = vld [vmem:[%s1 + $0x3c] sm:$0xf]
  %v94 = vld [vmem:[%s1 + $0x40] sm:$0xf]
  %v95 = vld [vmem:[%s1 + $0x44] sm:$0xf]
  %v96 = vld [vmem:[%s1 + $0x48] sm:$0xf]
  %v97 = vld [vmem:[%s1 + $0x4c] sm:$0xf]
  %v98 = vld [vmem:[%s1 + $0x50] sm:$0xf]
  %v99 = vld [vmem:[%s1 + $0x54] sm:$0xf]
  %v100 = vld [vmem:[%s1 + $0x58] sm:$0xf]
  %v101 = vld [vmem:[%s1 + $0x5c] sm:$0xf]
  %v102 = vld [vmem:[%s1 + $0x60] sm:$0xf]
  %v103 = vld [vmem:[%s1 + $0x64] sm:$0xf]
  %v104 = vld [vmem:[%s1 + $0x68] sm:$0xf]
  %v105 = vld [vmem:[%s1 + $0x6c] sm:$0xf]
  %v106 = vld [vmem:[%s1 + $0x70] sm:$0xf]
  %v107 = vld [vmem:[%s1 + $0x74] sm:$0xf]
  %v108 = vld [vmem:[%s1 + $0x78] sm:$0xf]
  %v109 = vld [vmem:[%s1 + $0x7c] sm:$0xf]
  %v174 = vunpack.c.l.b16 %v14
  %v175 = vunpack.c.h.b16 %v14
  %v176 = vunpack.c.l.b16 %v15
  %v177 = vunpack.c.h.b16 %v15
  %v178 = vunpack.c.l.b16 %v16
  %v179 = vunpack.c.h.b16 %v16
  %v180 = vunpack.c.l.b16 %v17
  %v181 = vunpack.c.h.b16 %v17
  %v182 = vunpack.c.l.b16 %v18
  %v183 = vunpack.c.h.b16 %v18
  %v184 = vunpack.c.l.b16 %v19
  %v185 = vunpack.c.h.b16 %v19
  %v186 = vunpack.c.l.b16 %v20
  %v187 = vunpack.c.h.b16 %v20
  %v188 = vunpack.c.l.b16 %v21
  %v189 = vunpack.c.h.b16 %v21
  %v190 = vunpack.c.l.b16 %v22
  %v191 = vunpack.c.h.b16 %v22
  %v192 = vunpack.c.l.b16 %v23
  %v193 = vunpack.c.h.b16 %v23
  %v194 = vunpack.c.l.b16 %v24
  %v195 = vunpack.c.h.b16 %v24
  %v196 = vunpack.c.l.b16 %v25
  %v197 = vunpack.c.h.b16 %v25
  %v198 = vunpack.c.l.b16 %v26
  %v199 = vunpack.c.h.b16 %v26
  %v200 = vunpack.c.l.b16 %v27
  %v201 = vunpack.c.h.b16 %v27
  %v202 = vunpack.c.l.b16 %v28
  %v203 = vunpack.c.h.b16 %v28
  %v204 = vunpack.c.l.b16 %v29
  %v205 = vunpack.c.h.b16 %v29
  %v206 = vunpack.c.l.b16 %v30
  %v207 = vunpack.c.h.b16 %v30
  %v208 = vunpack.c.l.b16 %v31
  %v209 = vunpack.c.h.b16 %v31
  %v210 = vunpack.c.l.b16 %v32
  %v211 = vunpack.c.h.b16 %v32
  %v212 = vunpack.c.l.b16 %v33
  %v213 = vunpack.c.h.b16 %v33
  %v214 = vunpack.c.l.b16 %v34
  %v215 = vunpack.c.h.b16 %v34
  %v216 = vunpack.c.l.b16 %v35
  %v217 = vunpack.c.h.b16 %v35
  %v218 = vunpack.c.l.b16 %v36
  %v219 = vunpack.c.h.b16 %v36
  %v220 = vunpack.c.l.b16 %v37
  %v221 = vunpack.c.h.b16 %v37
  %v222 = vunpack.c.l.b16 %v38
  %v223 = vunpack.c.h.b16 %v38
  %v224 = vunpack.c.l.b16 %v39
  %v225 = vunpack.c.h.b16 %v39
  %v226 = vunpack.c.l.b16 %v40
  %v227 = vunpack.c.h.b16 %v40
  %v228 = vunpack.c.l.b16 %v41
  %v229 = vunpack.c.h.b16 %v41
  %v230 = vunpack.c.l.b16 %v42
  %v231 = vunpack.c.h.b16 %v42
  %v232 = vunpack.c.l.b16 %v43
  %v233 = vunpack.c.h.b16 %v43
  %v234 = vunpack.c.l.b16 %v44
  %v235 = vunpack.c.h.b16 %v44
  %v236 = vunpack.c.l.b16 %v45
  %v237 = vunpack.c.h.b16 %v45
  %v238 = vunpack.c.l.b16 %v46
  %v239 = vunpack.c.h.b16 %v46
  %v240 = vunpack.c.l.b16 %v47
  %v241 = vunpack.c.h.b16 %v47
  %v242 = vunpack.c.l.b16 %v48
  %v243 = vunpack.c.h.b16 %v48
  %v244 = vunpack.c.l.b16 %v49
  %v245 = vunpack.c.h.b16 %v49
  %v246 = vunpack.c.l.b16 %v50
  %v247 = vunpack.c.h.b16 %v50
  %v248 = vunpack.c.l.b16 %v51
  %v249 = vunpack.c.h.b16 %v51
  %v250 = vunpack.c.l.b16 %v52
  %v251 = vunpack.c.h.b16 %v52
  %v252 = vunpack.c.l.b16 %v53
  %v253 = vunpack.c.h.b16 %v53
  %v254 = vunpack.c.l.b16 %v54
  %v255 = vunpack.c.h.b16 %v54
  %v256 = vunpack.c.l.b16 %v55
  %v257 = vunpack.c.h.b16 %v55
  %v258 = vunpack.c.l.b16 %v56
  %v259 = vunpack.c.h.b16 %v56
  %v260 = vunpack.c.l.b16 %v57
  %v261 = vunpack.c.h.b16 %v57
  %v262 = vunpack.c.l.b16 %v58
  %v263 = vunpack.c.h.b16 %v58
  %v264 = vunpack.c.l.b16 %v59
  %v265 = vunpack.c.h.b16 %v59
  %v266 = vunpack.c.l.b16 %v60
  %v267 = vunpack.c.h.b16 %v60
  %v268 = vunpack.c.l.b16 %v61
  %v269 = vunpack.c.h.b16 %v61
  %v270 = vunpack.c.l.b16 %v62
  %v271 = vunpack.c.h.b16 %v62
  %v272 = vunpack.c.l.b16 %v63
  %v273 = vunpack.c.h.b16 %v63
  %v274 = vunpack.c.l.b16 %v64
  %v275 = vunpack.c.h.b16 %v64
  %v276 = vunpack.c.l.b16 %v65
  %v277 = vunpack.c.h.b16 %v65
  %v278 = vunpack.c.l.b16 %v66
  %v279 = vunpack.c.h.b16 %v66
  %v280 = vunpack.c.l.b16 %v67
  %v281 = vunpack.c.h.b16 %v67
  %v282 = vunpack.c.l.b16 %v68
  %v283 = vunpack.c.h.b16 %v68
  %v284 = vunpack.c.l.b16 %v69
  %v285 = vunpack.c.h.b16 %v69
  %v286 = vunpack.c.l.b16 %v70
  %v287 = vunpack.c.h.b16 %v70
  %v288 = vunpack.c.l.b16 %v71
  %v289 = vunpack.c.h.b16 %v71
  %v290 = vunpack.c.l.b16 %v72
  %v291 = vunpack.c.h.b16 %v72
  %v292 = vunpack.c.l.b16 %v73
  %v293 = vunpack.c.h.b16 %v73
  %v294 = vunpack.c.l.b16 %v74
  %v295 = vunpack.c.h.b16 %v74
  %v296 = vunpack.c.l.b16 %v75
  %v297 = vunpack.c.h.b16 %v75
  %v298 = vunpack.c.l.b16 %v76
  %v299 = vunpack.c.h.b16 %v76
  %v300 = vunpack.c.l.b16 %v77
  %v301 = vunpack.c.h.b16 %v77
  %v302 = vpack.c.b16 %v176, %v174
  %v303 = vpack.c.b16 %v177, %v175
  %v304 = vpack.c.b16 %v180, %v178
  %v305 = vpack.c.b16 %v181, %v179
  %v306 = vpack.c.b16 %v184, %v182
  %v307 = vpack.c.b16 %v185, %v183
  %v308 = vpack.c.b16 %v188, %v186
  %v309 = vpack.c.b16 %v189, %v187
  %v310 = vpack.c.b16 %v192, %v190
  %v311 = vpack.c.b16 %v193, %v191
  %v312 = vpack.c.b16 %v196, %v194
  %v313 = vpack.c.b16 %v197, %v195
  %v314 = vpack.c.b16 %v200, %v198
  %v315 = vpack.c.b16 %v201, %v199
  %v316 = vpack.c.b16 %v204, %v202
  %v317 = vpack.c.b16 %v205, %v203
  %v318 = vpack.c.b16 %v208, %v206
  %v319 = vpack.c.b16 %v209, %v207
  %v320 = vpack.c.b16 %v212, %v210
  %v321 = vpack.c.b16 %v213, %v211
  %v322 = vpack.c.b16 %v216, %v214
  %v323 = vpack.c.b16 %v217, %v215
  %v324 = vpack.c.b16 %v220, %v218
  %v325 = vpack.c.b16 %v221, %v219
  %v326 = vpack.c.b16 %v224, %v222
  %v327 = vpack.c.b16 %v225, %v223
  %v328 = vpack.c.b16 %v228, %v226
  %v329 = vpack.c.b16 %v229, %v227
  %v330 = vpack.c.b16 %v232, %v230
  %v331 = vpack.c.b16 %v233, %v231
  %v332 = vpack.c.b16 %v236, %v234
  %v333 = vpack.c.b16 %v237, %v235
  %v334 = vpack.c.b16 %v240, %v238
  %v335 = vpack.c.b16 %v241, %v239
  %v336 = vpack.c.b16 %v244, %v242
  %v337 = vpack.c.b16 %v245, %v243
  %v338 = vpack.c.b16 %v248, %v246
  %v339 = vpack.c.b16 %v249, %v247
  %v340 = vpack.c.b16 %v252, %v250
  %v341 = vpack.c.b16 %v253, %v251
  %v342 = vpack.c.b16 %v256, %v254
  %v343 = vpack.c.b16 %v257, %v255
  %v344 = vpack.c.b16 %v260, %v258
  %v345 = vpack.c.b16 %v261, %v259
  %v346 = vpack.c.b16 %v264, %v262
  %v347 = vpack.c.b16 %v265, %v263
  %v348 = vpack.c.b16 %v268, %v266
  %v349 = vpack.c.b16 %v269, %v267
  %v350 = vpack.c.b16 %v272, %v270
  %v351 = vpack.c.b16 %v273, %v271
  %v352 = vpack.c.b16 %v276, %v274
  %v353 = vpack.c.b16 %v277, %v275
  %v354 = vpack.c.b16 %v280, %v278
  %v355 = vpack.c.b16 %v281, %v279
  %v356 = vpack.c.b16 %v284, %v282
  %v357 = vpack.c.b16 %v285, %v283
  %v358 = vpack.c.b16 %v288, %v286
  %v359 = vpack.c.b16 %v289, %v287
  %v360 = vpack.c.b16 %v292, %v290
  %v361 = vpack.c.b16 %v293, %v291
  %v362 = vpack.c.b16 %v296, %v294
  %v363 = vpack.c.b16 %v297, %v295
  %v364 = vpack.c.b16 %v300, %v298
  %v365 = vpack.c.b16 %v301, %v299
  %v462 = vunpack.c.l.b16 %v78
  %v463 = vunpack.c.l.b16 %v79
  %v464 = vunpack.c.l.b16 %v80
  %v465 = vunpack.c.l.b16 %v81
  %v466 = vunpack.c.l.b16 %v82
  %v467 = vunpack.c.l.b16 %v83
  %v468 = vunpack.c.l.b16 %v84
  %v469 = vunpack.c.l.b16 %v85
  %v470 = vunpack.c.l.b16 %v86
  %v471 = vunpack.c.l.b16 %v87
  %v472 = vunpack.c.l.b16 %v88
  %v473 = vunpack.c.l.b16 %v89
  %v474 = vunpack.c.l.b16 %v90
  %v475 = vunpack.c.l.b16 %v91
  %v476 = vunpack.c.l.b16 %v92
  %v477 = vunpack.c.l.b16 %v93
  %v478 = vunpack.c.l.b16 %v94
  %v479 = vunpack.c.l.b16 %v95
  %v480 = vunpack.c.l.b16 %v96
  %v481 = vunpack.c.l.b16 %v97
  %v482 = vunpack.c.l.b16 %v98
  %v483 = vunpack.c.l.b16 %v99
  %v484 = vunpack.c.l.b16 %v100
  %v485 = vunpack.c.l.b16 %v101
  %v486 = vunpack.c.l.b16 %v102
  %v487 = vunpack.c.l.b16 %v103
  %v488 = vunpack.c.l.b16 %v104
  %v489 = vunpack.c.l.b16 %v105
  %v490 = vunpack.c.l.b16 %v106
  %v491 = vunpack.c.l.b16 %v107
  %v492 = vunpack.c.l.b16 %v108
  %v493 = vunpack.c.l.b16 %v109
  %v494 = vpack.c.b16 %v463, %v462
  %v495 = vpack.c.b16 %v465, %v464
  %v496 = vpack.c.b16 %v467, %v466
  %v497 = vpack.c.b16 %v469, %v468
  %v498 = vpack.c.b16 %v471, %v470
  %v499 = vpack.c.b16 %v473, %v472
  %v500 = vpack.c.b16 %v475, %v474
  %v501 = vpack.c.b16 %v477, %v476
  %v502 = vpack.c.b16 %v479, %v478
  %v503 = vpack.c.b16 %v481, %v480
  %v504 = vpack.c.b16 %v483, %v482
  %v505 = vpack.c.b16 %v485, %v484
  %v506 = vpack.c.b16 %v487, %v486
  %v507 = vpack.c.b16 %v489, %v488
  %v508 = vpack.c.b16 %v491, %v490
  %v509 = vpack.c.b16 %v493, %v492
  %526 = vmatprep.subr.bf16.mxu0 0
  %527 = vmatpush1.bf16.msra.mxu0 %v501
  %528 = vmatprep.subr.bf16.mxu0 0
  %529 = vmatpush1.bf16.msra.mxu0 %v500
  %530 = vmatprep.subr.bf16.mxu0 0
  %531 = vmatpush1.bf16.msra.mxu0 %v499
  %532 = vmatprep.subr.bf16.mxu0 0
  %533 = vmatpush1.bf16.msra.mxu0 %v498
  %534 = vmatprep.subr.bf16.mxu0 0
  %535 = vmatpush1.bf16.msra.mxu0 %v497
  %536 = vmatprep.subr.bf16.mxu0 0
  %537 = vmatpush1.bf16.msra.mxu0 %v496
  %538 = vmatprep.subr.bf16.mxu0 0
  %539 = vmatpush1.bf16.msra.mxu0 %v495
  %540 = vmatprep.subr.bf16.mxu0 0
  %541 = vmatpush1.bf16.msra.mxu0 %v494
  %542 = vmatprep.subr.bf16.mxu0 0
  %543 = vmatpush2.bf16.msra.mxu0 %v509
  %544 = vmatprep.subr.bf16.mxu0 0
  %545 = vmatpush2.bf16.msra.mxu0 %v508
  %546 = vmatprep.subr.bf16.mxu0 0
  %547 = vmatpush2.bf16.msra.mxu0 %v507
  %548 = vmatprep.subr.bf16.mxu0 0
  %549 = vmatpush2.bf16.msra.mxu0 %v506
  %550 = vmatprep.subr.bf16.mxu0 0
  %551 = vmatpush2.bf16.msra.mxu0 %v505
  %552 = vmatprep.subr.bf16.mxu0 0
  %553 = vmatpush2.bf16.msra.mxu0 %v504
  %554 = vmatprep.subr.bf16.mxu0 0
  %555 = vmatpush2.bf16.msra.mxu0 %v503
  %556 = vmatprep.subr.bf16.mxu0 0
  %557 = vmatpush2.bf16.msra.mxu0 %v502
  %558 = vmatprep.mubr.bf16.mxu0 %v303
  %559 = vmatmul.mubr.bf16.gmra.mxu0 %v302
  %v560 = vpop.f32.mrf.mxu0
  %v561 = vadd.f32 0.0, %v560
  %v562 = vpop.f32.mrf.mxu0
  %v563 = vpop.f32.mrf.mxu0
  %v564 = vadd.f32 0.0, %v563
  %v565 = vpop.f32.mrf.mxu0
  %566 = vmatprep.mubr.bf16.mxu0 %v305
  %567 = vmatmul.mubr.bf16.gmra.mxu0 %v304
  %v568 = vpop.f32.mrf.mxu0
  %v569 = vadd.f32 0.0, %v568
  %v570 = vpop.f32.mrf.mxu0
  %v571 = vpop.f32.mrf.mxu0
  %v572 = vadd.f32 0.0, %v571
  %v573 = vpop.f32.mrf.mxu0
  %574 = vmatprep.mubr.bf16.mxu0 %v307
  %575 = vmatmul.mubr.bf16.gmra.mxu0 %v306
  %v576 = vpop.f32.mrf.mxu0
  %v577 = vadd.f32 0.0, %v576
  %v578 = vpop.f32.mrf.mxu0
  %v579 = vpop.f32.mrf.mxu0
  %v580 = vadd.f32 0.0, %v579
  %v581 = vpop.f32.mrf.mxu0
  %582 = vmatprep.mubr.bf16.mxu0 %v309
  %583 = vmatmul.mubr.bf16.gmra.mxu0 %v308
  %v584 = vpop.f32.mrf.mxu0
  %v585 = vadd.f32 0.0, %v584
  %v586 = vpop.f32.mrf.mxu0
  %v587 = vpop.f32.mrf.mxu0
  %v588 = vadd.f32 0.0, %v587
  %v589 = vpop.f32.mrf.mxu0
  %590 = vmatprep.mubr.bf16.mxu0 %v311
  %591 = vmatmul.mubr.bf16.gmra.mxu0 %v310
  %v592 = vpop.f32.mrf.mxu0
  %v593 = vadd.f32 0.0, %v592
  %v594 = vpop.f32.mrf.mxu0
  %v595 = vpop.f32.mrf.mxu0
  %v596 = vadd.f32 0.0, %v595
  %v597 = vpop.f32.mrf.mxu0
  %598 = vmatprep.mubr.bf16.mxu0 %v313
  %599 = vmatmul.mubr.bf16.gmra.mxu0 %v312
  %v600 = vpop.f32.mrf.mxu0
  %v601 = vadd.f32 0.0, %v600
  %v602 = vpop.f32.mrf.mxu0
  %v603 = vpop.f32.mrf.mxu0
  %v604 = vadd.f32 0.0, %v603
  %v605 = vpop.f32.mrf.mxu0
  %606 = vmatprep.mubr.bf16.mxu0 %v315
  %607 = vmatmul.mubr.bf16.gmra.mxu0 %v314
  %v608 = vpop.f32.mrf.mxu0
  %v609 = vadd.f32 0.0, %v608
  %v610 = vpop.f32.mrf.mxu0
  %v611 = vpop.f32.mrf.mxu0
  %v612 = vadd.f32 0.0, %v611
  %v613 = vpop.f32.mrf.mxu0
  %614 = vmatprep.mubr.bf16.mxu0 %v317
  %615 = vmatmul.mubr.bf16.gmra.mxu0 %v316
  %v616 = vpop.f32.mrf.mxu0
  %v617 = vadd.f32 0.0, %v616
  %v618 = vpop.f32.mrf.mxu0
  %v619 = vpop.f32.mrf.mxu0
  %v620 = vadd.f32 0.0, %v619
  %v621 = vpop.f32.mrf.mxu0
  %622 = vmatprep.mubr.bf16.mxu0 %v319
  %623 = vmatmul.mubr.bf16.gmra.mxu0 %v318
  %v624 = vpop.f32.mrf.mxu0
  %v625 = vadd.f32 0.0, %v624
  %v626 = vpop.f32.mrf.mxu0
  %v627 = vpop.f32.mrf.mxu0
  %v628 = vadd.f32 0.0, %v627
  %v629 = vpop.f32.mrf.mxu0
  %630 = vmatprep.mubr.bf16.mxu0 %v321
  %631 = vmatmul.mubr.bf16.gmra.mxu0 %v320
  %v632 = vpop.f32.mrf.mxu0
  %v633 = vadd.f32 0.0, %v632
  %v634 = vpop.f32.mrf.mxu0
  %v635 = vpop.f32.mrf.mxu0
  %v636 = vadd.f32 0.0, %v635
  %v637 = vpop.f32.mrf.mxu0
  %638 = vmatprep.mubr.bf16.mxu0 %v323
  %639 = vmatmul.mubr.bf16.gmra.mxu0 %v322
  %v640 = vpop.f32.mrf.mxu0
  %v641 = vadd.f32 0.0, %v640
  %v642 = vpop.f32.mrf.mxu0
  %v643 = vpop.f32.mrf.mxu0
  %v644 = vadd.f32 0.0, %v643
  %v645 = vpop.f32.mrf.mxu0
  %646 = vmatprep.mubr.bf16.mxu0 %v325
  %647 = vmatmul.mubr.bf16.gmra.mxu0 %v324
  %v648 = vpop.f32.mrf.mxu0
  %v649 = vadd.f32 0.0, %v648
  %v650 = vpop.f32.mrf.mxu0
  %v651 = vpop.f32.mrf.mxu0
  %v652 = vadd.f32 0.0, %v651
  %v653 = vpop.f32.mrf.mxu0
  %654 = vmatprep.mubr.bf16.mxu0 %v327
  %655 = vmatmul.mubr.bf16.gmra.mxu0 %v326
  %v656 = vpop.f32.mrf.mxu0
  %v657 = vadd.f32 0.0, %v656
  %v658 = vpop.f32.mrf.mxu0
  %v659 = vpop.f32.mrf.mxu0
  %v660 = vadd.f32 0.0, %v659
  %v661 = vpop.f32.mrf.mxu0
  %662 = vmatprep.mubr.bf16.mxu0 %v329
  %663 = vmatmul.mubr.bf16.gmra.mxu0 %v328
  %v664 = vpop.f32.mrf.mxu0
  %v665 = vadd.f32 0.0, %v664
  %v666 = vpop.f32.mrf.mxu0
  %v667 = vpop.f32.mrf.mxu0
  %v668 = vadd.f32 0.0, %v667
  %v669 = vpop.f32.mrf.mxu0
  %670 = vmatprep.mubr.bf16.mxu0 %v331
  %671 = vmatmul.mubr.bf16.gmra.mxu0 %v330
  %v672 = vpop.f32.mrf.mxu0
  %v673 = vadd.f32 0.0, %v672
  %v674 = vpop.f32.mrf.mxu0
  %v675 = vpop.f32.mrf.mxu0
  %v676 = vadd.f32 0.0, %v675
  %v677 = vpop.f32.mrf.mxu0
  %678 = vmatprep.mubr.bf16.mxu0 %v333
  %679 = vmatmul.mubr.bf16.gmra.mxu0 %v332
  %v680 = vpop.f32.mrf.mxu0
  %v681 = vadd.f32 0.0, %v680
  %v682 = vpop.f32.mrf.mxu0
  %v683 = vpop.f32.mrf.mxu0
  %v684 = vadd.f32 0.0, %v683
  %v685 = vpop.f32.mrf.mxu0
  %686 = vmatprep.mubr.bf16.mxu0 %v335
  %687 = vmatmul.mubr.bf16.gmra.mxu0 %v334
  %v688 = vpop.f32.mrf.mxu0
  %v689 = vadd.f32 0.0, %v688
  %v690 = vpop.f32.mrf.mxu0
  %v691 = vpop.f32.mrf.mxu0
  %v692 = vadd.f32 0.0, %v691
  %v693 = vpop.f32.mrf.mxu0
  %694 = vmatprep.mubr.bf16.mxu0 %v337
  %695 = vmatmul.mubr.bf16.gmra.mxu0 %v336
  %v696 = vpop.f32.mrf.mxu0
  %v697 = vadd.f32 0.0, %v696
  %v698 = vpop.f32.mrf.mxu0
  %v699 = vpop.f32.mrf.mxu0
  %v700 = vadd.f32 0.0, %v699
  %v701 = vpop.f32.mrf.mxu0
  %702 = vmatprep.mubr.bf16.mxu0 %v339
  %703 = vmatmul.mubr.bf16.gmra.mxu0 %v338
  %v704 = vpop.f32.mrf.mxu0
  %v705 = vadd.f32 0.0, %v704
  %v706 = vpop.f32.mrf.mxu0
  %v707 = vpop.f32.mrf.mxu0
  %v708 = vadd.f32 0.0, %v707
  %v709 = vpop.f32.mrf.mxu0
  %710 = vmatprep.mubr.bf16.mxu0 %v341
  %711 = vmatmul.mubr.bf16.gmra.mxu0 %v340
  %v712 = vpop.f32.mrf.mxu0
  %v713 = vadd.f32 0.0, %v712
  %v714 = vpop.f32.mrf.mxu0
  %v715 = vpop.f32.mrf.mxu0
  %v716 = vadd.f32 0.0, %v715
  %v717 = vpop.f32.mrf.mxu0
  %718 = vmatprep.mubr.bf16.mxu0 %v343
  %719 = vmatmul.mubr.bf16.gmra.mxu0 %v342
  %v720 = vpop.f32.mrf.mxu0
  %v721 = vadd.f32 0.0, %v720
  %v722 = vpop.f32.mrf.mxu0
  %v723 = vpop.f32.mrf.mxu0
  %v724 = vadd.f32 0.0, %v723
  %v725 = vpop.f32.mrf.mxu0
  %726 = vmatprep.mubr.bf16.mxu0 %v345
  %727 = vmatmul.mubr.bf16.gmra.mxu0 %v344
  %v728 = vpop.f32.mrf.mxu0
  %v729 = vadd.f32 0.0, %v728
  %v730 = vpop.f32.mrf.mxu0
  %v731 = vpop.f32.mrf.mxu0
  %v732 = vadd.f32 0.0, %v731
  %v733 = vpop.f32.mrf.mxu0
  %734 = vmatprep.mubr.bf16.mxu0 %v347
  %735 = vmatmul.mubr.bf16.gmra.mxu0 %v346
  %v736 = vpop.f32.mrf.mxu0
  %v737 = vadd.f32 0.0, %v736
  %v738 = vpop.f32.mrf.mxu0
  %v739 = vpop.f32.mrf.mxu0
  %v740 = vadd.f32 0.0, %v739
  %v741 = vpop.f32.mrf.mxu0
  %742 = vmatprep.mubr.bf16.mxu0 %v349
  %743 = vmatmul.mubr.bf16.gmra.mxu0 %v348
  %v744 = vpop.f32.mrf.mxu0
  %v745 = vadd.f32 0.0, %v744
  %v746 = vpop.f32.mrf.mxu0
  %v747 = vpop.f32.mrf.mxu0
  %v748 = vadd.f32 0.0, %v747
  %v749 = vpop.f32.mrf.mxu0
  %750 = vmatprep.mubr.bf16.mxu0 %v351
  %751 = vmatmul.mubr.bf16.gmra.mxu0 %v350
  %v752 = vpop.f32.mrf.mxu0
  %v753 = vadd.f32 0.0, %v752
  %v754 = vpop.f32.mrf.mxu0
  %v755 = vpop.f32.mrf.mxu0
  %v756 = vadd.f32 0.0, %v755
  %v757 = vpop.f32.mrf.mxu0
  %758 = vmatprep.mubr.bf16.mxu0 %v353
  %759 = vmatmul.mubr.bf16.gmra.mxu0 %v352
  %v760 = vpop.f32.mrf.mxu0
  %v761 = vadd.f32 0.0, %v760
  %v762 = vpop.f32.mrf.mxu0
  %v763 = vpop.f32.mrf.mxu0
  %v764 = vadd.f32 0.0, %v763
  %v765 = vpop.f32.mrf.mxu0
  %766 = vmatprep.mubr.bf16.mxu0 %v355
  %767 = vmatmul.mubr.bf16.gmra.mxu0 %v354
  %v768 = vpop.f32.mrf.mxu0
  %v769 = vadd.f32 0.0, %v768
  %v770 = vpop.f32.mrf.mxu0
  %v771 = vpop.f32.mrf.mxu0
  %v772 = vadd.f32 0.0, %v771
  %v773 = vpop.f32.mrf.mxu0
  %774 = vmatprep.mubr.bf16.mxu0 %v357
  %775 = vmatmul.mubr.bf16.gmra.mxu0 %v356
  %v776 = vpop.f32.mrf.mxu0
  %v777 = vadd.f32 0.0, %v776
  %v778 = vpop.f32.mrf.mxu0
  %v779 = vpop.f32.mrf.mxu0
  %v780 = vadd.f32 0.0, %v779
  %v781 = vpop.f32.mrf.mxu0
  %782 = vmatprep.mubr.bf16.mxu0 %v359
  %783 = vmatmul.mubr.bf16.gmra.mxu0 %v358
  %v784 = vpop.f32.mrf.mxu0
  %v785 = vadd.f32 0.0, %v784
  %v786 = vpop.f32.mrf.mxu0
  %v787 = vpop.f32.mrf.mxu0
  %v788 = vadd.f32 0.0, %v787
  %v789 = vpop.f32.mrf.mxu0
  %790 = vmatprep.mubr.bf16.mxu0 %v361
  %791 = vmatmul.mubr.bf16.gmra.mxu0 %v360
  %v792 = vpop.f32.mrf.mxu0
  %v793 = vadd.f32 0.0, %v792
  %v794 = vpop.f32.mrf.mxu0
  %v795 = vpop.f32.mrf.mxu0
  %v796 = vadd.f32 0.0, %v795
  %v797 = vpop.f32.mrf.mxu0
  %798 = vmatprep.mubr.bf16.mxu0 %v363
  %799 = vmatmul.mubr.bf16.gmra.mxu0 %v362
  %v800 = vpop.f32.mrf.mxu0
  %v801 = vadd.f32 0.0, %v800
  %v802 = vpop.f32.mrf.mxu0
  %v803 = vpop.f32.mrf.mxu0
  %v804 = vadd.f32 0.0, %v803
  %v805 = vpop.f32.mrf.mxu0
  %806 = vmatprep.mubr.bf16.mxu0 %v365
  %807 = vmatmul.mubr.bf16.gmra.mxu0 %v364
  %v808 = vpop.f32.mrf.mxu0
  %v809 = vadd.f32 0.0, %v808
  %v810 = vpop.f32.mrf.mxu0
  %v811 = vpop.f32.mrf.mxu0
  %v812 = vadd.f32 0.0, %v811
  %v813 = vpop.f32.mrf.mxu0
  %814 = vdwg.mxu0
  %v815 = vpack.c.bf16 %v564, %v561
  %v816 = vpack.c.bf16 %v572, %v569
  %v817 = vpack.c.bf16 %v580, %v577
  %v818 = vpack.c.bf16 %v588, %v585
  %v819 = vpack.c.bf16 %v596, %v593
  %v820 = vpack.c.bf16 %v604, %v601
  %v821 = vpack.c.bf16 %v612, %v609
  %v822 = vpack.c.bf16 %v620, %v617
  %v823 = vpack.c.bf16 %v628, %v625
  %v824 = vpack.c.bf16 %v636, %v633
  %v825 = vpack.c.bf16 %v644, %v641
  %v826 = vpack.c.bf16 %v652, %v649
  %v827 = vpack.c.bf16 %v660, %v657
  %v828 = vpack.c.bf16 %v668, %v665
  %v829 = vpack.c.bf16 %v676, %v673
  %v830 = vpack.c.bf16 %v684, %v681
  %v831 = vpack.c.bf16 %v692, %v689
  %v832 = vpack.c.bf16 %v700, %v697
  %v833 = vpack.c.bf16 %v708, %v705
  %v834 = vpack.c.bf16 %v716, %v713
  %v835 = vpack.c.bf16 %v724, %v721
  %v836 = vpack.c.bf16 %v732, %v729
  %v837 = vpack.c.bf16 %v740, %v737
  %v838 = vpack.c.bf16 %v748, %v745
  %v839 = vpack.c.bf16 %v756, %v753
  %v840 = vpack.c.bf16 %v764, %v761
  %v841 = vpack.c.bf16 %v772, %v769
  %v842 = vpack.c.bf16 %v780, %v777
  %v843 = vpack.c.bf16 %v788, %v785
  %v844 = vpack.c.bf16 %v796, %v793
  %v845 = vpack.c.bf16 %v804, %v801
  %v846 = vpack.c.bf16 %v812, %v809
  %v879 = vunpack.c.l.b16 %v815
  %v880 = vunpack.c.h.b16 %v815
  %v881 = vunpack.c.l.b16 %v816
  %v882 = vunpack.c.h.b16 %v816
  %v883 = vunpack.c.l.b16 %v817
  %v884 = vunpack.c.h.b16 %v817
  %v885 = vunpack.c.l.b16 %v818
  %v886 = vunpack.c.h.b16 %v818
  %v887 = vunpack.c.l.b16 %v819
  %v888 = vunpack.c.h.b16 %v819
  %v889 = vunpack.c.l.b16 %v820
  %v890 = vunpack.c.h.b16 %v820
  %v891 = vunpack.c.l.b16 %v821
  %v892 = vunpack.c.h.b16 %v821
  %v893 = vunpack.c.l.b16 %v822
  %v894 = vunpack.c.h.b16 %v822
  %v895 = vunpack.c.l.b16 %v823
  %v896 = vunpack.c.h.b16 %v823
  %v897 = vunpack.c.l.b16 %v824
  %v898 = vunpack.c.h.b16 %v824
  %v899 = vunpack.c.l.b16 %v825
  %v900 = vunpack.c.h.b16 %v825
  %v901 = vunpack.c.l.b16 %v826
  %v902 = vunpack.c.h.b16 %v826
  %v903 = vunpack.c.l.b16 %v827
  %v904 = vunpack.c.h.b16 %v827
  %v905 = vunpack.c.l.b16 %v828
  %v906 = vunpack.c.h.b16 %v828
  %v907 = vunpack.c.l.b16 %v829
  %v908 = vunpack.c.h.b16 %v829
  %v909 = vunpack.c.l.b16 %v830
  %v910 = vunpack.c.h.b16 %v830
  %v911 = vunpack.c.l.b16 %v831
  %v912 = vunpack.c.h.b16 %v831
  %v913 = vunpack.c.l.b16 %v832
  %v914 = vunpack.c.h.b16 %v832
  %v915 = vunpack.c.l.b16 %v833
  %v916 = vunpack.c.h.b16 %v833
  %v917 = vunpack.c.l.b16 %v834
  %v918 = vunpack.c.h.b16 %v834
  %v919 = vunpack.c.l.b16 %v835
  %v920 = vunpack.c.h.b16 %v835
  %v921 = vunpack.c.l.b16 %v836
  %v922 = vunpack.c.h.b16 %v836
  %v923 = vunpack.c.l.b16 %v837
  %v924 = vunpack.c.h.b16 %v837
  %v925 = vunpack.c.l.b16 %v838
  %v926 = vunpack.c.h.b16 %v838
  %v927 = vunpack.c.l.b16 %v839
  %v928 = vunpack.c.h.b16 %v839
  %v929 = vunpack.c.l.b16 %v840
  %v930 = vunpack.c.h.b16 %v840
  %v931 = vunpack.c.l.b16 %v841
  %v932 = vunpack.c.h.b16 %v841
  %v933 = vunpack.c.l.b16 %v842
  %v934 = vunpack.c.h.b16 %v842
  %v935 = vunpack.c.l.b16 %v843
  %v936 = vunpack.c.h.b16 %v843
  %v937 = vunpack.c.l.b16 %v844
  %v938 = vunpack.c.h.b16 %v844
  %v939 = vunpack.c.l.b16 %v845
  %v940 = vunpack.c.h.b16 %v845
  %v941 = vunpack.c.l.b16 %v846
  %v942 = vunpack.c.h.b16 %v846
  %v943 = vpack.c.b16 %v879, %v879
  %v944 = vpack.c.b16 %v880, %v880
  %v945 = vpack.c.b16 %v881, %v881
  %v946 = vpack.c.b16 %v882, %v882
  %v947 = vpack.c.b16 %v883, %v883
  %v948 = vpack.c.b16 %v884, %v884
  %v949 = vpack.c.b16 %v885, %v885
  %v950 = vpack.c.b16 %v886, %v886
  %v951 = vpack.c.b16 %v887, %v887
  %v952 = vpack.c.b16 %v888, %v888
  %v953 = vpack.c.b16 %v889, %v889
  %v954 = vpack.c.b16 %v890, %v890
  %v955 = vpack.c.b16 %v891, %v891
  %v956 = vpack.c.b16 %v892, %v892
  %v957 = vpack.c.b16 %v893, %v893
  %v958 = vpack.c.b16 %v894, %v894
  %v959 = vpack.c.b16 %v895, %v895
  %v960 = vpack.c.b16 %v896, %v896
  %v961 = vpack.c.b16 %v897, %v897
  %v962 = vpack.c.b16 %v898, %v898
  %v963 = vpack.c.b16 %v899, %v899
  %v964 = vpack.c.b16 %v900, %v900
  %v965 = vpack.c.b16 %v901, %v901
  %v966 = vpack.c.b16 %v902, %v902
  %v967 = vpack.c.b16 %v903, %v903
  %v968 = vpack.c.b16 %v904, %v904
  %v969 = vpack.c.b16 %v905, %v905
  %v970 = vpack.c.b16 %v906, %v906
  %v971 = vpack.c.b16 %v907, %v907
  %v972 = vpack.c.b16 %v908, %v908
  %v973 = vpack.c.b16 %v909, %v909
  %v974 = vpack.c.b16 %v910, %v910
  %v975 = vpack.c.b16 %v911, %v911
  %v976 = vpack.c.b16 %v912, %v912
  %v977 = vpack.c.b16 %v913, %v913
  %v978 = vpack.c.b16 %v914, %v914
  %v979 = vpack.c.b16 %v915, %v915
  %v980 = vpack.c.b16 %v916, %v916
  %v981 = vpack.c.b16 %v917, %v917
  %v982 = vpack.c.b16 %v918, %v918
  %v983 = vpack.c.b16 %v919, %v919
  %v984 = vpack.c.b16 %v920, %v920
  %v985 = vpack.c.b16 %v921, %v921
  %v986 = vpack.c.b16 %v922, %v922
  %v987 = vpack.c.b16 %v923, %v923
  %v988 = vpack.c.b16 %v924, %v924
  %v989 = vpack.c.b16 %v925, %v925
  %v990 = vpack.c.b16 %v926, %v926
  %v991 = vpack.c.b16 %v927, %v927
  %v992 = vpack.c.b16 %v928, %v928
  %v993 = vpack.c.b16 %v929, %v929
  %v994 = vpack.c.b16 %v930, %v930
  %v995 = vpack.c.b16 %v931, %v931
  %v996 = vpack.c.b16 %v932, %v932
  %v997 = vpack.c.b16 %v933, %v933
  %v998 = vpack.c.b16 %v934, %v934
  %v999 = vpack.c.b16 %v935, %v935
  %v1000 = vpack.c.b16 %v936, %v936
  %v1001 = vpack.c.b16 %v937, %v937
  %v1002 = vpack.c.b16 %v938, %v938
  %v1003 = vpack.c.b16 %v939, %v939
  %v1004 = vpack.c.b16 %v940, %v940
  %v1005 = vpack.c.b16 %v941, %v941
  %v1006 = vpack.c.b16 %v942, %v942
  %1071 = vst [vmem:[%s2] sm:$0xf] %v943
  %1072 = vst [vmem:[%s2 + $0x4] sm:$0xf] %v944
  %1073 = vst [vmem:[%s2 + $0x8] sm:$0xf] %v945
  %1074 = vst [vmem:[%s2 + $0xc] sm:$0xf] %v946
  %1075 = vst [vmem:[%s2 + $0x10] sm:$0xf] %v947
  %1076 = vst [vmem:[%s2 + $0x14] sm:$0xf] %v948
  %1077 = vst [vmem:[%s2 + $0x18] sm:$0xf] %v949
  %1078 = vst [vmem:[%s2 + $0x1c] sm:$0xf] %v950
  %1079 = vst [vmem:[%s2 + $0x20] sm:$0xf] %v951
  %1080 = vst [vmem:[%s2 + $0x24] sm:$0xf] %v952
  %1081 = vst [vmem:[%s2 + $0x28] sm:$0xf] %v953
  %1082 = vst [vmem:[%s2 + $0x2c] sm:$0xf] %v954
  %1083 = vst [vmem:[%s2 + $0x30] sm:$0xf] %v955
  %1084 = vst [vmem:[%s2 + $0x34] sm:$0xf] %v956
  %1085 = vst [vmem:[%s2 + $0x38] sm:$0xf] %v957
  %1086 = vst [vmem:[%s2 + $0x3c] sm:$0xf] %v958
  %1087 = vst [vmem:[%s2 + $0x40] sm:$0xf] %v959
  %1088 = vst [vmem:[%s2 + $0x44] sm:$0xf] %v960
  %1089 = vst [vmem:[%s2 + $0x48] sm:$0xf] %v961
  %1090 = vst [vmem:[%s2 + $0x4c] sm:$0xf] %v962
  %1091 = vst [vmem:[%s2 + $0x50] sm:$0xf] %v963
  %1092 = vst [vmem:[%s2 + $0x54] sm:$0xf] %v964
  %1093 = vst [vmem:[%s2 + $0x58] sm:$0xf] %v965
  %1094 = vst [vmem:[%s2 + $0x5c] sm:$0xf] %v966
  %1095 = vst [vmem:[%s2 + $0x60] sm:$0xf] %v967
  %1096 = vst [vmem:[%s2 + $0x64] sm:$0xf] %v968
  %1097 = vst [vmem:[%s2 + $0x68] sm:$0xf] %v969
  %1098 = vst [vmem:[%s2 + $0x6c] sm:$0xf] %v970
  %1099 = vst [vmem:[%s2 + $0x70] sm:$0xf] %v971
  %1100 = vst [vmem:[%s2 + $0x74] sm:$0xf] %v972
  %1101 = vst [vmem:[%s2 + $0x78] sm:$0xf] %v973
  %1102 = vst [vmem:[%s2 + $0x7c] sm:$0xf] %v974
  %1103 = vst [vmem:[%s2 + $0x80] sm:$0xf] %v975
  %1104 = vst [vmem:[%s2 + $0x84] sm:$0xf] %v976
  %1105 = vst [vmem:[%s2 + $0x88] sm:$0xf] %v977
  %1106 = vst [vmem:[%s2 + $0x8c] sm:$0xf] %v978
  %1107 = vst [vmem:[%s2 + $0x90] sm:$0xf] %v979
  %1108 = vst [vmem:[%s2 + $0x94] sm:$0xf] %v980
  %1109 = vst [vmem:[%s2 + $0x98] sm:$0xf] %v981
  %1110 = vst [vmem:[%s2 + $0x9c] sm:$0xf] %v982
  %1111 = vst [vmem:[%s2 + $0xa0] sm:$0xf] %v983
  %1112 = vst [vmem:[%s2 + $0xa4] sm:$0xf] %v984
  %1113 = vst [vmem:[%s2 + $0xa8] sm:$0xf] %v985
  %1114 = vst [vmem:[%s2 + $0xac] sm:$0xf] %v986
  %1115 = vst [vmem:[%s2 + $0xb0] sm:$0xf] %v987
  %1116 = vst [vmem:[%s2 + $0xb4] sm:$0xf] %v988
  %1117 = vst [vmem:[%s2 + $0xb8] sm:$0xf] %v989
  %1118 = vst [vmem:[%s2 + $0xbc] sm:$0xf] %v990
  %1119 = vst [vmem:[%s2 + $0xc0] sm:$0xf] %v991
  %1120 = vst [vmem:[%s2 + $0xc4] sm:$0xf] %v992
  %1121 = vst [vmem:[%s2 + $0xc8] sm:$0xf] %v993
  %1122 = vst [vmem:[%s2 + $0xcc] sm:$0xf] %v994
  %1123 = vst [vmem:[%s2 + $0xd0] sm:$0xf] %v995
  %1124 = vst [vmem:[%s2 + $0xd4] sm:$0xf] %v996
  %1125 = vst [vmem:[%s2 + $0xd8] sm:$0xf] %v997
  %1126 = vst [vmem:[%s2 + $0xdc] sm:$0xf] %v998
  %1127 = vst [vmem:[%s2 + $0xe0] sm:$0xf] %v999
  %1128 = vst [vmem:[%s2 + $0xe4] sm:$0xf] %v1000
  %1129 = vst [vmem:[%s2 + $0xe8] sm:$0xf] %v1001
  %1130 = vst [vmem:[%s2 + $0xec] sm:$0xf] %v1002
  %1131 = vst [vmem:[%s2 + $0xf0] sm:$0xf] %v1003
  %1132 = vst [vmem:[%s2 + $0xf4] sm:$0xf] %v1004
  %1133 = vst [vmem:[%s2 + $0xf8] sm:$0xf] %v1005
  %1134 = vst [vmem:[%s2 + $0xfc] sm:$0xf] %v1006
  %v1135 = vadd.f32 %v561, %v564
  %v1136 = vadd.f32 %v1135, %v569
  %v1137 = vadd.f32 %v1136, %v572
  %v1138 = vadd.f32 %v1137, %v577
  %v1139 = vadd.f32 %v1138, %v580
  %v1140 = vadd.f32 %v1139, %v585
  %v1141 = vadd.f32 %v1140, %v588
  %v1142 = vadd.f32 %v1141, %v593
  %v1143 = vadd.f32 %v1142, %v596
  %v1144 = vadd.f32 %v1143, %v601
  %v1145 = vadd.f32 %v1144, %v604
  %v1146 = vadd.f32 %v1145, %v609
  %v1147 = vadd.f32 %v1146, %v612
  %v1148 = vadd.f32 %v1147, %v617
  %v1149 = vadd.f32 %v1148, %v620
  %v1150 = vadd.f32 %v1149, %v625
  %v1151 = vadd.f32 %v1150, %v628
  %v1152 = vadd.f32 %v1151, %v633
  %v1153 = vadd.f32 %v1152, %v636
  %v1154 = vadd.f32 %v1153, %v641
  %v1155 = vadd.f32 %v1154, %v644
  %v1156 = vadd.f32 %v1155, %v649
  %v1157 = vadd.f32 %v1156, %v652
  %v1158 = vadd.f32 %v1157, %v657
  %v1159 = vadd.f32 %v1158, %v660
  %v1160 = vadd.f32 %v1159, %v665
  %v1161 = vadd.f32 %v1160, %v668
  %v1162 = vadd.f32 %v1161, %v673
  %v1163 = vadd.f32 %v1162, %v676
  %v1164 = vadd.f32 %v1163, %v681
  %v1165 = vadd.f32 %v1164, %v684
  %v1166 = vadd.f32 %v1165, %v689
  %v1167 = vadd.f32 %v1166, %v692
  %v1168 = vadd.f32 %v1167, %v697
  %v1169 = vadd.f32 %v1168, %v700
  %v1170 = vadd.f32 %v1169, %v705
  %v1171 = vadd.f32 %v1170, %v708
  %v1172 = vadd.f32 %v1171, %v713
  %v1173 = vadd.f32 %v1172, %v716
  %v1174 = vadd.f32 %v1173, %v721
  %v1175 = vadd.f32 %v1174, %v724
  %v1176 = vadd.f32 %v1175, %v729
  %v1177 = vadd.f32 %v1176, %v732
  %v1178 = vadd.f32 %v1177, %v737
  %v1179 = vadd.f32 %v1178, %v740
  %v1180 = vadd.f32 %v1179, %v745
  %v1181 = vadd.f32 %v1180, %v748
  %v1182 = vadd.f32 %v1181, %v753
  %v1183 = vadd.f32 %v1182, %v756
  %v1184 = vadd.f32 %v1183, %v761
  %v1185 = vadd.f32 %v1184, %v764
  %v1186 = vadd.f32 %v1185, %v769
  %v1187 = vadd.f32 %v1186, %v772
  %v1188 = vadd.f32 %v1187, %v777
  %v1189 = vadd.f32 %v1188, %v780
  %v1190 = vadd.f32 %v1189, %v785
  %v1191 = vadd.f32 %v1190, %v788
  %v1192 = vadd.f32 %v1191, %v793
  %v1193 = vadd.f32 %v1192, %v796
  %v1194 = vadd.f32 %v1193, %v801
  %v1195 = vadd.f32 %v1194, %v804
  %v1196 = vadd.f32 %v1195, %v809
  %v1197 = vadd.f32 %v1196, %v812
  %v1198 = vrot.slane %v1197, 4
  %v1199 = vadd.f32 %v1197, %v1198
  %v1200 = vrot.slane %v1199, 2
  %v1201 = vadd.f32 %v1199, %v1200
  %v1202 = vrot.slane %v1201, 1
  %v1203 = vadd.f32 %v1201, %v1202
  %v1204 = vmul.f32 %v561, %v561
  %v1205 = vmul.f32 %v564, %v564
  %v1206 = vmul.f32 %v569, %v569
  %v1207 = vmul.f32 %v572, %v572
  %v1208 = vmul.f32 %v577, %v577
  %v1209 = vmul.f32 %v580, %v580
  %v1210 = vmul.f32 %v585, %v585
  %v1211 = vmul.f32 %v588, %v588
  %v1212 = vmul.f32 %v593, %v593
  %v1213 = vmul.f32 %v596, %v596
  %v1214 = vmul.f32 %v601, %v601
  %v1215 = vmul.f32 %v604, %v604
  %v1216 = vmul.f32 %v609, %v609
  %v1217 = vmul.f32 %v612, %v612
  %v1218 = vmul.f32 %v617, %v617
  %v1219 = vmul.f32 %v620, %v620
  %v1220 = vmul.f32 %v625, %v625
  %v1221 = vmul.f32 %v628, %v628
  %v1222 = vmul.f32 %v633, %v633
  %v1223 = vmul.f32 %v636, %v636
  %v1224 = vmul.f32 %v641, %v641
  %v1225 = vmul.f32 %v644, %v644
  %v1226 = vmul.f32 %v649, %v649
  %v1227 = vmul.f32 %v652, %v652
  %v1228 = vmul.f32 %v657, %v657
  %v1229 = vmul.f32 %v660, %v660
  %v1230 = vmul.f32 %v665, %v665
  %v1231 = vmul.f32 %v668, %v668
  %v1232 = vmul.f32 %v673, %v673
  %v1233 = vmul.f32 %v676, %v676
  %v1234 = vmul.f32 %v681, %v681
  %v1235 = vmul.f32 %v684, %v684
  %v1236 = vmul.f32 %v689, %v689
  %v1237 = vmul.f32 %v692, %v692
  %v1238 = vmul.f32 %v697, %v697
  %v1239 = vmul.f32 %v700, %v700
  %v1240 = vmul.f32 %v705, %v705
  %v1241 = vmul.f32 %v708, %v708
  %v1242 = vmul.f32 %v713, %v713
  %v1243 = vmul.f32 %v716, %v716
  %v1244 = vmul.f32 %v721, %v721
  %v1245 = vmul.f32 %v724, %v724
  %v1246 = vmul.f32 %v729, %v729
  %v1247 = vmul.f32 %v732, %v732
  %v1248 = vmul.f32 %v737, %v737
  %v1249 = vmul.f32 %v740, %v740
  %v1250 = vmul.f32 %v745, %v745
  %v1251 = vmul.f32 %v748, %v748
  %v1252 = vmul.f32 %v753, %v753
  %v1253 = vmul.f32 %v756, %v756
  %v1254 = vmul.f32 %v761, %v761
  %v1255 = vmul.f32 %v764, %v764
  %v1256 = vmul.f32 %v769, %v769
  %v1257 = vmul.f32 %v772, %v772
  %v1258 = vmul.f32 %v777, %v777
  %v1259 = vmul.f32 %v780, %v780
  %v1260 = vmul.f32 %v785, %v785
  %v1261 = vmul.f32 %v788, %v788
  %v1262 = vmul.f32 %v793, %v793
  %v1263 = vmul.f32 %v796, %v796
  %v1264 = vmul.f32 %v801, %v801
  %v1265 = vmul.f32 %v804, %v804
  %v1266 = vmul.f32 %v809, %v809
  %v1267 = vmul.f32 %v812, %v812
  %v1268 = vadd.f32 %v1204, %v1205
  %v1269 = vadd.f32 %v1268, %v1206
  %v1270 = vadd.f32 %v1269, %v1207
  %v1271 = vadd.f32 %v1270, %v1208
  %v1272 = vadd.f32 %v1271, %v1209
  %v1273 = vadd.f32 %v1272, %v1210
  %v1274 = vadd.f32 %v1273, %v1211
  %v1275 = vadd.f32 %v1274, %v1212
  %v1276 = vadd.f32 %v1275, %v1213
  %v1277 = vadd.f32 %v1276, %v1214
  %v1278 = vadd.f32 %v1277, %v1215
  %v1279 = vadd.f32 %v1278, %v1216
  %v1280 = vadd.f32 %v1279, %v1217
  %v1281 = vadd.f32 %v1280, %v1218
  %v1282 = vadd.f32 %v1281, %v1219
  %v1283 = vadd.f32 %v1282, %v1220
  %v1284 = vadd.f32 %v1283, %v1221
  %v1285 = vadd.f32 %v1284, %v1222
  %v1286 = vadd.f32 %v1285, %v1223
  %v1287 = vadd.f32 %v1286, %v1224
  %v1288 = vadd.f32 %v1287, %v1225
  %v1289 = vadd.f32 %v1288, %v1226
  %v1290 = vadd.f32 %v1289, %v1227
  %v1291 = vadd.f32 %v1290, %v1228
  %v1292 = vadd.f32 %v1291, %v1229
  %v1293 = vadd.f32 %v1292, %v1230
  %v1294 = vadd.f32 %v1293, %v1231
  %v1295 = vadd.f32 %v1294, %v1232
  %v1296 = vadd.f32 %v1295, %v1233
  %v1297 = vadd.f32 %v1296, %v1234
  %v1298 = vadd.f32 %v1297, %v1235
  %v1299 = vadd.f32 %v1298, %v1236
  %v1300 = vadd.f32 %v1299, %v1237
  %v1301 = vadd.f32 %v1300, %v1238
  %v1302 = vadd.f32 %v1301, %v1239
  %v1303 = vadd.f32 %v1302, %v1240
  %v1304 = vadd.f32 %v1303, %v1241
  %v1305 = vadd.f32 %v1304, %v1242
  %v1306 = vadd.f32 %v1305, %v1243
  %v1307 = vadd.f32 %v1306, %v1244
  %v1308 = vadd.f32 %v1307, %v1245
  %v1309 = vadd.f32 %v1308, %v1246
  %v1310 = vadd.f32 %v1309, %v1247
  %v1311 = vadd.f32 %v1310, %v1248
  %v1312 = vadd.f32 %v1311, %v1249
  %v1313 = vadd.f32 %v1312, %v1250
  %v1314 = vadd.f32 %v1313, %v1251
  %v1315 = vadd.f32 %v1314, %v1252
  %v1316 = vadd.f32 %v1315, %v1253
  %v1317 = vadd.f32 %v1316, %v1254
  %v1318 = vadd.f32 %v1317, %v1255
  %v1319 = vadd.f32 %v1318, %v1256
  %v1320 = vadd.f32 %v1319, %v1257
  %v1321 = vadd.f32 %v1320, %v1258
  %v1322 = vadd.f32 %v1321, %v1259
  %v1323 = vadd.f32 %v1322, %v1260
  %v1324 = vadd.f32 %v1323, %v1261
  %v1325 = vadd.f32 %v1324, %v1262
  %v1326 = vadd.f32 %v1325, %v1263
  %v1327 = vadd.f32 %v1326, %v1264
  %v1328 = vadd.f32 %v1327, %v1265
  %v1329 = vadd.f32 %v1328, %v1266
  %v1330 = vadd.f32 %v1329, %v1267
  %v1331 = vrot.slane %v1330, 4
  %v1332 = vadd.f32 %v1330, %v1331
  %v1333 = vrot.slane %v1332, 2
  %v1334 = vadd.f32 %v1332, %v1333
  %v1335 = vrot.slane %v1334, 1
  %v1336 = vadd.f32 %v1334, %v1335
  %vm1337 = vcmask 1040384
  %v1338 = vsel %vm1337, %v1203, %v1336
  %1339 = vst [vmem:[%s3] sm:$0x3] %v1338
  // Predicated region
  $region10: #{generator_forward.8} parent=0 // pred_check
    _
  $region11: #{generator_forward.8} parent=0 // pred_check_branch
    %1341 = sbr.rel (0) target = $region13
  $region12: #{generator_forward.8} parent=0 // pred_region
    _
  $region13: #{generator_forward.8} parent=0 // pred_fallthru
    _
  // Predicated region
  $region14: #{generator_forward.8} parent=0 // pred_check
    _
  $region15: #{generator_forward.8} parent=0 // pred_check_branch
    %1343 = sbr.rel (0) target = $region17
  $region16: #{generator_forward.8} parent=0 // pred_region
    _
  $region17: #{generator_forward.8} parent=0 // pred_fallthru
    _
  // Predicated region
  $region18: #{generator_forward.8} parent=0 // pred_check
    _
  $region19: #{generator_forward.8} parent=0 // pred_check_branch
    %1345 = sbr.rel (0) target = $region21
  $region20: #{generator_forward.8} parent=0 // pred_region
    _
  $region21: #{generator_forward.8} parent=0 // pred_fallthru
    _
  // Predicated region
  $region22: #{generator_forward.8} parent=0 // pred_check
    _
  $region23: #{generator_forward.8} parent=0 // pred_check_branch
    %1347 = sbr.rel (0) target = $region25
  $region24: #{generator_forward.8} parent=0 // pred_region
    _
  $region25: #{generator_forward.8} parent=0 // pred_fallthru
    _

// kernel: generator_forward.9
$region0: #{generator_forward.9}
  #allocation0 [shape = 'u32[]', space=smem, size = 0x4, offset = 0x4, fixed_abs, tag = 'smem constant byte address 0x4 - core index']
  #allocation1 [shape = 'u32[144,128]{1,0:T(1,128)}', space=vmem, size = 0x12000, scoped, tag = 'internal scratch']
  %s0 = inlined_call_operand.vmem [shape: bf16[2048,128], index: 0, kind: input, shape index: {}]
  %s1 = inlined_call_operand.vmem [shape: bf16[128,128], index: 1, kind: input, shape index: {}]
  %s2 = inlined_call_operand.vmem [shape: bf16[2048,128], index: 2, kind: output, shape index: {}]
  %s3 = sld [smem:[#allocation0]]
  $region41: #{generator_forward.9} parent=0
    _
  %s5 = ssub.s32 1, %s3
  %s6 = scalar_select 0, %s5, %s3
  loop: start=0, step=1, limit=4
  $region2: #{generator_forward.9} parent=0 // loop_pre_header
    _
  $region3: #{generator_forward.9} parent=0 // loop_header
    %s8 = sphi 0, %s12
    %p9 = scmp.ge.s32.totalorder %s8, 4
    %s18 = sphi 0, %s20
    %s21 = sphi 0, %s18
    %s22 = sphi 0, %s21
    %s38 = sphi 0, %s22
    %s42 = sphi 0, %s42
    %s44 = sphi 0, %s42
    %s45 = sphi 0, %s44
    %s59 = sphi 0, %s45
    %s65 = sphi 0, %s67
    %s68 = sphi 0, %s65
    %s69 = sphi 0, %s68
    %s85 = sphi 0, %s69
  $region4: #{generator_forward.9} parent=0 // loop_header_branch
    %11 = sbr.rel (%p9) target = $region8
  $region5: #{generator_forward.9} parent=0 // loop_body
    %s13 = ssub.s32 %s8, 1
    %s14 = ssub.s32 %s8, 2
    %s15 = sadd.s32 %s8, 1
    %s16 = ssub.s32 %s8, %s15
    %p17 = scmp.eq.s32.totalorder %s16, 0
    %s19 = sadd.s32 %s18, 1
    %s20 = scalar_select %p17, %s18, %s19
    %p23 = pneg %p17
    %p24 = scmp.eq.s32.totalorder %s8, 1
    %p25 = por %p23, %p24
    %p26 = scmp.ne.s32.totalorder %s18, %s21
    %p27 = scmp.eq.s32.totalorder %s8, 0
    %p28 = por %p26, %p27
    %p29 = scmp.ne.s32.totalorder %s18, %s21
    %p30 = scmp.eq.s32.totalorder %s13, 1
    %p31 = por %p29, %p30
    %p32 = scmp.ne.s32.totalorder %s21, %s22
    %p33 = scmp.eq.s32.totalorder %s13, 0
    %p34 = por %p32, %p33
    %p35 = scmp.ne.s32.totalorder %s21, %s22
    %p36 = scmp.eq.s32.totalorder %s14, 1
    %p37 = por %p35, %p36
    %p39 = scmp.ne.s32.totalorder %s22, %s38
    %p40 = scmp.eq.s32.totalorder %s14, 0
    %p41 = por %p39, %p40
    %s43 = sadd.s32 %s42, 1
    %p46 = scmp.eq.s32.totalorder %s8, 1
    %p47 = scmp.ne.s32.totalorder %s42, %s44
    %p48 = scmp.eq.s32.totalorder %s8, 0
    %p49 = por %p47, %p48
    %p50 = scmp.ne.s32.totalorder %s42, %s44
    %p51 = scmp.eq.s32.totalorder %s13, 1
    %p52 = por %p50, %p51
    %p53 = scmp.ne.s32.totalorder %s44, %s45
    %p54 = scmp.eq.s32.totalorder %s13, 0
    %p55 = por %p53, %p54
    %p56 = scmp.ne.s32.totalorder %s44, %s45
    %p57 = scmp.eq.s32.totalorder %s14, 1
    %p58 = por %p56, %p57
    %p60 = scmp.ne.s32.totalorder %s45, %s59
    %p61 = scmp.eq.s32.totalorder %s14, 0
    %p62 = por %p60, %p61
    %s63 = ssub.s32 %s8, %s15
    %p64 = scmp.eq.s32.totalorder %s63, 0
    %s66 = sadd.s32 %s65, 1
    %s67 = scalar_select %p64, %s65, %s66
    %p70 = pneg %p64
    %p71 = scmp.eq.s32.totalorder %s8, 1
    %p72 = por %p70, %p71
    %p73 = scmp.ne.s32.totalorder %s65, %s68
    %p74 = scmp.eq.s32.totalorder %s8, 0
    %p75 = por %p73, %p74
    %p76 = scmp.ne.s32.totalorder %s65, %s68
    %p77 = scmp.eq.s32.totalorder %s13, 1
    %p78 = por %p76, %p77
    %p79 = scmp.ne.s32.totalorder %s68, %s69
    %p80 = scmp.eq.s32.totalorder %s13, 0
    %p81 = por %p79, %p80
    %p82 = scmp.ne.s32.totalorder %s68, %s69
    %p83 = scmp.eq.s32.totalorder %s14, 1
    %p84 = por %p82, %p83
    %p86 = scmp.ne.s32.totalorder %s69, %s85
    %p87 = scmp.eq.s32.totalorder %s14, 0
    %p88 = por %p86, %p87
    %p89 = scmp.le.s32.totalorder 1, %s8
    %p90 = scmp.lt.s32.totalorder %s8, 3
    %p91 = pnand %p89, %p90
    %p92 = pneg %p91
    // Predicated region
    $region9: #{generator_forward.9} parent=5 // pred_check
      _
    $region10: #{generator_forward.9} parent=5 // pred_check_branch
      %94 = sbr.rel (%p91) target = $region12
    $region11: #{generator_forward.9} parent=5 // pred_region
      %s95 = ssub.s32 %s8, 1
      // Predicated region
      $region13: #{generator_forward.9} parent=11 // pred_check
        %p96 = pneg %p55
      $region14: #{generator_forward.9} parent=11 // pred_check_branch
        %98 = sbr.rel (%p96) target = $region16
      $region15: #{generator_forward.9} parent=11 // pred_region
        _
      $region16: #{generator_forward.9} parent=11 // pred_fallthru
        _
    $region12: #{generator_forward.9} parent=5 // pred_fallthru
      _
    %p99 = scmp.lt.s32.totalorder %s8, 2
    // Predicated region
    $region17: #{generator_forward.9} parent=5 // pred_check
      %p100 = pneg %p99
    $region18: #{generator_forward.9} parent=5 // pred_check_branch
      %102 = sbr.rel (%p100) target = $region20
    $region19: #{generator_forward.9} parent=5 // pred_region
      // Predicated region
      $region21: #{generator_forward.9} parent=19 // pred_check
        %p103 = pneg %p28
      $region22: #{generator_forward.9} parent=19 // pred_check_branch
        %105 = sbr.rel (%p103) target = $region24
      $region23: #{generator_forward.9} parent=19 // pred_region
        %s106 = smul.u32 128, %s8
        %p107 = scmp.lt.s32.totalorder %s106, 255
        %s108 = scalar_select %p107, %s106, 255
        %s109 = smul.addr %s108, 4
        %s110 = scalar_lea.vmem %s0, %s109
        %s111 = smul.u32 128, %s8
      $region24: #{generator_forward.9} parent=19 // pred_fallthru
        _
    $region20: #{generator_forward.9} parent=5 // pred_fallthru
      _
    %p112 = scmp.le.s32.totalorder 1, %s8
    %p113 = scmp.lt.s32.totalorder %s8, 3
    %p114 = pnand %p112, %p113
    %p115 = pneg %p114
    // Predicated region
    $region25: #{generator_forward.9} parent=5 // pred_check
      _
    $region26: #{generator_forward.9} parent=5 // pred_check_branch
      %117 = sbr.rel (%p114) target = $region28
    $region27: #{generator_forward.9} parent=5 // pred_region
      %s118 = ssub.s32 %s8, 1
      %s119 = smul.u32 128, %s13
      %p120 = scmp.lt.s32.totalorder %s119, 255
      %s121 = scalar_select %p120, %s119, 255
      %s122 = smul.addr %s121, 4
      %s123 = scalar_lea.vmem %s0, %s122
      %p124 = pneg %p34
      %p125 = pneg %p31
      %p126 = pneg %p55
      %p127 = pneg %p52
      %p128 = pneg %p81
      %p129 = pneg %p78
      %s130 = smul.u32 128, %s13
      %p131 = scmp.lt.s32.totalorder %s130, 255
      %s132 = scalar_select %p131, %s130, 255
      %s133 = smul.addr %s132, 4
      %s134 = scalar_lea.vmem %s2, %s133
      %s135 = smul.u32 128, %s13
      %p136 = scmp.lt.s32.totalorder %s135, 255
      %s137 = scalar_select %p136, %s135, 255
      %s138 = smul.addr %s137, 4
      %s139 = scalar_lea.vmem %s0, %s138
      %s140 = smul.u32 128, %s13
      %s141 = smul.u32 128, %s13
      %p142 = scmp.lt.s32.totalorder %s141, 255
      %s143 = scalar_select %p142, %s141, 255
      %s144 = smul.addr %s143, 4
      %s145 = scalar_lea.vmem %s2, %s144
      %s146 = smul.u32 128, %s13
      %v148 = vld [vmem:[%s139] sm:$0xf]
      %v149 = vld [vmem:[%s139 + $0x4] sm:$0xf]
      %v150 = vld [vmem:[%s139 + $0x8] sm:$0xf]
      %v151 = vld [vmem:[%s139 + $0xc] sm:$0xf]
      %v152 = vld [vmem:[%s139 + $0x10] sm:$0xf]
      %v153 = vld [vmem:[%s139 + $0x14] sm:$0xf]
      %v154 = vld [vmem:[%s139 + $0x18] sm:$0xf]
      %v155 = vld [vmem:[%s139 + $0x1c] sm:$0xf]
      %v156 = vld [vmem:[%s139 + $0x20] sm:$0xf]
      %v157 = vld [vmem:[%s139 + $0x24] sm:$0xf]
      %v158 = vld [vmem:[%s139 + $0x28] sm:$0xf]
      %v159 = vld [vmem:[%s139 + $0x2c] sm:$0xf]
      %v160 = vld [vmem:[%s139 + $0x30] sm:$0xf]
      %v161 = vld [vmem:[%s139 + $0x34] sm:$0xf]
      %v162 = vld [vmem:[%s139 + $0x38] sm:$0xf]
      %v163 = vld [vmem:[%s139 + $0x3c] sm:$0xf]
      %v164 = vld [vmem:[%s139 + $0x40] sm:$0xf]
      %v165 = vld [vmem:[%s139 + $0x44] sm:$0xf]
      %v166 = vld [vmem:[%s139 + $0x48] sm:$0xf]
      %v167 = vld [vmem:[%s139 + $0x4c] sm:$0xf]
      %v168 = vld [vmem:[%s139 + $0x50] sm:$0xf]
      %v169 = vld [vmem:[%s139 + $0x54] sm:$0xf]
      %v170 = vld [vmem:[%s139 + $0x58] sm:$0xf]
      %v171 = vld [vmem:[%s139 + $0x5c] sm:$0xf]
      %v172 = vld [vmem:[%s139 + $0x60] sm:$0xf]
      %v173 = vld [vmem:[%s139 + $0x64] sm:$0xf]
      %v174 = vld [vmem:[%s139 + $0x68] sm:$0xf]
      %v175 = vld [vmem:[%s139 + $0x6c] sm:$0xf]
      %v176 = vld [vmem:[%s139 + $0x70] sm:$0xf]
      %v177 = vld [vmem:[%s139 + $0x74] sm:$0xf]
      %v178 = vld [vmem:[%s139 + $0x78] sm:$0xf]
      %v179 = vld [vmem:[%s139 + $0x7c] sm:$0xf]
      %v180 = vld [vmem:[%s139 + $0x80] sm:$0xf]
      %v181 = vld [vmem:[%s139 + $0x84] sm:$0xf]
      %v182 = vld [vmem:[%s139 + $0x88] sm:$0xf]
      %v183 = vld [vmem:[%s139 + $0x8c] sm:$0xf]
      %v184 = vld [vmem:[%s139 + $0x90] sm:$0xf]
      %v185 = vld [vmem:[%s139 + $0x94] sm:$0xf]
      %v186 = vld [vmem:[%s139 + $0x98] sm:$0xf]
      %v187 = vld [vmem:[%s139 + $0x9c] sm:$0xf]
      %v188 = vld [vmem:[%s139 + $0xa0] sm:$0xf]
      %v189 = vld [vmem:[%s139 + $0xa4] sm:$0xf]
      %v190 = vld [vmem:[%s139 + $0xa8] sm:$0xf]
      %v191 = vld [vmem:[%s139 + $0xac] sm:$0xf]
      %v192 = vld [vmem:[%s139 + $0xb0] sm:$0xf]
      %v193 = vld [vmem:[%s139 + $0xb4] sm:$0xf]
      %v194 = vld [vmem:[%s139 + $0xb8] sm:$0xf]
      %v195 = vld [vmem:[%s139 + $0xbc] sm:$0xf]
      %v196 = vld [vmem:[%s139 + $0xc0] sm:$0xf]
      %v197 = vld [vmem:[%s139 + $0xc4] sm:$0xf]
      %v198 = vld [vmem:[%s139 + $0xc8] sm:$0xf]
      %v199 = vld [vmem:[%s139 + $0xcc] sm:$0xf]
      %v200 = vld [vmem:[%s139 + $0xd0] sm:$0xf]
      %v201 = vld [vmem:[%s139 + $0xd4] sm:$0xf]
      %v202 = vld [vmem:[%s139 + $0xd8] sm:$0xf]
      %v203 = vld [vmem:[%s139 + $0xdc] sm:$0xf]
      %v204 = vld [vmem:[%s139 + $0xe0] sm:$0xf]
      %v205 = vld [vmem:[%s139 + $0xe4] sm:$0xf]
      %v206 = vld [vmem:[%s139 + $0xe8] sm:$0xf]
      %v207 = vld [vmem:[%s139 + $0xec] sm:$0xf]
      %v208 = vld [vmem:[%s139 + $0xf0] sm:$0xf]
      %v209 = vld [vmem:[%s139 + $0xf4] sm:$0xf]
      %v210 = vld [vmem:[%s139 + $0xf8] sm:$0xf]
      %v211 = vld [vmem:[%s139 + $0xfc] sm:$0xf]
      %v212 = vld [vmem:[%s139 + $0x100] sm:$0xf]
      %v213 = vld [vmem:[%s139 + $0x104] sm:$0xf]
      %v214 = vld [vmem:[%s139 + $0x108] sm:$0xf]
      %v215 = vld [vmem:[%s139 + $0x10c] sm:$0xf]
      %v216 = vld [vmem:[%s139 + $0x110] sm:$0xf]
      %v217 = vld [vmem:[%s139 + $0x114] sm:$0xf]
      %v218 = vld [vmem:[%s139 + $0x118] sm:$0xf]
      %v219 = vld [vmem:[%s139 + $0x11c] sm:$0xf]
      %v220 = vld [vmem:[%s139 + $0x120] sm:$0xf]
      %v221 = vld [vmem:[%s139 + $0x124] sm:$0xf]
      %v222 = vld [vmem:[%s139 + $0x128] sm:$0xf]
      %v223 = vld [vmem:[%s139 + $0x12c] sm:$0xf]
      %v224 = vld [vmem:[%s139 + $0x130] sm:$0xf]
      %v225 = vld [vmem:[%s139 + $0x134] sm:$0xf]
      %v226 = vld [vmem:[%s139 + $0x138] sm:$0xf]
      %v227 = vld [vmem:[%s139 + $0x13c] sm:$0xf]
      %v228 = vld [vmem:[%s139 + $0x140] sm:$0xf]
      %v229 = vld [vmem:[%s139 + $0x144] sm:$0xf]
      %v230 = vld [vmem:[%s139 + $0x148] sm:$0xf]
      %v231 = vld [vmem:[%s139 + $0x14c] sm:$0xf]
      %v232 = vld [vmem:[%s139 + $0x150] sm:$0xf]
      %v233 = vld [vmem:[%s139 + $0x154] sm:$0xf]
      %v234 = vld [vmem:[%s139 + $0x158] sm:$0xf]
      %v235 = vld [vmem:[%s139 + $0x15c] sm:$0xf]
      %v236 = vld [vmem:[%s139 + $0x160] sm:$0xf]
      %v237 = vld [vmem:[%s139 + $0x164] sm:$0xf]
      %v238 = vld [vmem:[%s139 + $0x168] sm:$0xf]
      %v239 = vld [vmem:[%s139 + $0x16c] sm:$0xf]
      %v240 = vld [vmem:[%s139 + $0x170] sm:$0xf]
      %v241 = vld [vmem:[%s139 + $0x174] sm:$0xf]
      %v242 = vld [vmem:[%s139 + $0x178] sm:$0xf]
      %v243 = vld [vmem:[%s139 + $0x17c] sm:$0xf]
      %v244 = vld [vmem:[%s139 + $0x180] sm:$0xf]
      %v245 = vld [vmem:[%s139 + $0x184] sm:$0xf]
      %v246 = vld [vmem:[%s139 + $0x188] sm:$0xf]
      %v247 = vld [vmem:[%s139 + $0x18c] sm:$0xf]
      %v248 = vld [vmem:[%s139 + $0x190] sm:$0xf]
      %v249 = vld [vmem:[%s139 + $0x194] sm:$0xf]
      %v250 = vld [vmem:[%s139 + $0x198] sm:$0xf]
      %v251 = vld [vmem:[%s139 + $0x19c] sm:$0xf]
      %v252 = vld [vmem:[%s139 + $0x1a0] sm:$0xf]
      %v253 = vld [vmem:[%s139 + $0x1a4] sm:$0xf]
      %v254 = vld [vmem:[%s139 + $0x1a8] sm:$0xf]
      %v255 = vld [vmem:[%s139 + $0x1ac] sm:$0xf]
      %v256 = vld [vmem:[%s139 + $0x1b0] sm:$0xf]
      %v257 = vld [vmem:[%s139 + $0x1b4] sm:$0xf]
      %v258 = vld [vmem:[%s139 + $0x1b8] sm:$0xf]
      %v259 = vld [vmem:[%s139 + $0x1bc] sm:$0xf]
      %v260 = vld [vmem:[%s139 + $0x1c0] sm:$0xf]
      %v261 = vld [vmem:[%s139 + $0x1c4] sm:$0xf]
      %v262 = vld [vmem:[%s139 + $0x1c8] sm:$0xf]
      %v263 = vld [vmem:[%s139 + $0x1cc] sm:$0xf]
      %v264 = vld [vmem:[%s139 + $0x1d0] sm:$0xf]
      %v265 = vld [vmem:[%s139 + $0x1d4] sm:$0xf]
      %v266 = vld [vmem:[%s139 + $0x1d8] sm:$0xf]
      %v267 = vld [vmem:[%s139 + $0x1dc] sm:$0xf]
      %v268 = vld [vmem:[%s139 + $0x1e0] sm:$0xf]
      %v269 = vld [vmem:[%s139 + $0x1e4] sm:$0xf]
      %v270 = vld [vmem:[%s139 + $0x1e8] sm:$0xf]
      %v271 = vld [vmem:[%s139 + $0x1ec] sm:$0xf]
      %v272 = vld [vmem:[%s139 + $0x1f0] sm:$0xf]
      %v273 = vld [vmem:[%s139 + $0x1f4] sm:$0xf]
      %v274 = vld [vmem:[%s139 + $0x1f8] sm:$0xf]
      %v275 = vld [vmem:[%s139 + $0x1fc] sm:$0xf]
      %v276 = vld [vmem:[%s1] sm:$0xf]
      %v277 = vld [vmem:[%s1 + $0x4] sm:$0xf]
      %v278 = vld [vmem:[%s1 + $0x8] sm:$0xf]
      %v279 = vld [vmem:[%s1 + $0xc] sm:$0xf]
      %v280 = vld [vmem:[%s1 + $0x10] sm:$0xf]
      %v281 = vld [vmem:[%s1 + $0x14] sm:$0xf]
      %v282 = vld [vmem:[%s1 + $0x18] sm:$0xf]
      %v283 = vld [vmem:[%s1 + $0x1c] sm:$0xf]
      %v284 = vld [vmem:[%s1 + $0x20] sm:$0xf]
      %v285 = vld [vmem:[%s1 + $0x24] sm:$0xf]
      %v286 = vld [vmem:[%s1 + $0x28] sm:$0xf]
      %v287 = vld [vmem:[%s1 + $0x2c] sm:$0xf]
      %v288 = vld [vmem:[%s1 + $0x30] sm:$0xf]
      %v289 = vld [vmem:[%s1 + $0x34] sm:$0xf]
      %v290 = vld [vmem:[%s1 + $0x38] sm:$0xf]
      %v291 = vld [vmem:[%s1 + $0x3c] sm:$0xf]
      %v420 = vunpack.c.l.b16 %v148
      %v421 = vunpack.c.l.b16 %v149
      %v422 = vunpack.c.l.b16 %v150
      %v423 = vunpack.c.l.b16 %v151
      %v424 = vunpack.c.l.b16 %v152
      %v425 = vunpack.c.l.b16 %v153
      %v426 = vunpack.c.l.b16 %v154
      %v427 = vunpack.c.l.b16 %v155
      %v428 = vunpack.c.l.b16 %v156
      %v429 = vunpack.c.l.b16 %v157
      %v430 = vunpack.c.l.b16 %v158
      %v431 = vunpack.c.l.b16 %v159
      %v432 = vunpack.c.l.b16 %v160
      %v433 = vunpack.c.l.b16 %v161
      %v434 = vunpack.c.l.b16 %v162
      %v435 = vunpack.c.l.b16 %v163
      %v436 = vunpack.c.l.b16 %v164
      %v437 = vunpack.c.l.b16 %v165
      %v438 = vunpack.c.l.b16 %v166
      %v439 = vunpack.c.l.b16 %v167
      %v440 = vunpack.c.l.b16 %v168
      %v441 = vunpack.c.l.b16 %v169
      %v442 = vunpack.c.l.b16 %v170
      %v443 = vunpack.c.l.b16 %v171
      %v444 = vunpack.c.l.b16 %v172
      %v445 = vunpack.c.l.b16 %v173
      %v446 = vunpack.c.l.b16 %v174
      %v447 = vunpack.c.l.b16 %v175
      %v448 = vunpack.c.l.b16 %v176
      %v449 = vunpack.c.l.b16 %v177
      %v450 = vunpack.c.l.b16 %v178
      %v451 = vunpack.c.l.b16 %v179
      %v452 = vunpack.c.l.b16 %v180
      %v453 = vunpack.c.l.b16 %v181
      %v454 = vunpack.c.l.b16 %v182
      %v455 = vunpack.c.l.b16 %v183
      %v456 = vunpack.c.l.b16 %v184
      %v457 = vunpack.c.l.b16 %v185
      %v458 = vunpack.c.l.b16 %v186
      %v459 = vunpack.c.l.b16 %v187
      %v460 = vunpack.c.l.b16 %v188
      %v461 = vunpack.c.l.b16 %v189
      %v462 = vunpack.c.l.b16 %v190
      %v463 = vunpack.c.l.b16 %v191
      %v464 = vunpack.c.l.b16 %v192
      %v465 = vunpack.c.l.b16 %v193
      %v466 = vunpack.c.l.b16 %v194
      %v467 = vunpack.c.l.b16 %v195
      %v468 = vunpack.c.l.b16 %v196
      %v469 = vunpack.c.l.b16 %v197
      %v470 = vunpack.c.l.b16 %v198
      %v471 = vunpack.c.l.b16 %v199
      %v472 = vunpack.c.l.b16 %v200
      %v473 = vunpack.c.l.b16 %v201
      %v474 = vunpack.c.l.b16 %v202
      %v475 = vunpack.c.l.b16 %v203
      %v476 = vunpack.c.l.b16 %v204
      %v477 = vunpack.c.l.b16 %v205
      %v478 = vunpack.c.l.b16 %v206
      %v479 = vunpack.c.l.b16 %v207
      %v480 = vunpack.c.l.b16 %v208
      %v481 = vunpack.c.l.b16 %v209
      %v482 = vunpack.c.l.b16 %v210
      %v483 = vunpack.c.l.b16 %v211
      %v484 = vunpack.c.l.b16 %v212
      %v485 = vunpack.c.l.b16 %v213
      %v486 = vunpack.c.l.b16 %v214
      %v487 = vunpack.c.l.b16 %v215
      %v488 = vunpack.c.l.b16 %v216
      %v489 = vunpack.c.l.b16 %v217
      %v490 = vunpack.c.l.b16 %v218
      %v491 = vunpack.c.l.b16 %v219
      %v492 = vunpack.c.l.b16 %v220
      %v493 = vunpack.c.l.b16 %v221
      %v494 = vunpack.c.l.b16 %v222
      %v495 = vunpack.c.l.b16 %v223
      %v496 = vunpack.c.l.b16 %v224
      %v497 = vunpack.c.l.b16 %v225
      %v498 = vunpack.c.l.b16 %v226
      %v499 = vunpack.c.l.b16 %v227
      %v500 = vunpack.c.l.b16 %v228
      %v501 = vunpack.c.l.b16 %v229
      %v502 = vunpack.c.l.b16 %v230
      %v503 = vunpack.c.l.b16 %v231
      %v504 = vunpack.c.l.b16 %v232
      %v505 = vunpack.c.l.b16 %v233
      %v506 = vunpack.c.l.b16 %v234
      %v507 = vunpack.c.l.b16 %v235
      %v508 = vunpack.c.l.b16 %v236
      %v509 = vunpack.c.l.b16 %v237
      %v510 = vunpack.c.l.b16 %v238
      %v511 = vunpack.c.l.b16 %v239
      %v512 = vunpack.c.l.b16 %v240
      %v513 = vunpack.c.l.b16 %v241
      %v514 = vunpack.c.l.b16 %v242
      %v515 = vunpack.c.l.b16 %v243
      %v516 = vunpack.c.l.b16 %v244
      %v517 = vunpack.c.l.b16 %v245
      %v518 = vunpack.c.l.b16 %v246
      %v519 = vunpack.c.l.b16 %v247
      %v520 = vunpack.c.l.b16 %v248
      %v521 = vunpack.c.l.b16 %v249
      %v522 = vunpack.c.l.b16 %v250
      %v523 = vunpack.c.l.b16 %v251
      %v524 = vunpack.c.l.b16 %v252
      %v525 = vunpack.c.l.b16 %v253
      %v526 = vunpack.c.l.b16 %v254
      %v527 = vunpack.c.l.b16 %v255
      %v528 = vunpack.c.l.b16 %v256
      %v529 = vunpack.c.l.b16 %v257
      %v530 = vunpack.c.l.b16 %v258
      %v531 = vunpack.c.l.b16 %v259
      %v532 = vunpack.c.l.b16 %v260
      %v533 = vunpack.c.l.b16 %v261
      %v534 = vunpack.c.l.b16 %v262
      %v535 = vunpack.c.l.b16 %v263
      %v536 = vunpack.c.l.b16 %v264
      %v537 = vunpack.c.l.b16 %v265
      %v538 = vunpack.c.l.b16 %v266
      %v539 = vunpack.c.l.b16 %v267
      %v540 = vunpack.c.l.b16 %v268
      %v541 = vunpack.c.l.b16 %v269
      %v542 = vunpack.c.l.b16 %v270
      %v543 = vunpack.c.l.b16 %v271
      %v544 = vunpack.c.l.b16 %v272
      %v545 = vunpack.c.l.b16 %v273
      %v546 = vunpack.c.l.b16 %v274
      %v547 = vunpack.c.l.b16 %v275
      %v548 = vpack.c.b16 %v421, %v420
      %v549 = vpack.c.b16 %v423, %v422
      %v550 = vpack.c.b16 %v425, %v424
      %v551 = vpack.c.b16 %v427, %v426
      %v552 = vpack.c.b16 %v429, %v428
      %v553 = vpack.c.b16 %v431, %v430
      %v554 = vpack.c.b16 %v433, %v432
      %v555 = vpack.c.b16 %v435, %v434
      %v556 = vpack.c.b16 %v437, %v436
      %v557 = vpack.c.b16 %v439, %v438
      %v558 = vpack.c.b16 %v441, %v440
      %v559 = vpack.c.b16 %v443, %v442
      %v560 = vpack.c.b16 %v445, %v444
      %v561 = vpack.c.b16 %v447, %v446
      %v562 = vpack.c.b16 %v449, %v448
      %v563 = vpack.c.b16 %v451, %v450
      %v564 = vpack.c.b16 %v453, %v452
      %v565 = vpack.c.b16 %v455, %v454
      %v566 = vpack.c.b16 %v457, %v456
      %v567 = vpack.c.b16 %v459, %v458
      %v568 = vpack.c.b16 %v461, %v460
      %v569 = vpack.c.b16 %v463, %v462
      %v570 = vpack.c.b16 %v465, %v464
      %v571 = vpack.c.b16 %v467, %v466
      %v572 = vpack.c.b16 %v469, %v468
      %v573 = vpack.c.b16 %v471, %v470
      %v574 = vpack.c.b16 %v473, %v472
      %v575 = vpack.c.b16 %v475, %v474
      %v576 = vpack.c.b16 %v477, %v476
      %v577 = vpack.c.b16 %v479, %v478
      %v578 = vpack.c.b16 %v481, %v480
      %v579 = vpack.c.b16 %v483, %v482
      %v580 = vpack.c.b16 %v485, %v484
      %v581 = vpack.c.b16 %v487, %v486
      %v582 = vpack.c.b16 %v489, %v488
      %v583 = vpack.c.b16 %v491, %v490
      %v584 = vpack.c.b16 %v493, %v492
      %v585 = vpack.c.b16 %v495, %v494
      %v586 = vpack.c.b16 %v497, %v496
      %v587 = vpack.c.b16 %v499, %v498
      %v588 = vpack.c.b16 %v501, %v500
      %v589 = vpack.c.b16 %v503, %v502
      %v590 = vpack.c.b16 %v505, %v504
      %v591 = vpack.c.b16 %v507, %v506
      %v592 = vpack.c.b16 %v509, %v508
      %v593 = vpack.c.b16 %v511, %v510
      %v594 = vpack.c.b16 %v513, %v512
      %v595 = vpack.c.b16 %v515, %v514
      %v596 = vpack.c.b16 %v517, %v516
      %v597 = vpack.c.b16 %v519, %v518
      %v598 = vpack.c.b16 %v521, %v520
      %v599 = vpack.c.b16 %v523, %v522
      %v600 = vpack.c.b16 %v525, %v524
      %v601 = vpack.c.b16 %v527, %v526
      %v602 = vpack.c.b16 %v529, %v528
      %v603 = vpack.c.b16 %v531, %v530
      %v604 = vpack.c.b16 %v533, %v532
      %v605 = vpack.c.b16 %v535, %v534
      %v606 = vpack.c.b16 %v537, %v536
      %v607 = vpack.c.b16 %v539, %v538
      %v608 = vpack.c.b16 %v541, %v540
      %v609 = vpack.c.b16 %v543, %v542
      %v610 = vpack.c.b16 %v545, %v544
      %v611 = vpack.c.b16 %v547, %v546
      %v692 = vunpack.c.l.b16 %v276
      %v693 = vunpack.c.l.b16 %v277
      %v694 = vunpack.c.l.b16 %v278
      %v695 = vunpack.c.l.b16 %v279
      %v696 = vunpack.c.l.b16 %v280
      %v697 = vunpack.c.l.b16 %v281
      %v698 = vunpack.c.l.b16 %v282
      %v699 = vunpack.c.l.b16 %v283
      %v700 = vunpack.c.l.b16 %v284
      %v701 = vunpack.c.l.b16 %v285
      %v702 = vunpack.c.l.b16 %v286
      %v703 = vunpack.c.l.b16 %v287
      %v704 = vunpack.c.l.b16 %v288
      %v705 = vunpack.c.l.b16 %v289
      %v706 = vunpack.c.l.b16 %v290
      %v707 = vunpack.c.l.b16 %v291
      %v708 = vpack.c.b16 %v693, %v692
      %v709 = vpack.c.b16 %v695, %v694
      %v710 = vpack.c.b16 %v697, %v696
      %v711 = vpack.c.b16 %v699, %v698
      %v712 = vpack.c.b16 %v701, %v700
      %v713 = vpack.c.b16 %v703, %v702
      %v714 = vpack.c.b16 %v705, %v704
      %v715 = vpack.c.b16 %v707, %v706
      %724 = vmatprep.subr.bf16.mxu0 0
      %725 = vmatpush1.bf16.msra.mxu0 %v715
      %726 = vmatprep.subr.bf16.mxu0 0
      %727 = vmatpush1.bf16.msra.mxu0 %v714
      %728 = vmatprep.subr.bf16.mxu0 0
      %729 = vmatpush1.bf16.msra.mxu0 %v713
      %730 = vmatprep.subr.bf16.mxu0 0
      %731 = vmatpush1.bf16.msra.mxu0 %v712
      %732 = vmatprep.subr.bf16.mxu0 0
      %733 = vmatpush1.bf16.msra.mxu0 %v711
      %734 = vmatprep.subr.bf16.mxu0 0
      %735 = vmatpush1.bf16.msra.mxu0 %v710
      %736 = vmatprep.subr.bf16.mxu0 0
      %737 = vmatpush1.bf16.msra.mxu0 %v709
      %738 = vmatprep.subr.bf16.mxu0 0
      %739 = vmatpush1.bf16.msra.mxu0 %v708
      %740 = vmatprep.subr.bf16.mxu0 0
      %741 = vmatpush2.bf16.msra.mxu0 0
      %742 = vmatprep.subr.bf16.mxu0 0
      %743 = vmatpush2.bf16.msra.mxu0 0
      %744 = vmatprep.subr.bf16.mxu0 0
      %745 = vmatpush2.bf16.msra.mxu0 0
      %746 = vmatprep.subr.bf16.mxu0 0
      %747 = vmatpush2.bf16.msra.mxu0 0
      %748 = vmatprep.subr.bf16.mxu0 0
      %749 = vmatpush2.bf16.msra.mxu0 0
      %750 = vmatprep.subr.bf16.mxu0 0
      %751 = vmatpush2.bf16.msra.mxu0 0
      %752 = vmatprep.subr.bf16.mxu0 0
      %753 = vmatpush2.bf16.msra.mxu0 0
      %754 = vmatprep.subr.bf16.mxu0 0
      %755 = vmatpush2.bf16.msra.mxu0 0
      %756 = vmatprep.mubr.bf16.mxu0 0
      %757 = vmatmul.mubr.bf16.gmra.mxu0 %v548
      %v758 = vpop.f32.mrf.mxu0
      %v759 = vadd.f32 0.0, %v758
      %v760 = vpop.f32.mrf.mxu0
      %v761 = vpop.f32.mrf.mxu0
      %v762 = vadd.f32 0.0, %v761
      %v763 = vpop.f32.mrf.mxu0
      %764 = vmatprep.mubr.bf16.mxu0 0
      %765 = vmatmul.mubr.bf16.gmra.mxu0 %v549
      %v766 = vpop.f32.mrf.mxu0
      %v767 = vadd.f32 0.0, %v766
      %v768 = vpop.f32.mrf.mxu0
      %v769 = vpop.f32.mrf.mxu0
      %v770 = vadd.f32 0.0, %v769
      %v771 = vpop.f32.mrf.mxu0
      %772 = vmatprep.mubr.bf16.mxu0 0
      %773 = vmatmul.mubr.bf16.gmra.mxu0 %v550
      %v774 = vpop.f32.mrf.mxu0
      %v775 = vadd.f32 0.0, %v774
      %v776 = vpop.f32.mrf.mxu0
      %v777 = vpop.f32.mrf.mxu0
      %v778 = vadd.f32 0.0, %v777
      %v779 = vpop.f32.mrf.mxu0
      %780 = vmatprep.mubr.bf16.mxu0 0
      %781 = vmatmul.mubr.bf16.gmra.mxu0 %v551
      %v782 = vpop.f32.mrf.mxu0
      %v783 = vadd.f32 0.0, %v782
      %v784 = vpop.f32.mrf.mxu0
      %v785 = vpop.f32.mrf.mxu0
      %v786 = vadd.f32 0.0, %v785
      %v787 = vpop.f32.mrf.mxu0
      %788 = vmatprep.mubr.bf16.mxu0 0
      %789 = vmatmul.mubr.bf16.gmra.mxu0 %v552
      %v790 = vpop.f32.mrf.mxu0
      %v791 = vadd.f32 0.0, %v790
      %v792 = vpop.f32.mrf.mxu0
      %v793 = vpop.f32.mrf.mxu0
      %v794 = vadd.f32 0.0, %v793
      %v795 = vpop.f32.mrf.mxu0
      %796 = vmatprep.mubr.bf16.mxu0 0
      %797 = vmatmul.mubr.bf16.gmra.mxu0 %v553
      %v798 = vpop.f32.mrf.mxu0
      %v799 = vadd.f32 0.0, %v798
      %v800 = vpop.f32.mrf.mxu0
      %v801 = vpop.f32.mrf.mxu0
      %v802 = vadd.f32 0.0, %v801
      %v803 = vpop.f32.mrf.mxu0
      %804 = vmatprep.mubr.bf16.mxu0 0
      %805 = vmatmul.mubr.bf16.gmra.mxu0 %v554
      %v806 = vpop.f32.mrf.mxu0
      %v807 = vadd.f32 0.0, %v806
      %v808 = vpop.f32.mrf.mxu0
      %v809 = vpop.f32.mrf.mxu0
      %v810 = vadd.f32 0.0, %v809
      %v811 = vpop.f32.mrf.mxu0
      %812 = vmatprep.mubr.bf16.mxu0 0
      %813 = vmatmul.mubr.bf16.gmra.mxu0 %v555
      %v814 = vpop.f32.mrf.mxu0
      %v815 = vadd.f32 0.0, %v814
      %v816 = vpop.f32.mrf.mxu0
      %v817 = vpop.f32.mrf.mxu0
      %v818 = vadd.f32 0.0, %v817
      %v819 = vpop.f32.mrf.mxu0
      %820 = vmatprep.mubr.bf16.mxu0 0
      %821 = vmatmul.mubr.bf16.gmra.mxu0 %v556
      %v822 = vpop.f32.mrf.mxu0
      %v823 = vadd.f32 0.0, %v822
      %v824 = vpop.f32.mrf.mxu0
      %v825 = vpop.f32.mrf.mxu0
      %v826 = vadd.f32 0.0, %v825
      %v827 = vpop.f32.mrf.mxu0
      %828 = vmatprep.mubr.bf16.mxu0 0
      %829 = vmatmul.mubr.bf16.gmra.mxu0 %v557
      %v830 = vpop.f32.mrf.mxu0
      %v831 = vadd.f32 0.0, %v830
      %v832 = vpop.f32.mrf.mxu0
      %v833 = vpop.f32.mrf.mxu0
      %v834 = vadd.f32 0.0, %v833
      %v835 = vpop.f32.mrf.mxu0
      %836 = vmatprep.mubr.bf16.mxu0 0
      %837 = vmatmul.mubr.bf16.gmra.mxu0 %v558
      %v838 = vpop.f32.mrf.mxu0
      %v839 = vadd.f32 0.0, %v838
      %v840 = vpop.f32.mrf.mxu0
      %v841 = vpop.f32.mrf.mxu0
      %v842 = vadd.f32 0.0, %v841
      %v843 = vpop.f32.mrf.mxu0
      %844 = vmatprep.mubr.bf16.mxu0 0
      %845 = vmatmul.mubr.bf16.gmra.mxu0 %v559
      %v846 = vpop.f32.mrf.mxu0
      %v847 = vadd.f32 0.0, %v846
      %v848 = vpop.f32.mrf.mxu0
      %v849 = vpop.f32.mrf.mxu0
      %v850 = vadd.f32 0.0, %v849
      %v851 = vpop.f32.mrf.mxu0
      %852 = vmatprep.mubr.bf16.mxu0 0
      %853 = vmatmul.mubr.bf16.gmra.mxu0 %v560
      %v854 = vpop.f32.mrf.mxu0
      %v855 = vadd.f32 0.0, %v854
      %v856 = vpop.f32.mrf.mxu0
      %v857 = vpop.f32.mrf.mxu0
      %v858 = vadd.f32 0.0, %v857
      %v859 = vpop.f32.mrf.mxu0
      %860 = vmatprep.mubr.bf16.mxu0 0
      %861 = vmatmul.mubr.bf16.gmra.mxu0 %v561
      %v862 = vpop.f32.mrf.mxu0
      %v863 = vadd.f32 0.0, %v862
      %v864 = vpop.f32.mrf.mxu0
      %v865 = vpop.f32.mrf.mxu0
      %v866 = vadd.f32 0.0, %v865
      %v867 = vpop.f32.mrf.mxu0
      %868 = vmatprep.mubr.bf16.mxu0 0
      %869 = vmatmul.mubr.bf16.gmra.mxu0 %v562
      %v870 = vpop.f32.mrf.mxu0
      %v871 = vadd.f32 0.0, %v870
      %v872 = vpop.f32.mrf.mxu0
      %v873 = vpop.f32.mrf.mxu0
      %v874 = vadd.f32 0.0, %v873
      %v875 = vpop.f32.mrf.mxu0
      %876 = vmatprep.mubr.bf16.mxu0 0
      %877 = vmatmul.mubr.bf16.gmra.mxu0 %v563
      %v878 = vpop.f32.mrf.mxu0
      %v879 = vadd.f32 0.0, %v878
      %v880 = vpop.f32.mrf.mxu0
      %v881 = vpop.f32.mrf.mxu0
      %v882 = vadd.f32 0.0, %v881
      %v883 = vpop.f32.mrf.mxu0
      %884 = vmatprep.mubr.bf16.mxu0 0
      %885 = vmatmul.mubr.bf16.gmra.mxu0 %v564
      %v886 = vpop.f32.mrf.mxu0
      %v887 = vadd.f32 0.0, %v886
      %v888 = vpop.f32.mrf.mxu0
      %v889 = vpop.f32.mrf.mxu0
      %v890 = vadd.f32 0.0, %v889
      %v891 = vpop.f32.mrf.mxu0
      %892 = vmatprep.mubr.bf16.mxu0 0
      %893 = vmatmul.mubr.bf16.gmra.mxu0 %v565
      %v894 = vpop.f32.mrf.mxu0
      %v895 = vadd.f32 0.0, %v894
      %v896 = vpop.f32.mrf.mxu0
      %v897 = vpop.f32.mrf.mxu0
      %v898 = vadd.f32 0.0, %v897
      %v899 = vpop.f32.mrf.mxu0
      %900 = vmatprep.mubr.bf16.mxu0 0
      %901 = vmatmul.mubr.bf16.gmra.mxu0 %v566
      %v902 = vpop.f32.mrf.mxu0
      %v903 = vadd.f32 0.0, %v902
      %v904 = vpop.f32.mrf.mxu0
      %v905 = vpop.f32.mrf.mxu0
      %v906 = vadd.f32 0.0, %v905
      %v907 = vpop.f32.mrf.mxu0
      %908 = vmatprep.mubr.bf16.mxu0 0
      %909 = vmatmul.mubr.bf16.gmra.mxu0 %v567
      %v910 = vpop.f32.mrf.mxu0
      %v911 = vadd.f32 0.0, %v910
      %v912 = vpop.f32.mrf.mxu0
      %v913 = vpop.f32.mrf.mxu0
      %v914 = vadd.f32 0.0, %v913
      %v915 = vpop.f32.mrf.mxu0
      %916 = vmatprep.mubr.bf16.mxu0 0
      %917 = vmatmul.mubr.bf16.gmra.mxu0 %v568
      %v918 = vpop.f32.mrf.mxu0
      %v919 = vadd.f32 0.0, %v918
      %v920 = vpop.f32.mrf.mxu0
      %v921 = vpop.f32.mrf.mxu0
      %v922 = vadd.f32 0.0, %v921
      %v923 = vpop.f32.mrf.mxu0
      %924 = vmatprep.mubr.bf16.mxu0 0
      %925 = vmatmul.mubr.bf16.gmra.mxu0 %v569
      %v926 = vpop.f32.mrf.mxu0
      %v927 = vadd.f32 0.0, %v926
      %v928 = vpop.f32.mrf.mxu0
      %v929 = vpop.f32.mrf.mxu0
      %v930 = vadd.f32 0.0, %v929
      %v931 = vpop.f32.mrf.mxu0
      %932 = vmatprep.mubr.bf16.mxu0 0
      %933 = vmatmul.mubr.bf16.gmra.mxu0 %v570
      %v934 = vpop.f32.mrf.mxu0
      %v935 = vadd.f32 0.0, %v934
      %v936 = vpop.f32.mrf.mxu0
      %v937 = vpop.f32.mrf.mxu0
      %v938 = vadd.f32 0.0, %v937
      %v939 = vpop.f32.mrf.mxu0
      %940 = vmatprep.mubr.bf16.mxu0 0
      %941 = vmatmul.mubr.bf16.gmra.mxu0 %v571
      %v942 = vpop.f32.mrf.mxu0
      %v943 = vadd.f32 0.0, %v942
      %v944 = vpop.f32.mrf.mxu0
      %v945 = vpop.f32.mrf.mxu0
      %v946 = vadd.f32 0.0, %v945
      %v947 = vpop.f32.mrf.mxu0
      %948 = vmatprep.mubr.bf16.mxu0 0
      %949 = vmatmul.mubr.bf16.gmra.mxu0 %v572
      %v950 = vpop.f32.mrf.mxu0
      %v951 = vadd.f32 0.0, %v950
      %v952 = vpop.f32.mrf.mxu0
      %v953 = vpop.f32.mrf.mxu0
      %v954 = vadd.f32 0.0, %v953
      %v955 = vpop.f32.mrf.mxu0
      %956 = vmatprep.mubr.bf16.mxu0 0
      %957 = vmatmul.mubr.bf16.gmra.mxu0 %v573
      %v958 = vpop.f32.mrf.mxu0
      %v959 = vadd.f32 0.0, %v958
      %v960 = vpop.f32.mrf.mxu0
      %v961 = vpop.f32.mrf.mxu0
      %v962 = vadd.f32 0.0, %v961
      %v963 = vpop.f32.mrf.mxu0
      %964 = vmatprep.mubr.bf16.mxu0 0
      %965 = vmatmul.mubr.bf16.gmra.mxu0 %v574
      %v966 = vpop.f32.mrf.mxu0
      %v967 = vadd.f32 0.0, %v966
      %v968 = vpop.f32.mrf.mxu0
      %v969 = vpop.f32.mrf.mxu0
      %v970 = vadd.f32 0.0, %v969
      %v971 = vpop.f32.mrf.mxu0
      %972 = vmatprep.mubr.bf16.mxu0 0
      %973 = vmatmul.mubr.bf16.gmra.mxu0 %v575
      %v974 = vpop.f32.mrf.mxu0
      %v975 = vadd.f32 0.0, %v974
      %v976 = vpop.f32.mrf.mxu0
      %v977 = vpop.f32.mrf.mxu0
      %v978 = vadd.f32 0.0, %v977
      %v979 = vpop.f32.mrf.mxu0
      %980 = vmatprep.mubr.bf16.mxu0 0
      %981 = vmatmul.mubr.bf16.gmra.mxu0 %v576
      %v982 = vpop.f32.mrf.mxu0
      %v983 = vadd.f32 0.0, %v982
      %v984 = vpop.f32.mrf.mxu0
      %v985 = vpop.f32.mrf.mxu0
      %v986 = vadd.f32 0.0, %v985
      %v987 = vpop.f32.mrf.mxu0
      %988 = vmatprep.mubr.bf16.mxu0 0
      %989 = vmatmul.mubr.bf16.gmra.mxu0 %v577
      %v990 = vpop.f32.mrf.mxu0
      %v991 = vadd.f32 0.0, %v990
      %v992 = vpop.f32.mrf.mxu0
      %v993 = vpop.f32.mrf.mxu0
      %v994 = vadd.f32 0.0, %v993
      %v995 = vpop.f32.mrf.mxu0
      %996 = vmatprep.mubr.bf16.mxu0 0
      %997 = vmatmul.mubr.bf16.gmra.mxu0 %v578
      %v998 = vpop.f32.mrf.mxu0
      %v999 = vadd.f32 0.0, %v998
      %v1000 = vpop.f32.mrf.mxu0
      %v1001 = vpop.f32.mrf.mxu0
      %v1002 = vadd.f32 0.0, %v1001
      %v1003 = vpop.f32.mrf.mxu0
      %1004 = vmatprep.mubr.bf16.mxu0 0
      %1005 = vmatmul.mubr.bf16.gmra.mxu0 %v579
      %v1006 = vpop.f32.mrf.mxu0
      %v1007 = vadd.f32 0.0, %v1006
      %v1008 = vpop.f32.mrf.mxu0
      %v1009 = vpop.f32.mrf.mxu0
      %v1010 = vadd.f32 0.0, %v1009
      %v1011 = vpop.f32.mrf.mxu0
      %1012 = vmatprep.mubr.bf16.mxu0 0
      %1013 = vmatmul.mubr.bf16.gmra.mxu0 %v580
      %v1014 = vpop.f32.mrf.mxu0
      %v1015 = vadd.f32 0.0, %v1014
      %v1016 = vpop.f32.mrf.mxu0
      %v1017 = vpop.f32.mrf.mxu0
      %v1018 = vadd.f32 0.0, %v1017
      %v1019 = vpop.f32.mrf.mxu0
      %1020 = vmatprep.mubr.bf16.mxu0 0
      %1021 = vmatmul.mubr.bf16.gmra.mxu0 %v581
      %v1022 = vpop.f32.mrf.mxu0
      %v1023 = vadd.f32 0.0, %v1022
      %v1024 = vpop.f32.mrf.mxu0
      %v1025 = vpop.f32.mrf.mxu0
      %v1026 = vadd.f32 0.0, %v1025
      %v1027 = vpop.f32.mrf.mxu0
      %1028 = vmatprep.mubr.bf16.mxu0 0
      %1029 = vmatmul.mubr.bf16.gmra.mxu0 %v582
      %v1030 = vpop.f32.mrf.mxu0
      %v1031 = vadd.f32 0.0, %v1030
      %v1032 = vpop.f32.mrf.mxu0
      %v1033 = vpop.f32.mrf.mxu0
      %v1034 = vadd.f32 0.0, %v1033
      %v1035 = vpop.f32.mrf.mxu0
      %1036 = vmatprep.mubr.bf16.mxu0 0
      %1037 = vmatmul.mubr.bf16.gmra.mxu0 %v583
      %v1038 = vpop.f32.mrf.mxu0
      %v1039 = vadd.f32 0.0, %v1038
      %v1040 = vpop.f32.mrf.mxu0
      %v1041 = vpop.f32.mrf.mxu0
      %v1042 = vadd.f32 0.0, %v1041
      %v1043 = vpop.f32.mrf.mxu0
      %1044 = vmatprep.mubr.bf16.mxu0 0
      %1045 = vmatmul.mubr.bf16.gmra.mxu0 %v584
      %v1046 = vpop.f32.mrf.mxu0
      %v1047 = vadd.f32 0.0, %v1046
      %v1048 = vpop.f32.mrf.mxu0
      %v1049 = vpop.f32.mrf.mxu0
      %v1050 = vadd.f32 0.0, %v1049
      %v1051 = vpop.f32.mrf.mxu0
      %1052 = vmatprep.mubr.bf16.mxu0 0
      %1053 = vmatmul.mubr.bf16.gmra.mxu0 %v585
      %v1054 = vpop.f32.mrf.mxu0
      %v1055 = vadd.f32 0.0, %v1054
      %v1056 = vpop.f32.mrf.mxu0
      %v1057 = vpop.f32.mrf.mxu0
      %v1058 = vadd.f32 0.0, %v1057
      %v1059 = vpop.f32.mrf.mxu0
      %1060 = vmatprep.mubr.bf16.mxu0 0
      %1061 = vmatmul.mubr.bf16.gmra.mxu0 %v586
      %v1062 = vpop.f32.mrf.mxu0
      %v1063 = vadd.f32 0.0, %v1062
      %v1064 = vpop.f32.mrf.mxu0
      %v1065 = vpop.f32.mrf.mxu0
      %v1066 = vadd.f32 0.0, %v1065
      %v1067 = vpop.f32.mrf.mxu0
      %1068 = vmatprep.mubr.bf16.mxu0 0
      %1069 = vmatmul.mubr.bf16.gmra.mxu0 %v587
      %v1070 = vpop.f32.mrf.mxu0
      %v1071 = vadd.f32 0.0, %v1070
      %v1072 = vpop.f32.mrf.mxu0
      %v1073 = vpop.f32.mrf.mxu0
      %v1074 = vadd.f32 0.0, %v1073
      %v1075 = vpop.f32.mrf.mxu0
      %1076 = vmatprep.mubr.bf16.mxu0 0
      %1077 = vmatmul.mubr.bf16.gmra.mxu0 %v588
      %v1078 = vpop.f32.mrf.mxu0
      %v1079 = vadd.f32 0.0, %v1078
      %v1080 = vpop.f32.mrf.mxu0
      %v1081 = vpop.f32.mrf.mxu0
      %v1082 = vadd.f32 0.0, %v1081
      %v1083 = vpop.f32.mrf.mxu0
      %1084 = vmatprep.mubr.bf16.mxu0 0
      %1085 = vmatmul.mubr.bf16.gmra.mxu0 %v589
      %v1086 = vpop.f32.mrf.mxu0
      %v1087 = vadd.f32 0.0, %v1086
      %v1088 = vpop.f32.mrf.mxu0
      %v1089 = vpop.f32.mrf.mxu0
      %v1090 = vadd.f32 0.0, %v1089
      %v1091 = vpop.f32.mrf.mxu0
      %1092 = vmatprep.mubr.bf16.mxu0 0
      %1093 = vmatmul.mubr.bf16.gmra.mxu0 %v590
      %v1094 = vpop.f32.mrf.mxu0
      %v1095 = vadd.f32 0.0, %v1094
      %v1096 = vpop.f32.mrf.mxu0
      %v1097 = vpop.f32.mrf.mxu0
      %v1098 = vadd.f32 0.0, %v1097
      %v1099 = vpop.f32.mrf.mxu0
      %1100 = vmatprep.mubr.bf16.mxu0 0
      %1101 = vmatmul.mubr.bf16.gmra.mxu0 %v591
      %v1102 = vpop.f32.mrf.mxu0
      %v1103 = vadd.f32 0.0, %v1102
      %v1104 = vpop.f32.mrf.mxu0
      %v1105 = vpop.f32.mrf.mxu0
      %v1106 = vadd.f32 0.0, %v1105
      %v1107 = vpop.f32.mrf.mxu0
      %1108 = vmatprep.mubr.bf16.mxu0 0
      %1109 = vmatmul.mubr.bf16.gmra.mxu0 %v592
      %v1110 = vpop.f32.mrf.mxu0
      %v1111 = vadd.f32 0.0, %v1110
      %v1112 = vpop.f32.mrf.mxu0
      %v1113 = vpop.f32.mrf.mxu0
      %v1114 = vadd.f32 0.0, %v1113
      %v1115 = vpop.f32.mrf.mxu0
      %1116 = vmatprep.mubr.bf16.mxu0 0
      %1117 = vmatmul.mubr.bf16.gmra.mxu0 %v593
      %v1118 = vpop.f32.mrf.mxu0
      %v1119 = vadd.f32 0.0, %v1118
      %v1120 = vpop.f32.mrf.mxu0
      %v1121 = vpop.f32.mrf.mxu0
      %v1122 = vadd.f32 0.0, %v1121
      %v1123 = vpop.f32.mrf.mxu0
      %1124 = vmatprep.mubr.bf16.mxu0 0
      %1125 = vmatmul.mubr.bf16.gmra.mxu0 %v594
      %v1126 = vpop.f32.mrf.mxu0
      %v1127 = vadd.f32 0.0, %v1126
      %v1128 = vpop.f32.mrf.mxu0
      %v1129 = vpop.f32.mrf.mxu0
      %v1130 = vadd.f32 0.0, %v1129
      %v1131 = vpop.f32.mrf.mxu0
      %1132 = vmatprep.mubr.bf16.mxu0 0
      %1133 = vmatmul.mubr.bf16.gmra.mxu0 %v595
      %v1134 = vpop.f32.mrf.mxu0
      %v1135 = vadd.f32 0.0, %v1134
      %v1136 = vpop.f32.mrf.mxu0
      %v1137 = vpop.f32.mrf.mxu0
      %v1138 = vadd.f32 0.0, %v1137
      %v1139 = vpop.f32.mrf.mxu0
      %1140 = vmatprep.mubr.bf16.mxu0 0
      %1141 = vmatmul.mubr.bf16.gmra.mxu0 %v596
      %v1142 = vpop.f32.mrf.mxu0
      %v1143 = vadd.f32 0.0, %v1142
      %v1144 = vpop.f32.mrf.mxu0
      %v1145 = vpop.f32.mrf.mxu0
      %v1146 = vadd.f32 0.0, %v1145
      %v1147 = vpop.f32.mrf.mxu0
      %1148 = vmatprep.mubr.bf16.mxu0 0
      %1149 = vmatmul.mubr.bf16.gmra.mxu0 %v597
      %v1150 = vpop.f32.mrf.mxu0
      %v1151 = vadd.f32 0.0, %v1150
      %v1152 = vpop.f32.mrf.mxu0
      %v1153 = vpop.f32.mrf.mxu0
      %v1154 = vadd.f32 0.0, %v1153
      %v1155 = vpop.f32.mrf.mxu0
      %1156 = vmatprep.mubr.bf16.mxu0 0
      %1157 = vmatmul.mubr.bf16.gmra.mxu0 %v598
      %v1158 = vpop.f32.mrf.mxu0
      %v1159 = vadd.f32 0.0, %v1158
      %v1160 = vpop.f32.mrf.mxu0
      %v1161 = vpop.f32.mrf.mxu0
      %v1162 = vadd.f32 0.0, %v1161
      %v1163 = vpop.f32.mrf.mxu0
      %1164 = vmatprep.mubr.bf16.mxu0 0
      %1165 = vmatmul.mubr.bf16.gmra.mxu0 %v599
      %v1166 = vpop.f32.mrf.mxu0
      %v1167 = vadd.f32 0.0, %v1166
      %v1168 = vpop.f32.mrf.mxu0
      %v1169 = vpop.f32.mrf.mxu0
      %v1170 = vadd.f32 0.0, %v1169
      %v1171 = vpop.f32.mrf.mxu0
      %1172 = vmatprep.mubr.bf16.mxu0 0
      %1173 = vmatmul.mubr.bf16.gmra.mxu0 %v600
      %v1174 = vpop.f32.mrf.mxu0
      %v1175 = vadd.f32 0.0, %v1174
      %v1176 = vpop.f32.mrf.mxu0
      %v1177 = vpop.f32.mrf.mxu0
      %v1178 = vadd.f32 0.0, %v1177
      %v1179 = vpop.f32.mrf.mxu0
      %1180 = vmatprep.mubr.bf16.mxu0 0
      %1181 = vmatmul.mubr.bf16.gmra.mxu0 %v601
      %v1182 = vpop.f32.mrf.mxu0
      %v1183 = vadd.f32 0.0, %v1182
      %v1184 = vpop.f32.mrf.mxu0
      %v1185 = vpop.f32.mrf.mxu0
      %v1186 = vadd.f32 0.0, %v1185
      %v1187 = vpop.f32.mrf.mxu0
      %1188 = vmatprep.mubr.bf16.mxu0 0
      %1189 = vmatmul.mubr.bf16.gmra.mxu0 %v602
      %v1190 = vpop.f32.mrf.mxu0
      %v1191 = vadd.f32 0.0, %v1190
      %v1192 = vpop.f32.mrf.mxu0
      %v1193 = vpop.f32.mrf.mxu0
      %v1194 = vadd.f32 0.0, %v1193
      %v1195 = vpop.f32.mrf.mxu0
      %1196 = vmatprep.mubr.bf16.mxu0 0
      %1197 = vmatmul.mubr.bf16.gmra.mxu0 %v603
      %v1198 = vpop.f32.mrf.mxu0
      %v1199 = vadd.f32 0.0, %v1198
      %v1200 = vpop.f32.mrf.mxu0
      %v1201 = vpop.f32.mrf.mxu0
      %v1202 = vadd.f32 0.0, %v1201
      %v1203 = vpop.f32.mrf.mxu0
      %1204 = vmatprep.mubr.bf16.mxu0 0
      %1205 = vmatmul.mubr.bf16.gmra.mxu0 %v604
      %v1206 = vpop.f32.mrf.mxu0
      %v1207 = vadd.f32 0.0, %v1206
      %v1208 = vpop.f32.mrf.mxu0
      %v1209 = vpop.f32.mrf.mxu0
      %v1210 = vadd.f32 0.0, %v1209
      %v1211 = vpop.f32.mrf.mxu0
      %1212 = vmatprep.mubr.bf16.mxu0 0
      %1213 = vmatmul.mubr.bf16.gmra.mxu0 %v605
      %v1214 = vpop.f32.mrf.mxu0
      %v1215 = vadd.f32 0.0, %v1214
      %v1216 = vpop.f32.mrf.mxu0
      %v1217 = vpop.f32.mrf.mxu0
      %v1218 = vadd.f32 0.0, %v1217
      %v1219 = vpop.f32.mrf.mxu0
      %1220 = vmatprep.mubr.bf16.mxu0 0
      %1221 = vmatmul.mubr.bf16.gmra.mxu0 %v606
      %v1222 = vpop.f32.mrf.mxu0
      %v1223 = vadd.f32 0.0, %v1222
      %v1224 = vpop.f32.mrf.mxu0
      %v1225 = vpop.f32.mrf.mxu0
      %v1226 = vadd.f32 0.0, %v1225
      %v1227 = vpop.f32.mrf.mxu0
      %1228 = vmatprep.mubr.bf16.mxu0 0
      %1229 = vmatmul.mubr.bf16.gmra.mxu0 %v607
      %v1230 = vpop.f32.mrf.mxu0
      %v1231 = vadd.f32 0.0, %v1230
      %v1232 = vpop.f32.mrf.mxu0
      %v1233 = vpop.f32.mrf.mxu0
      %v1234 = vadd.f32 0.0, %v1233
      %v1235 = vpop.f32.mrf.mxu0
      %1236 = vmatprep.mubr.bf16.mxu0 0
      %1237 = vmatmul.mubr.bf16.gmra.mxu0 %v608
      %v1238 = vpop.f32.mrf.mxu0
      %v1239 = vadd.f32 0.0, %v1238
      %v1240 = vpop.f32.mrf.mxu0
      %v1241 = vpop.f32.mrf.mxu0
      %v1242 = vadd.f32 0.0, %v1241
      %v1243 = vpop.f32.mrf.mxu0
      %1244 = vmatprep.mubr.bf16.mxu0 0
      %1245 = vmatmul.mubr.bf16.gmra.mxu0 %v609
      %v1246 = vpop.f32.mrf.mxu0
      %v1247 = vadd.f32 0.0, %v1246
      %v1248 = vpop.f32.mrf.mxu0
      %v1249 = vpop.f32.mrf.mxu0
      %v1250 = vadd.f32 0.0, %v1249
      %v1251 = vpop.f32.mrf.mxu0
      %1252 = vmatprep.mubr.bf16.mxu0 0
      %1253 = vmatmul.mubr.bf16.gmra.mxu0 %v610
      %v1254 = vpop.f32.mrf.mxu0
      %v1255 = vadd.f32 0.0, %v1254
      %v1256 = vpop.f32.mrf.mxu0
      %v1257 = vpop.f32.mrf.mxu0
      %v1258 = vadd.f32 0.0, %v1257
      %v1259 = vpop.f32.mrf.mxu0
      %1260 = vmatprep.mubr.bf16.mxu0 0
      %1261 = vmatmul.mubr.bf16.gmra.mxu0 %v611
      %v1262 = vpop.f32.mrf.mxu0
      %v1263 = vadd.f32 0.0, %v1262
      %v1264 = vpop.f32.mrf.mxu0
      %v1265 = vpop.f32.mrf.mxu0
      %v1266 = vadd.f32 0.0, %v1265
      %v1267 = vpop.f32.mrf.mxu0
      %1268 = vdwg.mxu0
      %v1269 = vtanh.pop %v759
      %v1270 = vtanh.pop %v762
      %v1271 = vtanh.pop %v767
      %v1272 = vtanh.pop %v770
      %v1273 = vtanh.pop %v775
      %v1274 = vtanh.pop %v778
      %v1275 = vtanh.pop %v783
      %v1276 = vtanh.pop %v786
      %v1277 = vtanh.pop %v791
      %v1278 = vtanh.pop %v794
      %v1279 = vtanh.pop %v799
      %v1280 = vtanh.pop %v802
      %v1281 = vtanh.pop %v807
      %v1282 = vtanh.pop %v810
      %v1283 = vtanh.pop %v815
      %v1284 = vtanh.pop %v818
      %v1285 = vtanh.pop %v823
      %v1286 = vtanh.pop %v826
      %v1287 = vtanh.pop %v831
      %v1288 = vtanh.pop %v834
      %v1289 = vtanh.pop %v839
      %v1290 = vtanh.pop %v842
      %v1291 = vtanh.pop %v847
      %v1292 = vtanh.pop %v850
      %v1293 = vtanh.pop %v855
      %v1294 = vtanh.pop %v858
      %v1295 = vtanh.pop %v863
      %v1296 = vtanh.pop %v866
      %v1297 = vtanh.pop %v871
      %v1298 = vtanh.pop %v874
      %v1299 = vtanh.pop %v879
      %v1300 = vtanh.pop %v882
      %v1301 = vtanh.pop %v887
      %v1302 = vtanh.pop %v890
      %v1303 = vtanh.pop %v895
      %v1304 = vtanh.pop %v898
      %v1305 = vtanh.pop %v903
      %v1306 = vtanh.pop %v906
      %v1307 = vtanh.pop %v911
      %v1308 = vtanh.pop %v914
      %v1309 = vtanh.pop %v919
      %v1310 = vtanh.pop %v922
      %v1311 = vtanh.pop %v927
      %v1312 = vtanh.pop %v930
      %v1313 = vtanh.pop %v935
      %v1314 = vtanh.pop %v938
      %v1315 = vtanh.pop %v943
      %v1316 = vtanh.pop %v946
      %v1317 = vtanh.pop %v951
      %v1318 = vtanh.pop %v954
      %v1319 = vtanh.pop %v959
      %v1320 = vtanh.pop %v962
      %v1321 = vtanh.pop %v967
      %v1322 = vtanh.pop %v970
      %v1323 = vtanh.pop %v975
      %v1324 = vtanh.pop %v978
      %v1325 = vtanh.pop %v983
      %v1326 = vtanh.pop %v986
      %v1327 = vtanh.pop %v991
      %v1328 = vtanh.pop %v994
      %v1329 = vtanh.pop %v999
      %v1330 = vtanh.pop %v1002
      %v1331 = vtanh.pop %v1007
      %v1332 = vtanh.pop %v1010
      %v1333 = vtanh.pop %v1015
      %v1334 = vtanh.pop %v1018
      %v1335 = vtanh.pop %v1023
      %v1336 = vtanh.pop %v1026
      %v1337 = vtanh.pop %v1031
      %v1338 = vtanh.pop %v1034
      %v1339 = vtanh.pop %v1039
      %v1340 = vtanh.pop %v1042
      %v1341 = vtanh.pop %v1047
      %v1342 = vtanh.pop %v1050
      %v1343 = vtanh.pop %v1055
      %v1344 = vtanh.pop %v1058
      %v1345 = vtanh.pop %v1063
      %v1346 = vtanh.pop %v1066
      %v1347 = vtanh.pop %v1071
      %v1348 = vtanh.pop %v1074
      %v1349 = vtanh.pop %v1079
      %v1350 = vtanh.pop %v1082
      %v1351 = vtanh.pop %v1087
      %v1352 = vtanh.pop %v1090
      %v1353 = vtanh.pop %v1095
      %v1354 = vtanh.pop %v1098
      %v1355 = vtanh.pop %v1103
      %v1356 = vtanh.pop %v1106
      %v1357 = vtanh.pop %v1111
      %v1358 = vtanh.pop %v1114
      %v1359 = vtanh.pop %v1119
      %v1360 = vtanh.pop %v1122
      %v1361 = vtanh.pop %v1127
      %v1362 = vtanh.pop %v1130
      %v1363 = vtanh.pop %v1135
      %v1364 = vtanh.pop %v1138
      %v1365 = vtanh.pop %v1143
      %v1366 = vtanh.pop %v1146
      %v1367 = vtanh.pop %v1151
      %v1368 = vtanh.pop %v1154
      %v1369 = vtanh.pop %v1159
      %v1370 = vtanh.pop %v1162
      %v1371 = vtanh.pop %v1167
      %v1372 = vtanh.pop %v1170
      %v1373 = vtanh.pop %v1175
      %v1374 = vtanh.pop %v1178
      %v1375 = vtanh.pop %v1183
      %v1376 = vtanh.pop %v1186
      %v1377 = vtanh.pop %v1191
      %v1378 = vtanh.pop %v1194
      %v1379 = vtanh.pop %v1199
      %v1380 = vtanh.pop %v1202
      %v1381 = vtanh.pop %v1207
      %v1382 = vtanh.pop %v1210
      %v1383 = vtanh.pop %v1215
      %v1384 = vtanh.pop %v1218
      %v1385 = vtanh.pop %v1223
      %v1386 = vtanh.pop %v1226
      %v1387 = vtanh.pop %v1231
      %v1388 = vtanh.pop %v1234
      %v1389 = vtanh.pop %v1239
      %v1390 = vtanh.pop %v1242
      %v1391 = vtanh.pop %v1247
      %v1392 = vtanh.pop %v1250
      %v1393 = vtanh.pop %v1255
      %v1394 = vtanh.pop %v1258
      %v1395 = vtanh.pop %v1263
      %v1396 = vtanh.pop %v1266
      %v1397 = vpack.c.bf16 %v1270, %v1269
      %v1398 = vpack.c.bf16 %v1272, %v1271
      %v1399 = vpack.c.bf16 %v1274, %v1273
      %v1400 = vpack.c.bf16 %v1276, %v1275
      %v1401 = vpack.c.bf16 %v1278, %v1277
      %v1402 = vpack.c.bf16 %v1280, %v1279
      %v1403 = vpack.c.bf16 %v1282, %v1281
      %v1404 = vpack.c.bf16 %v1284, %v1283
      %v1405 = vpack.c.bf16 %v1286, %v1285
      %v1406 = vpack.c.bf16 %v1288, %v1287
      %v1407 = vpack.c.bf16 %v1290, %v1289
      %v1408 = vpack.c.bf16 %v1292, %v1291
      %v1409 = vpack.c.bf16 %v1294, %v1293
      %v1410 = vpack.c.bf16 %v1296, %v1295
      %v1411 = vpack.c.bf16 %v1298, %v1297
      %v1412 = vpack.c.bf16 %v1300, %v1299
      %v1413 = vpack.c.bf16 %v1302, %v1301
      %v1414 = vpack.c.bf16 %v1304, %v1303
      %v1415 = vpack.c.bf16 %v1306, %v1305
      %v1416 = vpack.c.bf16 %v1308, %v1307
      %v1417 = vpack.c.bf16 %v1310, %v1309
      %v1418 = vpack.c.bf16 %v1312, %v1311
      %v1419 = vpack.c.bf16 %v1314, %v1313
      %v1420 = vpack.c.bf16 %v1316, %v1315
      %v1421 = vpack.c.bf16 %v1318, %v1317
      %v1422 = vpack.c.bf16 %v1320, %v1319
      %v1423 = vpack.c.bf16 %v1322, %v1321
      %v1424 = vpack.c.bf16 %v1324, %v1323
      %v1425 = vpack.c.bf16 %v1326, %v1325
      %v1426 = vpack.c.bf16 %v1328, %v1327
      %v1427 = vpack.c.bf16 %v1330, %v1329
      %v1428 = vpack.c.bf16 %v1332, %v1331
      %v1429 = vpack.c.bf16 %v1334, %v1333
      %v1430 = vpack.c.bf16 %v1336, %v1335
      %v1431 = vpack.c.bf16 %v1338, %v1337
      %v1432 = vpack.c.bf16 %v1340, %v1339
      %v1433 = vpack.c.bf16 %v1342, %v1341
      %v1434 = vpack.c.bf16 %v1344, %v1343
      %v1435 = vpack.c.bf16 %v1346, %v1345
      %v1436 = vpack.c.bf16 %v1348, %v1347
      %v1437 = vpack.c.bf16 %v1350, %v1349
      %v1438 = vpack.c.bf16 %v1352, %v1351
      %v1439 = vpack.c.bf16 %v1354, %v1353
      %v1440 = vpack.c.bf16 %v1356, %v1355
      %v1441 = vpack.c.bf16 %v1358, %v1357
      %v1442 = vpack.c.bf16 %v1360, %v1359
      %v1443 = vpack.c.bf16 %v1362, %v1361
      %v1444 = vpack.c.bf16 %v1364, %v1363
      %v1445 = vpack.c.bf16 %v1366, %v1365
      %v1446 = vpack.c.bf16 %v1368, %v1367
      %v1447 = vpack.c.bf16 %v1370, %v1369
      %v1448 = vpack.c.bf16 %v1372, %v1371
      %v1449 = vpack.c.bf16 %v1374, %v1373
      %v1450 = vpack.c.bf16 %v1376, %v1375
      %v1451 = vpack.c.bf16 %v1378, %v1377
      %v1452 = vpack.c.bf16 %v1380, %v1379
      %v1453 = vpack.c.bf16 %v1382, %v1381
      %v1454 = vpack.c.bf16 %v1384, %v1383
      %v1455 = vpack.c.bf16 %v1386, %v1385
      %v1456 = vpack.c.bf16 %v1388, %v1387
      %v1457 = vpack.c.bf16 %v1390, %v1389
      %v1458 = vpack.c.bf16 %v1392, %v1391
      %v1459 = vpack.c.bf16 %v1394, %v1393
      %v1460 = vpack.c.bf16 %v1396, %v1395
      %v1525 = vunpack.c.l.b16 %v1397
      %v1526 = vunpack.c.h.b16 %v1397
      %v1527 = vunpack.c.l.b16 %v1398
      %v1528 = vunpack.c.h.b16 %v1398
      %v1529 = vunpack.c.l.b16 %v1399
      %v1530 = vunpack.c.h.b16 %v1399
      %v1531 = vunpack.c.l.b16 %v1400
      %v1532 = vunpack.c.h.b16 %v1400
      %v1533 = vunpack.c.l.b16 %v1401
      %v1534 = vunpack.c.h.b16 %v1401
      %v1535 = vunpack.c.l.b16 %v1402
      %v1536 = vunpack.c.h.b16 %v1402
      %v1537 = vunpack.c.l.b16 %v1403
      %v1538 = vunpack.c.h.b16 %v1403
      %v1539 = vunpack.c.l.b16 %v1404
      %v1540 = vunpack.c.h.b16 %v1404
      %v1541 = vunpack.c.l.b16 %v1405
      %v1542 = vunpack.c.h.b16 %v1405
      %v1543 = vunpack.c.l.b16 %v1406
      %v1544 = vunpack.c.h.b16 %v1406
      %v1545 = vunpack.c.l.b16 %v1407
      %v1546 = vunpack.c.h.b16 %v1407
      %v1547 = vunpack.c.l.b16 %v1408
      %v1548 = vunpack.c.h.b16 %v1408
      %v1549 = vunpack.c.l.b16 %v1409
      %v1550 = vunpack.c.h.b16 %v1409
      %v1551 = vunpack.c.l.b16 %v1410
      %v1552 = vunpack.c.h.b16 %v1410
      %v1553 = vunpack.c.l.b16 %v1411
      %v1554 = vunpack.c.h.b16 %v1411
      %v1555 = vunpack.c.l.b16 %v1412
      %v1556 = vunpack.c.h.b16 %v1412
      %v1557 = vunpack.c.l.b16 %v1413
      %v1558 = vunpack.c.h.b16 %v1413
      %v1559 = vunpack.c.l.b16 %v1414
      %v1560 = vunpack.c.h.b16 %v1414
      %v1561 = vunpack.c.l.b16 %v1415
      %v1562 = vunpack.c.h.b16 %v1415
      %v1563 = vunpack.c.l.b16 %v1416
      %v1564 = vunpack.c.h.b16 %v1416
      %v1565 = vunpack.c.l.b16 %v1417
      %v1566 = vunpack.c.h.b16 %v1417
      %v1567 = vunpack.c.l.b16 %v1418
      %v1568 = vunpack.c.h.b16 %v1418
      %v1569 = vunpack.c.l.b16 %v1419
      %v1570 = vunpack.c.h.b16 %v1419
      %v1571 = vunpack.c.l.b16 %v1420
      %v1572 = vunpack.c.h.b16 %v1420
      %v1573 = vunpack.c.l.b16 %v1421
      %v1574 = vunpack.c.h.b16 %v1421
      %v1575 = vunpack.c.l.b16 %v1422
      %v1576 = vunpack.c.h.b16 %v1422
      %v1577 = vunpack.c.l.b16 %v1423
      %v1578 = vunpack.c.h.b16 %v1423
      %v1579 = vunpack.c.l.b16 %v1424
      %v1580 = vunpack.c.h.b16 %v1424
      %v1581 = vunpack.c.l.b16 %v1425
      %v1582 = vunpack.c.h.b16 %v1425
      %v1583 = vunpack.c.l.b16 %v1426
      %v1584 = vunpack.c.h.b16 %v1426
      %v1585 = vunpack.c.l.b16 %v1427
      %v1586 = vunpack.c.h.b16 %v1427
      %v1587 = vunpack.c.l.b16 %v1428
      %v1588 = vunpack.c.h.b16 %v1428
      %v1589 = vunpack.c.l.b16 %v1429
      %v1590 = vunpack.c.h.b16 %v1429
      %v1591 = vunpack.c.l.b16 %v1430
      %v1592 = vunpack.c.h.b16 %v1430
      %v1593 = vunpack.c.l.b16 %v1431
      %v1594 = vunpack.c.h.b16 %v1431
      %v1595 = vunpack.c.l.b16 %v1432
      %v1596 = vunpack.c.h.b16 %v1432
      %v1597 = vunpack.c.l.b16 %v1433
      %v1598 = vunpack.c.h.b16 %v1433
      %v1599 = vunpack.c.l.b16 %v1434
      %v1600 = vunpack.c.h.b16 %v1434
      %v1601 = vunpack.c.l.b16 %v1435
      %v1602 = vunpack.c.h.b16 %v1435
      %v1603 = vunpack.c.l.b16 %v1436
      %v1604 = vunpack.c.h.b16 %v1436
      %v1605 = vunpack.c.l.b16 %v1437
      %v1606 = vunpack.c.h.b16 %v1437
      %v1607 = vunpack.c.l.b16 %v1438
      %v1608 = vunpack.c.h.b16 %v1438
      %v1609 = vunpack.c.l.b16 %v1439
      %v1610 = vunpack.c.h.b16 %v1439
      %v1611 = vunpack.c.l.b16 %v1440
      %v1612 = vunpack.c.h.b16 %v1440
      %v1613 = vunpack.c.l.b16 %v1441
      %v1614 = vunpack.c.h.b16 %v1441
      %v1615 = vunpack.c.l.b16 %v1442
      %v1616 = vunpack.c.h.b16 %v1442
      %v1617 = vunpack.c.l.b16 %v1443
      %v1618 = vunpack.c.h.b16 %v1443
      %v1619 = vunpack.c.l.b16 %v1444
      %v1620 = vunpack.c.h.b16 %v1444
      %v1621 = vunpack.c.l.b16 %v1445
      %v1622 = vunpack.c.h.b16 %v1445
      %v1623 = vunpack.c.l.b16 %v1446
      %v1624 = vunpack.c.h.b16 %v1446
      %v1625 = vunpack.c.l.b16 %v1447
      %v1626 = vunpack.c.h.b16 %v1447
      %v1627 = vunpack.c.l.b16 %v1448
      %v1628 = vunpack.c.h.b16 %v1448
      %v1629 = vunpack.c.l.b16 %v1449
      %v1630 = vunpack.c.h.b16 %v1449
      %v1631 = vunpack.c.l.b16 %v1450
      %v1632 = vunpack.c.h.b16 %v1450
      %v1633 = vunpack.c.l.b16 %v1451
      %v1634 = vunpack.c.h.b16 %v1451
      %v1635 = vunpack.c.l.b16 %v1452
      %v1636 = vunpack.c.h.b16 %v1452
      %v1637 = vunpack.c.l.b16 %v1453
      %v1638 = vunpack.c.h.b16 %v1453
      %v1639 = vunpack.c.l.b16 %v1454
      %v1640 = vunpack.c.h.b16 %v1454
      %v1641 = vunpack.c.l.b16 %v1455
      %v1642 = vunpack.c.h.b16 %v1455
      %v1643 = vunpack.c.l.b16 %v1456
      %v1644 = vunpack.c.h.b16 %v1456
      %v1645 = vunpack.c.l.b16 %v1457
      %v1646 = vunpack.c.h.b16 %v1457
      %v1647 = vunpack.c.l.b16 %v1458
      %v1648 = vunpack.c.h.b16 %v1458
      %v1649 = vunpack.c.l.b16 %v1459
      %v1650 = vunpack.c.h.b16 %v1459
      %v1651 = vunpack.c.l.b16 %v1460
      %v1652 = vunpack.c.h.b16 %v1460
      %v1653 = vpack.c.b16 %v1525, %v1525
      %v1654 = vpack.c.b16 %v1526, %v1526
      %v1655 = vpack.c.b16 %v1527, %v1527
      %v1656 = vpack.c.b16 %v1528, %v1528
      %v1657 = vpack.c.b16 %v1529, %v1529
      %v1658 = vpack.c.b16 %v1530, %v1530
      %v1659 = vpack.c.b16 %v1531, %v1531
      %v1660 = vpack.c.b16 %v1532, %v1532
      %v1661 = vpack.c.b16 %v1533, %v1533
      %v1662 = vpack.c.b16 %v1534, %v1534
      %v1663 = vpack.c.b16 %v1535, %v1535
      %v1664 = vpack.c.b16 %v1536, %v1536
      %v1665 = vpack.c.b16 %v1537, %v1537
      %v1666 = vpack.c.b16 %v1538, %v1538
      %v1667 = vpack.c.b16 %v1539, %v1539
      %v1668 = vpack.c.b16 %v1540, %v1540
      %v1669 = vpack.c.b16 %v1541, %v1541
      %v1670 = vpack.c.b16 %v1542, %v1542
      %v1671 = vpack.c.b16 %v1543, %v1543
      %v1672 = vpack.c.b16 %v1544, %v1544
      %v1673 = vpack.c.b16 %v1545, %v1545
      %v1674 = vpack.c.b16 %v1546, %v1546
      %v1675 = vpack.c.b16 %v1547, %v1547
      %v1676 = vpack.c.b16 %v1548, %v1548
      %v1677 = vpack.c.b16 %v1549, %v1549
      %v1678 = vpack.c.b16 %v1550, %v1550
      %v1679 = vpack.c.b16 %v1551, %v1551
      %v1680 = vpack.c.b16 %v1552, %v1552
      %v1681 = vpack.c.b16 %v1553, %v1553
      %v1682 = vpack.c.b16 %v1554, %v1554
      %v1683 = vpack.c.b16 %v1555, %v1555
      %v1684 = vpack.c.b16 %v1556, %v1556
      %v1685 = vpack.c.b16 %v1557, %v1557
      %v1686 = vpack.c.b16 %v1558, %v1558
      %v1687 = vpack.c.b16 %v1559, %v1559
      %v1688 = vpack.c.b16 %v1560, %v1560
      %v1689 = vpack.c.b16 %v1561, %v1561
      %v1690 = vpack.c.b16 %v1562, %v1562
      %v1691 = vpack.c.b16 %v1563, %v1563
      %v1692 = vpack.c.b16 %v1564, %v1564
      %v1693 = vpack.c.b16 %v1565, %v1565
      %v1694 = vpack.c.b16 %v1566, %v1566
      %v1695 = vpack.c.b16 %v1567, %v1567
      %v1696 = vpack.c.b16 %v1568, %v1568
      %v1697 = vpack.c.b16 %v1569, %v1569
      %v1698 = vpack.c.b16 %v1570, %v1570
      %v1699 = vpack.c.b16 %v1571, %v1571
      %v1700 = vpack.c.b16 %v1572, %v1572
      %v1701 = vpack.c.b16 %v1573, %v1573
      %v1702 = vpack.c.b16 %v1574, %v1574
      %v1703 = vpack.c.b16 %v1575, %v1575
      %v1704 = vpack.c.b16 %v1576, %v1576
      %v1705 = vpack.c.b16 %v1577, %v1577
      %v1706 = vpack.c.b16 %v1578, %v1578
      %v1707 = vpack.c.b16 %v1579, %v1579
      %v1708 = vpack.c.b16 %v1580, %v1580
      %v1709 = vpack.c.b16 %v1581, %v1581
      %v1710 = vpack.c.b16 %v1582, %v1582
      %v1711 = vpack.c.b16 %v1583, %v1583
      %v1712 = vpack.c.b16 %v1584, %v1584
      %v1713 = vpack.c.b16 %v1585, %v1585
      %v1714 = vpack.c.b16 %v1586, %v1586
      %v1715 = vpack.c.b16 %v1587, %v1587
      %v1716 = vpack.c.b16 %v1588, %v1588
      %v1717 = vpack.c.b16 %v1589, %v1589
      %v1718 = vpack.c.b16 %v1590, %v1590
      %v1719 = vpack.c.b16 %v1591, %v1591
      %v1720 = vpack.c.b16 %v1592, %v1592
      %v1721 = vpack.c.b16 %v1593, %v1593
      %v1722 = vpack.c.b16 %v1594, %v1594
      %v1723 = vpack.c.b16 %v1595, %v1595
      %v1724 = vpack.c.b16 %v1596, %v1596
      %v1725 = vpack.c.b16 %v1597, %v1597
      %v1726 = vpack.c.b16 %v1598, %v1598
      %v1727 = vpack.c.b16 %v1599, %v1599
      %v1728 = vpack.c.b16 %v1600, %v1600
      %v1729 = vpack.c.b16 %v1601, %v1601
      %v1730 = vpack.c.b16 %v1602, %v1602
      %v1731 = vpack.c.b16 %v1603, %v1603
      %v1732 = vpack.c.b16 %v1604, %v1604
      %v1733 = vpack.c.b16 %v1605, %v1605
      %v1734 = vpack.c.b16 %v1606, %v1606
      %v1735 = vpack.c.b16 %v1607, %v1607
      %v1736 = vpack.c.b16 %v1608, %v1608
      %v1737 = vpack.c.b16 %v1609, %v1609
      %v1738 = vpack.c.b16 %v1610, %v1610
      %v1739 = vpack.c.b16 %v1611, %v1611
      %v1740 = vpack.c.b16 %v1612, %v1612
      %v1741 = vpack.c.b16 %v1613, %v1613
      %v1742 = vpack.c.b16 %v1614, %v1614
      %v1743 = vpack.c.b16 %v1615, %v1615
      %v1744 = vpack.c.b16 %v1616, %v1616
      %v1745 = vpack.c.b16 %v1617, %v1617
      %v1746 = vpack.c.b16 %v1618, %v1618
      %v1747 = vpack.c.b16 %v1619, %v1619
      %v1748 = vpack.c.b16 %v1620, %v1620
      %v1749 = vpack.c.b16 %v1621, %v1621
      %v1750 = vpack.c.b16 %v1622, %v1622
      %v1751 = vpack.c.b16 %v1623, %v1623
      %v1752 = vpack.c.b16 %v1624, %v1624
      %v1753 = vpack.c.b16 %v1625, %v1625
      %v1754 = vpack.c.b16 %v1626, %v1626
      %v1755 = vpack.c.b16 %v1627, %v1627
      %v1756 = vpack.c.b16 %v1628, %v1628
      %v1757 = vpack.c.b16 %v1629, %v1629
      %v1758 = vpack.c.b16 %v1630, %v1630
      %v1759 = vpack.c.b16 %v1631, %v1631
      %v1760 = vpack.c.b16 %v1632, %v1632
      %v1761 = vpack.c.b16 %v1633, %v1633
      %v1762 = vpack.c.b16 %v1634, %v1634
      %v1763 = vpack.c.b16 %v1635, %v1635
      %v1764 = vpack.c.b16 %v1636, %v1636
      %v1765 = vpack.c.b16 %v1637, %v1637
      %v1766 = vpack.c.b16 %v1638, %v1638
      %v1767 = vpack.c.b16 %v1639, %v1639
      %v1768 = vpack.c.b16 %v1640, %v1640
      %v1769 = vpack.c.b16 %v1641, %v1641
      %v1770 = vpack.c.b16 %v1642, %v1642
      %v1771 = vpack.c.b16 %v1643, %v1643
      %v1772 = vpack.c.b16 %v1644, %v1644
      %v1773 = vpack.c.b16 %v1645, %v1645
      %v1774 = vpack.c.b16 %v1646, %v1646
      %v1775 = vpack.c.b16 %v1647, %v1647
      %v1776 = vpack.c.b16 %v1648, %v1648
      %v1777 = vpack.c.b16 %v1649, %v1649
      %v1778 = vpack.c.b16 %v1650, %v1650
      %v1779 = vpack.c.b16 %v1651, %v1651
      %v1780 = vpack.c.b16 %v1652, %v1652
      %1909 = vst [vmem:[%s145] sm:$0xf] %v1653
      %1910 = vst [vmem:[%s145 + $0x4] sm:$0xf] %v1654
      %1911 = vst [vmem:[%s145 + $0x8] sm:$0xf] %v1655
      %1912 = vst [vmem:[%s145 + $0xc] sm:$0xf] %v1656
      %1913 = vst [vmem:[%s145 + $0x10] sm:$0xf] %v1657
      %1914 = vst [vmem:[%s145 + $0x14] sm:$0xf] %v1658
      %1915 = vst [vmem:[%s145 + $0x18] sm:$0xf] %v1659
      %1916 = vst [vmem:[%s145 + $0x1c] sm:$0xf] %v1660
      %1917 = vst [vmem:[%s145 + $0x20] sm:$0xf] %v1661
      %1918 = vst [vmem:[%s145 + $0x24] sm:$0xf] %v1662
      %1919 = vst [vmem:[%s145 + $0x28] sm:$0xf] %v1663
      %1920 = vst [vmem:[%s145 + $0x2c] sm:$0xf] %v1664
      %1921 = vst [vmem:[%s145 + $0x30] sm:$0xf] %v1665
      %1922 = vst [vmem:[%s145 + $0x34] sm:$0xf] %v1666
      %1923 = vst [vmem:[%s145 + $0x38] sm:$0xf] %v1667
      %1924 = vst [vmem:[%s145 + $0x3c] sm:$0xf] %v1668
      %1925 = vst [vmem:[%s145 + $0x40] sm:$0xf] %v1669
      %1926 = vst [vmem:[%s145 + $0x44] sm:$0xf] %v1670
      %1927 = vst [vmem:[%s145 + $0x48] sm:$0xf] %v1671
      %1928 = vst [vmem:[%s145 + $0x4c] sm:$0xf] %v1672
      %1929 = vst [vmem:[%s145 + $0x50] sm:$0xf] %v1673
      %1930 = vst [vmem:[%s145 + $0x54] sm:$0xf] %v1674
      %1931 = vst [vmem:[%s145 + $0x58] sm:$0xf] %v1675
      %1932 = vst [vmem:[%s145 + $0x5c] sm:$0xf] %v1676
      %1933 = vst [vmem:[%s145 + $0x60] sm:$0xf] %v1677
      %1934 = vst [vmem:[%s145 + $0x64] sm:$0xf] %v1678
      %1935 = vst [vmem:[%s145 + $0x68] sm:$0xf] %v1679
      %1936 = vst [vmem:[%s145 + $0x6c] sm:$0xf] %v1680
      %1937 = vst [vmem:[%s145 + $0x70] sm:$0xf] %v1681
      %1938 = vst [vmem:[%s145 + $0x74] sm:$0xf] %v1682
      %1939 = vst [vmem:[%s145 + $0x78] sm:$0xf] %v1683
      %1940 = vst [vmem:[%s145 + $0x7c] sm:$0xf] %v1684
      %1941 = vst [vmem:[%s145 + $0x80] sm:$0xf] %v1685
      %1942 = vst [vmem:[%s145 + $0x84] sm:$0xf] %v1686
      %1943 = vst [vmem:[%s145 + $0x88] sm:$0xf] %v1687
      %1944 = vst [vmem:[%s145 + $0x8c] sm:$0xf] %v1688
      %1945 = vst [vmem:[%s145 + $0x90] sm:$0xf] %v1689
      %1946 = vst [vmem:[%s145 + $0x94] sm:$0xf] %v1690
      %1947 = vst [vmem:[%s145 + $0x98] sm:$0xf] %v1691
      %1948 = vst [vmem:[%s145 + $0x9c] sm:$0xf] %v1692
      %1949 = vst [vmem:[%s145 + $0xa0] sm:$0xf] %v1693
      %1950 = vst [vmem:[%s145 + $0xa4] sm:$0xf] %v1694
      %1951 = vst [vmem:[%s145 + $0xa8] sm:$0xf] %v1695
      %1952 = vst [vmem:[%s145 + $0xac] sm:$0xf] %v1696
      %1953 = vst [vmem:[%s145 + $0xb0] sm:$0xf] %v1697
      %1954 = vst [vmem:[%s145 + $0xb4] sm:$0xf] %v1698
      %1955 = vst [vmem:[%s145 + $0xb8] sm:$0xf] %v1699
      %1956 = vst [vmem:[%s145 + $0xbc] sm:$0xf] %v1700
      %1957 = vst [vmem:[%s145 + $0xc0] sm:$0xf] %v1701
      %1958 = vst [vmem:[%s145 + $0xc4] sm:$0xf] %v1702
      %1959 = vst [vmem:[%s145 + $0xc8] sm:$0xf] %v1703
      %1960 = vst [vmem:[%s145 + $0xcc] sm:$0xf] %v1704
      %1961 = vst [vmem:[%s145 + $0xd0] sm:$0xf] %v1705
      %1962 = vst [vmem:[%s145 + $0xd4] sm:$0xf] %v1706
      %1963 = vst [vmem:[%s145 + $0xd8] sm:$0xf] %v1707
      %1964 = vst [vmem:[%s145 + $0xdc] sm:$0xf] %v1708
      %1965 = vst [vmem:[%s145 + $0xe0] sm:$0xf] %v1709
      %1966 = vst [vmem:[%s145 + $0xe4] sm:$0xf] %v1710
      %1967 = vst [vmem:[%s145 + $0xe8] sm:$0xf] %v1711
      %1968 = vst [vmem:[%s145 + $0xec] sm:$0xf] %v1712
      %1969 = vst [vmem:[%s145 + $0xf0] sm:$0xf] %v1713
      %1970 = vst [vmem:[%s145 + $0xf4] sm:$0xf] %v1714
      %1971 = vst [vmem:[%s145 + $0xf8] sm:$0xf] %v1715
      %1972 = vst [vmem:[%s145 + $0xfc] sm:$0xf] %v1716
      %1973 = vst [vmem:[%s145 + $0x100] sm:$0xf] %v1717
      %1974 = vst [vmem:[%s145 + $0x104] sm:$0xf] %v1718
      %1975 = vst [vmem:[%s145 + $0x108] sm:$0xf] %v1719
      %1976 = vst [vmem:[%s145 + $0x10c] sm:$0xf] %v1720
      %1977 = vst [vmem:[%s145 + $0x110] sm:$0xf] %v1721
      %1978 = vst [vmem:[%s145 + $0x114] sm:$0xf] %v1722
      %1979 = vst [vmem:[%s145 + $0x118] sm:$0xf] %v1723
      %1980 = vst [vmem:[%s145 + $0x11c] sm:$0xf] %v1724
      %1981 = vst [vmem:[%s145 + $0x120] sm:$0xf] %v1725
      %1982 = vst [vmem:[%s145 + $0x124] sm:$0xf] %v1726
      %1983 = vst [vmem:[%s145 + $0x128] sm:$0xf] %v1727
      %1984 = vst [vmem:[%s145 + $0x12c] sm:$0xf] %v1728
      %1985 = vst [vmem:[%s145 + $0x130] sm:$0xf] %v1729
      %1986 = vst [vmem:[%s145 + $0x134] sm:$0xf] %v1730
      %1987 = vst [vmem:[%s145 + $0x138] sm:$0xf] %v1731
      %1988 = vst [vmem:[%s145 + $0x13c] sm:$0xf] %v1732
      %1989 = vst [vmem:[%s145 + $0x140] sm:$0xf] %v1733
      %1990 = vst [vmem:[%s145 + $0x144] sm:$0xf] %v1734
      %1991 = vst [vmem:[%s145 + $0x148] sm:$0xf] %v1735
      %1992 = vst [vmem:[%s145 + $0x14c] sm:$0xf] %v1736
      %1993 = vst [vmem:[%s145 + $0x150] sm:$0xf] %v1737
      %1994 = vst [vmem:[%s145 + $0x154] sm:$0xf] %v1738
      %1995 = vst [vmem:[%s145 + $0x158] sm:$0xf] %v1739
      %1996 = vst [vmem:[%s145 + $0x15c] sm:$0xf] %v1740
      %1997 = vst [vmem:[%s145 + $0x160] sm:$0xf] %v1741
      %1998 = vst [vmem:[%s145 + $0x164] sm:$0xf] %v1742
      %1999 = vst [vmem:[%s145 + $0x168] sm:$0xf] %v1743
      %2000 = vst [vmem:[%s145 + $0x16c] sm:$0xf] %v1744
      %2001 = vst [vmem:[%s145 + $0x170] sm:$0xf] %v1745
      %2002 = vst [vmem:[%s145 + $0x174] sm:$0xf] %v1746
      %2003 = vst [vmem:[%s145 + $0x178] sm:$0xf] %v1747
      %2004 = vst [vmem:[%s145 + $0x17c] sm:$0xf] %v1748
      %2005 = vst [vmem:[%s145 + $0x180] sm:$0xf] %v1749
      %2006 = vst [vmem:[%s145 + $0x184] sm:$0xf] %v1750
      %2007 = vst [vmem:[%s145 + $0x188] sm:$0xf] %v1751
      %2008 = vst [vmem:[%s145 + $0x18c] sm:$0xf] %v1752
      %2009 = vst [vmem:[%s145 + $0x190] sm:$0xf] %v1753
      %2010 = vst [vmem:[%s145 + $0x194] sm:$0xf] %v1754
      %2011 = vst [vmem:[%s145 + $0x198] sm:$0xf] %v1755
      %2012 = vst [vmem:[%s145 + $0x19c] sm:$0xf] %v1756
      %2013 = vst [vmem:[%s145 + $0x1a0] sm:$0xf] %v1757
      %2014 = vst [vmem:[%s145 + $0x1a4] sm:$0xf] %v1758
      %2015 = vst [vmem:[%s145 + $0x1a8] sm:$0xf] %v1759
      %2016 = vst [vmem:[%s145 + $0x1ac] sm:$0xf] %v1760
      %2017 = vst [vmem:[%s145 + $0x1b0] sm:$0xf] %v1761
      %2018 = vst [vmem:[%s145 + $0x1b4] sm:$0xf] %v1762
      %2019 = vst [vmem:[%s145 + $0x1b8] sm:$0xf] %v1763
      %2020 = vst [vmem:[%s145 + $0x1bc] sm:$0xf] %v1764
      %2021 = vst [vmem:[%s145 + $0x1c0] sm:$0xf] %v1765
      %2022 = vst [vmem:[%s145 + $0x1c4] sm:$0xf] %v1766
      %2023 = vst [vmem:[%s145 + $0x1c8] sm:$0xf] %v1767
      %2024 = vst [vmem:[%s145 + $0x1cc] sm:$0xf] %v1768
      %2025 = vst [vmem:[%s145 + $0x1d0] sm:$0xf] %v1769
      %2026 = vst [vmem:[%s145 + $0x1d4] sm:$0xf] %v1770
      %2027 = vst [vmem:[%s145 + $0x1d8] sm:$0xf] %v1771
      %2028 = vst [vmem:[%s145 + $0x1dc] sm:$0xf] %v1772
      %2029 = vst [vmem:[%s145 + $0x1e0] sm:$0xf] %v1773
      %2030 = vst [vmem:[%s145 + $0x1e4] sm:$0xf] %v1774
      %2031 = vst [vmem:[%s145 + $0x1e8] sm:$0xf] %v1775
      %2032 = vst [vmem:[%s145 + $0x1ec] sm:$0xf] %v1776
      %2033 = vst [vmem:[%s145 + $0x1f0] sm:$0xf] %v1777
      %2034 = vst [vmem:[%s145 + $0x1f4] sm:$0xf] %v1778
      %2035 = vst [vmem:[%s145 + $0x1f8] sm:$0xf] %v1779
      %2036 = vst [vmem:[%s145 + $0x1fc] sm:$0xf] %v1780
      %s2037 = smul.u32 128, %s13
      %p2038 = scmp.lt.s32.totalorder %s2037, 255
      %s2039 = scalar_select %p2038, %s2037, 255
      %s2040 = smul.addr %s2039, 4
      %s2041 = scalar_lea.vmem %s2, %s2040
      // Predicated region
      $region29: #{generator_forward.9} parent=27 // pred_check
        %p2042 = pneg %p78
      $region30: #{generator_forward.9} parent=27 // pred_check_branch
        %2044 = sbr.rel (%p2042) target = $region32
      $region31: #{generator_forward.9} parent=27 // pred_region
        %s2045 = smul.u32 128, %s13
      $region32: #{generator_forward.9} parent=27 // pred_fallthru
        _
    $region28: #{generator_forward.9} parent=5 // pred_fallthru
      _
    %p2046 = scmp.le.s32.totalorder 2, %s8
    // Predicated region
    $region33: #{generator_forward.9} parent=5 // pred_check
      %p2047 = pneg %p2046
    $region34: #{generator_forward.9} parent=5 // pred_check_branch
      %2049 = sbr.rel (%p2047) target = $region36
    $region35: #{generator_forward.9} parent=5 // pred_region
      %s2050 = ssub.s32 %s8, 2
      // Predicated region
      $region37: #{generator_forward.9} parent=35 // pred_check
        %p2051 = pneg %p84
      $region38: #{generator_forward.9} parent=35 // pred_check_branch
        %2053 = sbr.rel (%p2051) target = $region40
      $region39: #{generator_forward.9} parent=35 // pred_region
        %s2054 = smul.u32 128, %s14
        %p2055 = scmp.lt.s32.totalorder %s2054, 255
        %s2056 = scalar_select %p2055, %s2054, 255
        %s2057 = smul.addr %s2056, 4
        %s2058 = scalar_lea.vmem %s2, %s2057
      $region40: #{generator_forward.9} parent=35 // pred_fallthru
        _
    $region36: #{generator_forward.9} parent=5 // pred_fallthru
      _
  $region6: #{generator_forward.9} parent=0 // loop_footer
    %s12 = sadd.s32 1, %s8
  $region7: #{generator_forward.9} parent=0 // loop_footer_branch
    %7 = sbr.rel target = $region3
  $region8: #{generator_forward.9} parent=0 // loop_exit
    _

</llo_original>
